<compile_context>
chip_gen: v6e
topology: v6e:2x2x1
jax: 0.10.0
libtpu: 0.0.40
codegen_flags: <defaults>
</compile_context>

<pallas_src>
import jax
import jax.numpy as jnp
from jax import lax
from jax.experimental import pallas as pl
from jax.experimental.pallas import tpu as pltpu

_EPS = 1e-5  # nn.InstanceNorm2d default eps


def _resblock_kernel(x_ref, w1_ref, g1_ref, be1_ref, w2_ref, g2_ref, be2_ref,
                     y_ref, pad_ref):
    """Fused ResidualBlock for one sample; refs are channels-last (H, W, C)."""
    H, W, C = x_ref.shape
    Hp, Wp = H + 2, W + 2
    inv_hw = jnp.float32(1.0 / (H * W))

    def reflect_pad_store(src):
        # src: (H, W, C) f32 value.  Direct stores: one interior store + 4
        # small border stores (no full-tile concat copies).
        pad_ref[1:H + 1, 1:W + 1, :] = src
        pad_ref[1:H + 1, 0:1, :] = src[:, 1:2, :]
        pad_ref[1:H + 1, W + 1:Wp, :] = src[:, W - 2:W - 1, :]
        # top / bottom padded rows (include the corner reflections).
        top = jnp.concatenate([src[1:2, 1:2, :], src[1:2, :, :],
                               src[1:2, W - 2:W - 1, :]], axis=1)
        bot = jnp.concatenate([src[H - 2:H - 1, 1:2, :], src[H - 2:H - 1, :, :],
                               src[H - 2:H - 1, W - 2:W - 1, :]], axis=1)
        pad_ref[0:1, :, :] = top
        pad_ref[Hp - 1:Hp, :, :] = bot

    def conv3x3(w_ref):
        # w_ref: (3, 3C, C) -- per-dy (3*Cin, Cout) matrices, rows = (dx, cin).
        # dx slices (unaligned sublane slices) done ONCE each, folded into K.
        strip = jnp.concatenate(
            [pad_ref[:, dx:dx + W, :] for dx in range(3)], axis=-1)  # (Hp,W,3C)
        acc = jnp.zeros((H * W, C), jnp.float32)
        for dy in range(3):                       # free major-axis slices
            acc = acc + jnp.dot(strip[dy:dy + H].reshape(H * W, 3 * C),
                                w_ref[dy],
                                preferred_element_type=jnp.float32)
        return acc

    def inst_norm(acc, g_ref, be_ref):
        # single-pass stats, fused affine: acc*scale + shift (2 VPU ops/elem).
        s = jnp.sum(acc, axis=0, keepdims=True)
        ss = jnp.sum(acc * acc, axis=0, keepdims=True)
        mean = s * inv_hw
        var = jnp.maximum(ss * inv_hw - mean * mean, 0.0)
        scale = g_ref[...] * lax.rsqrt(var + _EPS)
        shift = be_ref[...] - mean * scale
        return acc * scale + shift

    x = x_ref[...].astype(jnp.float32)

    # ---- stage 1: h = relu(in1(conv1(x))) ----
    reflect_pad_store(x)
    h1 = jnp.maximum(inst_norm(conv3x3(w1_ref), g1_ref, be1_ref), 0.0)
    h1 = h1.reshape(H, W, C)

    # ---- stage 2: out = in2(conv2(h)) + residual ----
    # reuse the SAME scratch for padded h1 (x is no longer read from it).
    reflect_pad_store(h1)
    out2 = inst_norm(conv3x3(w2_ref), g2_ref, be2_ref).reshape(H, W, C)
    y_ref[...] = (out2 + x).astype(y_ref.dtype)


def residual_block_forward(x, params):
    """Pallas forward pass of ResidualBlock.  x: (B, C, H, W) float32."""
    (w1, b1, g1, be1, w2, b2, g2, be2) = params
    del b1, b2  # conv bias is algebraically a no-op under InstanceNorm
    B, C, H, W = x.shape

    # NCHW -> NHWC (C on lanes).  Padding happens in-kernel.
    x_nhwc = jnp.transpose(x, (0, 2, 3, 1))

    # OIHW -> per-dy (3*Cin, Cout) MXU matrices, row order (dx, cin).
    def prep_w(w):
        return jnp.transpose(w, (2, 3, 1, 0)).reshape(3, 3 * C, C).astype(jnp.float32)

    row = lambda v: v.reshape(1, C).astype(jnp.float32)

    w_spec = pl.BlockSpec((3, 3 * C, C), lambda b: (0, 0, 0))
    vec_spec = pl.BlockSpec((1, C), lambda b: (0, 0))

    out_nhwc = pl.pallas_call(
        _resblock_kernel,
        out_shape=jax.ShapeDtypeStruct((B, H, W, C), x.dtype),
        grid_spec=pltpu.PrefetchScalarGridSpec(
            num_scalar_prefetch=0,
            grid=(B,),
            in_specs=[
                pl.BlockSpec((None, H, W, C), lambda b: (b, 0, 0, 0)),
                w_spec, vec_spec, vec_spec,
                w_spec, vec_spec, vec_spec,
            ],
            out_specs=pl.BlockSpec((None, H, W, C), lambda b: (b, 0, 0, 0)),
            scratch_shapes=[pltpu.VMEM((H + 2, W + 2, C), jnp.float32)],
        ),
        compiler_params=pltpu.CompilerParams(
            dimension_semantics=("parallel",)),
    )(x_nhwc, prep_w(w1), row(g1), row(be1), prep_w(w2), row(g2), row(be2))

    return jnp.transpose(out_nhwc, (0, 3, 1, 2))


# ---------------- pure-JAX reference (correctness check only) ----------------
def _reflect_pad(x):
    return jnp.pad(x, ((0, 0), (0, 0), (1, 1), (1, 1)), mode="reflect")


def _conv_layer_ref(x, w, b):
    y = lax.conv_general_dilated(_reflect_pad(x), w, window_strides=(1, 1),
                                 padding="VALID",
                                 dimension_numbers=("NCHW", "OIHW", "NCHW"))
    return y + b[None, :, None, None]


def _instance_norm_ref(x, g, be):
    m = jnp.mean(x, axis=(2, 3), keepdims=True)
    v = jnp.mean((x - m) ** 2, axis=(2, 3), keepdims=True)
    return g[None, :, None, None] * (x - m) / jnp.sqrt(v + _EPS) + be[None, :, None, None]


def residual_block_ref(x, params):
    (w1, b1, g1, be1, w2, b2, g2, be2) = params
    h = jax.nn.relu(_instance_norm_ref(_conv_layer_ref(x, w1, b1), g1, be1))
    return _instance_norm_ref(_conv_layer_ref(h, w2, b2), g2, be2) + x


if __name__ == "__main__":
    B, C, H, W = 2, 4, 16, 16
    key = jax.random.PRNGKey(0)
    kx, k1, k2, k3, k4, k5, k6, k7, k8 = jax.random.split(key, 9)

    x = jax.random.normal(kx, (B, C, H, W), jnp.float32)
    fan_in = C * 3 * 3
    w1 = jax.random.normal(k1, (C, C, 3, 3), jnp.float32) / jnp.sqrt(fan_in)
    b1 = 0.1 * jax.random.normal(k2, (C,), jnp.float32)
    g1 = 1.0 + 0.1 * jax.random.normal(k3, (C,), jnp.float32)
    be1 = 0.1 * jax.random.normal(k4, (C,), jnp.float32)
    w2 = jax.random.normal(k5, (C, C, 3, 3), jnp.float32) / jnp.sqrt(fan_in)
    b2 = 0.1 * jax.random.normal(k6, (C,), jnp.float32)
    g2 = 1.0 + 0.1 * jax.random.normal(k7, (C,), jnp.float32)
    be2 = 0.1 * jax.random.normal(k8, (C,), jnp.float32)
    params = (w1, b1, g1, be1, w2, b2, g2, be2)

    out = jax.block_until_ready(residual_block_forward(x, params))
    ref = jax.block_until_ready(residual_block_ref(x, params))

    assert out.shape == (B, C, H, W)
    if not jnp.allclose(out, ref, atol=1e-4, rtol=1e-4):
        raise AssertionError("Pallas output does not match reference")
    print("KERNEL_OK")
</pallas_src>

<mosaic_0001>
module attributes {stable_mosaic.version = 11 : i64} {
  func.func @_resblock_kernel(%arg0: i32, %arg1: memref<1x16x16x4xf32, #tpu.memory_space<vmem>>, %arg2: memref<3x12x4xf32, #tpu.memory_space<vmem>>, %arg3: memref<1x4xf32, #tpu.memory_space<vmem>>, %arg4: memref<1x4xf32, #tpu.memory_space<vmem>>, %arg5: memref<3x12x4xf32, #tpu.memory_space<vmem>>, %arg6: memref<1x4xf32, #tpu.memory_space<vmem>>, %arg7: memref<1x4xf32, #tpu.memory_space<vmem>>, %arg8: memref<1x16x16x4xf32, #tpu.memory_space<vmem>>, %arg9: memref<18x18x4xf32, #tpu.memory_space<vmem>>) attributes {dimension_semantics = [#tpu.dimension_semantics<parallel>], iteration_bounds = array<i64: 2>, scalar_prefetch = 0 : i64, scratch_operands = 1 : i64, tpu.core_type = #tpu.core_type<tc>, window_params = [{transform_indices = @transform_0, window_bounds = array<i64: 1, 16, 16, 4>}, {pipeline_mode = #tpu.pipeline_mode<synchronous>, transform_indices = @transform_1, window_bounds = array<i64: 3, 12, 4>}, {pipeline_mode = #tpu.pipeline_mode<synchronous>, transform_indices = @transform_2, window_bounds = array<i64: 1, 4>}, {pipeline_mode = #tpu.pipeline_mode<synchronous>, transform_indices = @transform_3, window_bounds = array<i64: 1, 4>}, {pipeline_mode = #tpu.pipeline_mode<synchronous>, transform_indices = @transform_4, window_bounds = array<i64: 3, 12, 4>}, {pipeline_mode = #tpu.pipeline_mode<synchronous>, transform_indices = @transform_5, window_bounds = array<i64: 1, 4>}, {pipeline_mode = #tpu.pipeline_mode<synchronous>, transform_indices = @transform_6, window_bounds = array<i64: 1, 4>}, {transform_indices = @transform_7, window_bounds = array<i64: 1, 16, 16, 4>}]} {
    %c0 = arith.constant 0 : index
    %c0_0 = arith.constant 0 : index
    %c0_1 = arith.constant 0 : index
    %c0_2 = arith.constant 0 : index
    %0 = vector.load %arg1[%c0, %c0_0, %c0_1, %c0_2] : memref<1x16x16x4xf32, #tpu.memory_space<vmem>>, vector<1x16x16x4xf32>
    %1 = vector.shape_cast %0 : vector<1x16x16x4xf32> to vector<16x16x4xf32>
    %c1 = arith.constant 1 : index
    %c1_3 = arith.constant 1 : index
    %c0_4 = arith.constant 0 : index
    %2 = vector.load %arg9[%c1, %c1_3, %c0_4] : memref<18x18x4xf32, #tpu.memory_space<vmem>>, vector<16x16x4xf32>
    tpu.vector_store %arg9[%c1, %c1_3, %c0_4], %1 {strides = array<i32>} : memref<18x18x4xf32, #tpu.memory_space<vmem>>, vector<16x16x4xf32>,
    %3 = vector.extract_strided_slice %1 {offsets = [0, 1, 0], sizes = [16, 1, 4], strides = [1, 1, 1]} : vector<16x16x4xf32> to vector<16x1x4xf32>
    %c1_5 = arith.constant 1 : index
    %c0_6 = arith.constant 0 : index
    %c0_7 = arith.constant 0 : index
    %4 = vector.load %arg9[%c1_5, %c0_6, %c0_7] : memref<18x18x4xf32, #tpu.memory_space<vmem>>, vector<16x1x4xf32>
    tpu.vector_store %arg9[%c1_5, %c0_6, %c0_7], %3 {strides = array<i32>} : memref<18x18x4xf32, #tpu.memory_space<vmem>>, vector<16x1x4xf32>,
    %5 = vector.extract_strided_slice %1 {offsets = [0, 14, 0], sizes = [16, 1, 4], strides = [1, 1, 1]} : vector<16x16x4xf32> to vector<16x1x4xf32>
    %c1_8 = arith.constant 1 : index
    %c17 = arith.constant 17 : index
    %c0_9 = arith.constant 0 : index
    %6 = vector.load %arg9[%c1_8, %c17, %c0_9] : memref<18x18x4xf32, #tpu.memory_space<vmem>>, vector<16x1x4xf32>
    tpu.vector_store %arg9[%c1_8, %c17, %c0_9], %5 {strides = array<i32>} : memref<18x18x4xf32, #tpu.memory_space<vmem>>, vector<16x1x4xf32>,
    %7 = vector.extract_strided_slice %1 {offsets = [1, 1, 0], sizes = [1, 1, 4], strides = [1, 1, 1]} : vector<16x16x4xf32> to vector<1x1x4xf32>
    %8 = vector.extract_strided_slice %1 {offsets = [1, 0, 0], sizes = [1, 16, 4], strides = [1, 1, 1]} : vector<16x16x4xf32> to vector<1x16x4xf32>
    %9 = vector.extract_strided_slice %1 {offsets = [1, 14, 0], sizes = [1, 1, 4], strides = [1, 1, 1]} : vector<16x16x4xf32> to vector<1x1x4xf32>
    %10 = tpu.concatenate %7, %8, %9 in 1 : vector<1x1x4xf32>, vector<1x16x4xf32>, vector<1x1x4xf32> -> vector<1x18x4xf32>
    %11 = vector.extract_strided_slice %1 {offsets = [14, 1, 0], sizes = [1, 1, 4], strides = [1, 1, 1]} : vector<16x16x4xf32> to vector<1x1x4xf32>
    %12 = vector.extract_strided_slice %1 {offsets = [14, 0, 0], sizes = [1, 16, 4], strides = [1, 1, 1]} : vector<16x16x4xf32> to vector<1x16x4xf32>
    %13 = vector.extract_strided_slice %1 {offsets = [14, 14, 0], sizes = [1, 1, 4], strides = [1, 1, 1]} : vector<16x16x4xf32> to vector<1x1x4xf32>
    %14 = tpu.concatenate %11, %12, %13 in 1 : vector<1x1x4xf32>, vector<1x16x4xf32>, vector<1x1x4xf32> -> vector<1x18x4xf32>
    %c0_10 = arith.constant 0 : index
    %c0_11 = arith.constant 0 : index
    %c0_12 = arith.constant 0 : index
    %15 = vector.load %arg9[%c0_10, %c0_11, %c0_12] : memref<18x18x4xf32, #tpu.memory_space<vmem>>, vector<1x18x4xf32>
    tpu.vector_store %arg9[%c0_10, %c0_11, %c0_12], %10 {strides = array<i32>} : memref<18x18x4xf32, #tpu.memory_space<vmem>>, vector<1x18x4xf32>,
    %c17_13 = arith.constant 17 : index
    %c0_14 = arith.constant 0 : index
    %c0_15 = arith.constant 0 : index
    %16 = vector.load %arg9[%c17_13, %c0_14, %c0_15] : memref<18x18x4xf32, #tpu.memory_space<vmem>>, vector<1x18x4xf32>
    tpu.vector_store %arg9[%c17_13, %c0_14, %c0_15], %14 {strides = array<i32>} : memref<18x18x4xf32, #tpu.memory_space<vmem>>, vector<1x18x4xf32>,
    %c0_16 = arith.constant 0 : index
    %c0_17 = arith.constant 0 : index
    %c0_18 = arith.constant 0 : index
    %17 = vector.load %arg9[%c0_16, %c0_17, %c0_18] : memref<18x18x4xf32, #tpu.memory_space<vmem>>, vector<18x16x4xf32>
    %c0_19 = arith.constant 0 : index
    %c1_20 = arith.constant 1 : index
    %c0_21 = arith.constant 0 : index
    %18 = vector.load %arg9[%c0_19, %c1_20, %c0_21] : memref<18x18x4xf32, #tpu.memory_space<vmem>>, vector<18x16x4xf32>
    %c0_22 = arith.constant 0 : index
    %c2 = arith.constant 2 : index
    %c0_23 = arith.constant 0 : index
    %19 = vector.load %arg9[%c0_22, %c2, %c0_23] : memref<18x18x4xf32, #tpu.memory_space<vmem>>, vector<18x16x4xf32>
    %20 = tpu.concatenate %17, %18, %19 in 2 : vector<18x16x4xf32>, vector<18x16x4xf32>, vector<18x16x4xf32> -> vector<18x16x12xf32>
    %cst = arith.constant 0.000000e+00 : f32
    %21 = vector.broadcast %cst : f32 to vector<256x4xf32>
    %22 = vector.extract_strided_slice %20 {offsets = [0, 0, 0], sizes = [16, 16, 12], strides = [1, 1, 1]} : vector<18x16x12xf32> to vector<16x16x12xf32>
    %23 = vector.shape_cast %22 : vector<16x16x12xf32> to vector<256x12xf32>
    %c0_24 = arith.constant 0 : index
    %c0_25 = arith.constant 0 : index
    %c0_26 = arith.constant 0 : index
    %24 = vector.load %arg2[%c0_24, %c0_25, %c0_26] : memref<3x12x4xf32, #tpu.memory_space<vmem>>, vector<1x12x4xf32>
    %25 = vector.shape_cast %24 : vector<1x12x4xf32> to vector<12x4xf32>
    %cst_27 = arith.constant dense<0.000000e+00> : vector<256x4xf32>
    %26 = tpu.matmul %23, %25, %cst_27 {dimension_numbers = #tpu.dot_dimension_numbers<[1], [0], [0], [1], [0, 0, 1, 1], [], []>} : vector<256x12xf32>, vector<12x4xf32>, vector<256x4xf32> -> vector<256x4xf32>
    %27 = arith.addf %21, %26 : vector<256x4xf32>
    %28 = vector.extract_strided_slice %20 {offsets = [1, 0, 0], sizes = [16, 16, 12], strides = [1, 1, 1]} : vector<18x16x12xf32> to vector<16x16x12xf32>
    %29 = vector.shape_cast %28 : vector<16x16x12xf32> to vector<256x12xf32>
    %c1_28 = arith.constant 1 : index
    %c0_29 = arith.constant 0 : index
    %c0_30 = arith.constant 0 : index
    %30 = vector.load %arg2[%c1_28, %c0_29, %c0_30] : memref<3x12x4xf32, #tpu.memory_space<vmem>>, vector<1x12x4xf32>
    %31 = vector.shape_cast %30 : vector<1x12x4xf32> to vector<12x4xf32>
    %cst_31 = arith.constant dense<0.000000e+00> : vector<256x4xf32>
    %32 = tpu.matmul %29, %31, %cst_31 {dimension_numbers = #tpu.dot_dimension_numbers<[1], [0], [0], [1], [0, 0, 1, 1], [], []>} : vector<256x12xf32>, vector<12x4xf32>, vector<256x4xf32> -> vector<256x4xf32>
    %33 = arith.addf %27, %32 : vector<256x4xf32>
    %34 = vector.extract_strided_slice %20 {offsets = [2, 0, 0], sizes = [16, 16, 12], strides = [1, 1, 1]} : vector<18x16x12xf32> to vector<16x16x12xf32>
    %35 = vector.shape_cast %34 : vector<16x16x12xf32> to vector<256x12xf32>
    %c2_32 = arith.constant 2 : index
    %c0_33 = arith.constant 0 : index
    %c0_34 = arith.constant 0 : index
    %36 = vector.load %arg2[%c2_32, %c0_33, %c0_34] : memref<3x12x4xf32, #tpu.memory_space<vmem>>, vector<1x12x4xf32>
    %37 = vector.shape_cast %36 : vector<1x12x4xf32> to vector<12x4xf32>
    %cst_35 = arith.constant dense<0.000000e+00> : vector<256x4xf32>
    %38 = tpu.matmul %35, %37, %cst_35 {dimension_numbers = #tpu.dot_dimension_numbers<[1], [0], [0], [1], [0, 0, 1, 1], [], []>} : vector<256x12xf32>, vector<12x4xf32>, vector<256x4xf32> -> vector<256x4xf32>
    %39 = arith.addf %33, %38 : vector<256x4xf32>
    %cst_36 = arith.constant dense<0.000000e+00> : vector<4xf32>
    %40 = vector.multi_reduction <add>, %39, %cst_36 [0] : vector<256x4xf32> to vector<4xf32>
    %41 = vector.shape_cast %40 : vector<4xf32> to vector<1x4xf32>
    %42 = arith.mulf %39, %39 : vector<256x4xf32>
    %cst_37 = arith.constant dense<0.000000e+00> : vector<4xf32>
    %43 = vector.multi_reduction <add>, %42, %cst_37 [0] : vector<256x4xf32> to vector<4xf32>
    %44 = vector.shape_cast %43 : vector<4xf32> to vector<1x4xf32>
    %cst_38 = arith.constant 3.906250e-03 : f32
    %45 = vector.broadcast %cst_38 : f32 to vector<1x4xf32>
    %46 = arith.mulf %41, %45 : vector<1x4xf32>
    %cst_39 = arith.constant 3.906250e-03 : f32
    %47 = vector.broadcast %cst_39 : f32 to vector<1x4xf32>
    %48 = arith.mulf %44, %47 : vector<1x4xf32>
    %49 = arith.mulf %46, %46 : vector<1x4xf32>
    %50 = arith.subf %48, %49 : vector<1x4xf32>
    %cst_40 = arith.constant 0.000000e+00 : f32
    %51 = vector.broadcast %cst_40 : f32 to vector<1x4xf32>
    %52 = arith.maximumf %50, %51 : vector<1x4xf32>
    %c0_41 = arith.constant 0 : index
    %c0_42 = arith.constant 0 : index
    %53 = vector.load %arg3[%c0_41, %c0_42] : memref<1x4xf32, #tpu.memory_space<vmem>>, vector<1x4xf32>
    %cst_43 = arith.constant 9.99999974E-6 : f32
    %54 = vector.broadcast %cst_43 : f32 to vector<1x4xf32>
    %55 = arith.addf %52, %54 : vector<1x4xf32>
    %56 = math.rsqrt %55 : vector<1x4xf32>
    %57 = arith.mulf %53, %56 : vector<1x4xf32>
    %c0_44 = arith.constant 0 : index
    %c0_45 = arith.constant 0 : index
    %58 = vector.load %arg4[%c0_44, %c0_45] : memref<1x4xf32, #tpu.memory_space<vmem>>, vector<1x4xf32>
    %59 = arith.mulf %46, %57 : vector<1x4xf32>
    %60 = arith.subf %58, %59 : vector<1x4xf32>
    %61 = vector.broadcast %57 : vector<1x4xf32> to vector<256x4xf32>
    %62 = arith.mulf %39, %61 : vector<256x4xf32>
    %63 = vector.broadcast %60 : vector<1x4xf32> to vector<256x4xf32>
    %64 = arith.addf %62, %63 : vector<256x4xf32>
    %cst_46 = arith.constant 0.000000e+00 : f32
    %65 = vector.broadcast %cst_46 : f32 to vector<256x4xf32>
    %66 = arith.maximumf %64, %65 : vector<256x4xf32>
    %67 = vector.shape_cast %66 : vector<256x4xf32> to vector<16x16x4xf32>
    %c1_47 = arith.constant 1 : index
    %c1_48 = arith.constant 1 : index
    %c0_49 = arith.constant 0 : index
    %68 = vector.load %arg9[%c1_47, %c1_48, %c0_49] : memref<18x18x4xf32, #tpu.memory_space<vmem>>, vector<16x16x4xf32>
    tpu.vector_store %arg9[%c1_47, %c1_48, %c0_49], %67 {strides = array<i32>} : memref<18x18x4xf32, #tpu.memory_space<vmem>>, vector<16x16x4xf32>,
    %69 = vector.extract_strided_slice %67 {offsets = [0, 1, 0], sizes = [16, 1, 4], strides = [1, 1, 1]} : vector<16x16x4xf32> to vector<16x1x4xf32>
    %c1_50 = arith.constant 1 : index
    %c0_51 = arith.constant 0 : index
    %c0_52 = arith.constant 0 : index
    %70 = vector.load %arg9[%c1_50, %c0_51, %c0_52] : memref<18x18x4xf32, #tpu.memory_space<vmem>>, vector<16x1x4xf32>
    tpu.vector_store %arg9[%c1_50, %c0_51, %c0_52], %69 {strides = array<i32>} : memref<18x18x4xf32, #tpu.memory_space<vmem>>, vector<16x1x4xf32>,
    %71 = vector.extract_strided_slice %67 {offsets = [0, 14, 0], sizes = [16, 1, 4], strides = [1, 1, 1]} : vector<16x16x4xf32> to vector<16x1x4xf32>
    %c1_53 = arith.constant 1 : index
    %c17_54 = arith.constant 17 : index
    %c0_55 = arith.constant 0 : index
    %72 = vector.load %arg9[%c1_53, %c17_54, %c0_55] : memref<18x18x4xf32, #tpu.memory_space<vmem>>, vector<16x1x4xf32>
    tpu.vector_store %arg9[%c1_53, %c17_54, %c0_55], %71 {strides = array<i32>} : memref<18x18x4xf32, #tpu.memory_space<vmem>>, vector<16x1x4xf32>,
    %73 = vector.extract_strided_slice %67 {offsets = [1, 1, 0], sizes = [1, 1, 4], strides = [1, 1, 1]} : vector<16x16x4xf32> to vector<1x1x4xf32>
    %74 = vector.extract_strided_slice %67 {offsets = [1, 0, 0], sizes = [1, 16, 4], strides = [1, 1, 1]} : vector<16x16x4xf32> to vector<1x16x4xf32>
    %75 = vector.extract_strided_slice %67 {offsets = [1, 14, 0], sizes = [1, 1, 4], strides = [1, 1, 1]} : vector<16x16x4xf32> to vector<1x1x4xf32>
    %76 = tpu.concatenate %73, %74, %75 in 1 : vector<1x1x4xf32>, vector<1x16x4xf32>, vector<1x1x4xf32> -> vector<1x18x4xf32>
    %77 = vector.extract_strided_slice %67 {offsets = [14, 1, 0], sizes = [1, 1, 4], strides = [1, 1, 1]} : vector<16x16x4xf32> to vector<1x1x4xf32>
    %78 = vector.extract_strided_slice %67 {offsets = [14, 0, 0], sizes = [1, 16, 4], strides = [1, 1, 1]} : vector<16x16x4xf32> to vector<1x16x4xf32>
    %79 = vector.extract_strided_slice %67 {offsets = [14, 14, 0], sizes = [1, 1, 4], strides = [1, 1, 1]} : vector<16x16x4xf32> to vector<1x1x4xf32>
    %80 = tpu.concatenate %77, %78, %79 in 1 : vector<1x1x4xf32>, vector<1x16x4xf32>, vector<1x1x4xf32> -> vector<1x18x4xf32>
    %c0_56 = arith.constant 0 : index
    %c0_57 = arith.constant 0 : index
    %c0_58 = arith.constant 0 : index
    %81 = vector.load %arg9[%c0_56, %c0_57, %c0_58] : memref<18x18x4xf32, #tpu.memory_space<vmem>>, vector<1x18x4xf32>
    tpu.vector_store %arg9[%c0_56, %c0_57, %c0_58], %76 {strides = array<i32>} : memref<18x18x4xf32, #tpu.memory_space<vmem>>, vector<1x18x4xf32>,
    %c17_59 = arith.constant 17 : index
    %c0_60 = arith.constant 0 : index
    %c0_61 = arith.constant 0 : index
    %82 = vector.load %arg9[%c17_59, %c0_60, %c0_61] : memref<18x18x4xf32, #tpu.memory_space<vmem>>, vector<1x18x4xf32>
    tpu.vector_store %arg9[%c17_59, %c0_60, %c0_61], %80 {strides = array<i32>} : memref<18x18x4xf32, #tpu.memory_space<vmem>>, vector<1x18x4xf32>,
    %c0_62 = arith.constant 0 : index
    %c0_63 = arith.constant 0 : index
    %c0_64 = arith.constant 0 : index
    %83 = vector.load %arg9[%c0_62, %c0_63, %c0_64] : memref<18x18x4xf32, #tpu.memory_space<vmem>>, vector<18x16x4xf32>
    %c0_65 = arith.constant 0 : index
    %c1_66 = arith.constant 1 : index
    %c0_67 = arith.constant 0 : index
    %84 = vector.load %arg9[%c0_65, %c1_66, %c0_67] : memref<18x18x4xf32, #tpu.memory_space<vmem>>, vector<18x16x4xf32>
    %c0_68 = arith.constant 0 : index
    %c2_69 = arith.constant 2 : index
    %c0_70 = arith.constant 0 : index
    %85 = vector.load %arg9[%c0_68, %c2_69, %c0_70] : memref<18x18x4xf32, #tpu.memory_space<vmem>>, vector<18x16x4xf32>
    %86 = tpu.concatenate %83, %84, %85 in 2 : vector<18x16x4xf32>, vector<18x16x4xf32>, vector<18x16x4xf32> -> vector<18x16x12xf32>
    %cst_71 = arith.constant 0.000000e+00 : f32
    %87 = vector.broadcast %cst_71 : f32 to vector<256x4xf32>
    %88 = vector.extract_strided_slice %86 {offsets = [0, 0, 0], sizes = [16, 16, 12], strides = [1, 1, 1]} : vector<18x16x12xf32> to vector<16x16x12xf32>
    %89 = vector.shape_cast %88 : vector<16x16x12xf32> to vector<256x12xf32>
    %c0_72 = arith.constant 0 : index
    %c0_73 = arith.constant 0 : index
    %c0_74 = arith.constant 0 : index
    %90 = vector.load %arg5[%c0_72, %c0_73, %c0_74] : memref<3x12x4xf32, #tpu.memory_space<vmem>>, vector<1x12x4xf32>
    %91 = vector.shape_cast %90 : vector<1x12x4xf32> to vector<12x4xf32>
    %cst_75 = arith.constant dense<0.000000e+00> : vector<256x4xf32>
    %92 = tpu.matmul %89, %91, %cst_75 {dimension_numbers = #tpu.dot_dimension_numbers<[1], [0], [0], [1], [0, 0, 1, 1], [], []>} : vector<256x12xf32>, vector<12x4xf32>, vector<256x4xf32> -> vector<256x4xf32>
    %93 = arith.addf %87, %92 : vector<256x4xf32>
    %94 = vector.extract_strided_slice %86 {offsets = [1, 0, 0], sizes = [16, 16, 12], strides = [1, 1, 1]} : vector<18x16x12xf32> to vector<16x16x12xf32>
    %95 = vector.shape_cast %94 : vector<16x16x12xf32> to vector<256x12xf32>
    %c1_76 = arith.constant 1 : index
    %c0_77 = arith.constant 0 : index
    %c0_78 = arith.constant 0 : index
    %96 = vector.load %arg5[%c1_76, %c0_77, %c0_78] : memref<3x12x4xf32, #tpu.memory_space<vmem>>, vector<1x12x4xf32>
    %97 = vector.shape_cast %96 : vector<1x12x4xf32> to vector<12x4xf32>
    %cst_79 = arith.constant dense<0.000000e+00> : vector<256x4xf32>
    %98 = tpu.matmul %95, %97, %cst_79 {dimension_numbers = #tpu.dot_dimension_numbers<[1], [0], [0], [1], [0, 0, 1, 1], [], []>} : vector<256x12xf32>, vector<12x4xf32>, vector<256x4xf32> -> vector<256x4xf32>
    %99 = arith.addf %93, %98 : vector<256x4xf32>
    %100 = vector.extract_strided_slice %86 {offsets = [2, 0, 0], sizes = [16, 16, 12], strides = [1, 1, 1]} : vector<18x16x12xf32> to vector<16x16x12xf32>
    %101 = vector.shape_cast %100 : vector<16x16x12xf32> to vector<256x12xf32>
    %c2_80 = arith.constant 2 : index
    %c0_81 = arith.constant 0 : index
    %c0_82 = arith.constant 0 : index
    %102 = vector.load %arg5[%c2_80, %c0_81, %c0_82] : memref<3x12x4xf32, #tpu.memory_space<vmem>>, vector<1x12x4xf32>
    %103 = vector.shape_cast %102 : vector<1x12x4xf32> to vector<12x4xf32>
    %cst_83 = arith.constant dense<0.000000e+00> : vector<256x4xf32>
    %104 = tpu.matmul %101, %103, %cst_83 {dimension_numbers = #tpu.dot_dimension_numbers<[1], [0], [0], [1], [0, 0, 1, 1], [], []>} : vector<256x12xf32>, vector<12x4xf32>, vector<256x4xf32> -> vector<256x4xf32>
    %105 = arith.addf %99, %104 : vector<256x4xf32>
    %cst_84 = arith.constant dense<0.000000e+00> : vector<4xf32>
    %106 = vector.multi_reduction <add>, %105, %cst_84 [0] : vector<256x4xf32> to vector<4xf32>
    %107 = vector.shape_cast %106 : vector<4xf32> to vector<1x4xf32>
    %108 = arith.mulf %105, %105 : vector<256x4xf32>
    %cst_85 = arith.constant dense<0.000000e+00> : vector<4xf32>
    %109 = vector.multi_reduction <add>, %108, %cst_85 [0] : vector<256x4xf32> to vector<4xf32>
    %110 = vector.shape_cast %109 : vector<4xf32> to vector<1x4xf32>
    %cst_86 = arith.constant 3.906250e-03 : f32
    %111 = vector.broadcast %cst_86 : f32 to vector<1x4xf32>
    %112 = arith.mulf %107, %111 : vector<1x4xf32>
    %cst_87 = arith.constant 3.906250e-03 : f32
    %113 = vector.broadcast %cst_87 : f32 to vector<1x4xf32>
    %114 = arith.mulf %110, %113 : vector<1x4xf32>
    %115 = arith.mulf %112, %112 : vector<1x4xf32>
    %116 = arith.subf %114, %115 : vector<1x4xf32>
    %cst_88 = arith.constant 0.000000e+00 : f32
    %117 = vector.broadcast %cst_88 : f32 to vector<1x4xf32>
    %118 = arith.maximumf %116, %117 : vector<1x4xf32>
    %c0_89 = arith.constant 0 : index
    %c0_90 = arith.constant 0 : index
    %119 = vector.load %arg6[%c0_89, %c0_90] : memref<1x4xf32, #tpu.memory_space<vmem>>, vector<1x4xf32>
    %cst_91 = arith.constant 9.99999974E-6 : f32
    %120 = vector.broadcast %cst_91 : f32 to vector<1x4xf32>
    %121 = arith.addf %118, %120 : vector<1x4xf32>
    %122 = math.rsqrt %121 : vector<1x4xf32>
    %123 = arith.mulf %119, %122 : vector<1x4xf32>
    %c0_92 = arith.constant 0 : index
    %c0_93 = arith.constant 0 : index
    %124 = vector.load %arg7[%c0_92, %c0_93] : memref<1x4xf32, #tpu.memory_space<vmem>>, vector<1x4xf32>
    %125 = arith.mulf %112, %123 : vector<1x4xf32>
    %126 = arith.subf %124, %125 : vector<1x4xf32>
    %127 = vector.broadcast %123 : vector<1x4xf32> to vector<256x4xf32>
    %128 = arith.mulf %105, %127 : vector<256x4xf32>
    %129 = vector.broadcast %126 : vector<1x4xf32> to vector<256x4xf32>
    %130 = arith.addf %128, %129 : vector<256x4xf32>
    %131 = vector.shape_cast %130 : vector<256x4xf32> to vector<16x16x4xf32>
    %132 = arith.addf %131, %1 : vector<16x16x4xf32>
    %c0_94 = arith.constant 0 : index
    %c0_95 = arith.constant 0 : index
    %c0_96 = arith.constant 0 : index
    %c0_97 = arith.constant 0 : index
    %133 = vector.load %arg8[%c0_94, %c0_95, %c0_96, %c0_97] : memref<1x16x16x4xf32, #tpu.memory_space<vmem>>, vector<1x16x16x4xf32>
    %134 = vector.shape_cast %133 : vector<1x16x16x4xf32> to vector<16x16x4xf32>
    %135 = vector.shape_cast %132 : vector<16x16x4xf32> to vector<1x16x16x4xf32>
    tpu.vector_store %arg8[%c0_94, %c0_95, %c0_96, %c0_97], %135 {strides = array<i32>} : memref<1x16x16x4xf32, #tpu.memory_space<vmem>>, vector<1x16x16x4xf32>,
    return
  }
  func.func @transform_0(%arg0: i32) -> (i32, i32, i32, i32) {
    %c0_i32 = arith.constant 0 : i32
    %c0_i32_0 = arith.constant 0 : i32
    %c0_i32_1 = arith.constant 0 : i32
    %c0_i32_2 = arith.constant 0 : i32
    return %arg0, %c0_i32, %c0_i32_0, %c0_i32_1 : i32, i32, i32, i32
  }
  func.func @transform_1(%arg0: i32) -> (i32, i32, i32) {
    %c0_i32 = arith.constant 0 : i32
    %c0_i32_0 = arith.constant 0 : i32
    %c0_i32_1 = arith.constant 0 : i32
    %c0_i32_2 = arith.constant 0 : i32
    return %c0_i32, %c0_i32_0, %c0_i32_1 : i32, i32, i32
  }
  func.func @transform_2(%arg0: i32) -> (i32, i32) {
    %c0_i32 = arith.constant 0 : i32
    %c0_i32_0 = arith.constant 0 : i32
    %c0_i32_1 = arith.constant 0 : i32
    return %c0_i32, %c0_i32_0 : i32, i32
  }
  func.func @transform_3(%arg0: i32) -> (i32, i32) {
    %c0_i32 = arith.constant 0 : i32
    %c0_i32_0 = arith.constant 0 : i32
    %c0_i32_1 = arith.constant 0 : i32
    return %c0_i32, %c0_i32_0 : i32, i32
  }
  func.func @transform_4(%arg0: i32) -> (i32, i32, i32) {
    %c0_i32 = arith.constant 0 : i32
    %c0_i32_0 = arith.constant 0 : i32
    %c0_i32_1 = arith.constant 0 : i32
    %c0_i32_2 = arith.constant 0 : i32
    return %c0_i32, %c0_i32_0, %c0_i32_1 : i32, i32, i32
  }
  func.func @transform_5(%arg0: i32) -> (i32, i32) {
    %c0_i32 = arith.constant 0 : i32
    %c0_i32_0 = arith.constant 0 : i32
    %c0_i32_1 = arith.constant 0 : i32
    return %c0_i32, %c0_i32_0 : i32, i32
  }
  func.func @transform_6(%arg0: i32) -> (i32, i32) {
    %c0_i32 = arith.constant 0 : i32
    %c0_i32_0 = arith.constant 0 : i32
    %c0_i32_1 = arith.constant 0 : i32
    return %c0_i32, %c0_i32_0 : i32, i32
  }
  func.func @transform_7(%arg0: i32) -> (i32, i32, i32, i32) {
    %c0_i32 = arith.constant 0 : i32
    %c0_i32_0 = arith.constant 0 : i32
    %c0_i32_1 = arith.constant 0 : i32
    %c0_i32_2 = arith.constant 0 : i32
    return %arg0, %c0_i32, %c0_i32_0, %c0_i32_1 : i32, i32, i32, i32
  }
}

</mosaic_0001>

<llo_original>
// kernel: tpu_custom_call.1
$region0: #{tpu_custom_call.1}
  #allocation0 [shape = 'u32[]', space=smem, size = 0x4, offset = 0x4, fixed_abs, tag = 'smem constant byte address 0x4 - core index']
  #allocation1 [shape = 'u32[144,128]{1,0:T(1,128)}', space=vmem, size = 0x12000, scoped, tag = 'internal scratch']
  #allocation2 [shape = 'f32[18,18,4]{2,1,0:T(8,128)}', space=vmem, size = 0x36000, scoped, tag = 'scratch operand']
  %s0 = inlined_call_operand.vmem [shape: f32[2,16,16,4], index: 0, kind: input, shape index: {}]
  %s1 = inlined_call_operand.vmem [shape: f32[3,12,4], index: 1, kind: input, shape index: {}]
  %s2 = inlined_call_operand.vmem [shape: f32[1,4], index: 2, kind: input, shape index: {}]
  %s3 = inlined_call_operand.vmem [shape: f32[1,4], index: 3, kind: input, shape index: {}]
  %s4 = inlined_call_operand.vmem [shape: f32[3,12,4], index: 4, kind: input, shape index: {}]
  %s5 = inlined_call_operand.vmem [shape: f32[1,4], index: 5, kind: input, shape index: {}]
  %s6 = inlined_call_operand.vmem [shape: f32[1,4], index: 6, kind: input, shape index: {}]
  %s7 = inlined_call_operand.vmem [shape: f32[2,16,16,4], index: 7, kind: output, shape index: {}]
  %s8 = sld [smem:[#allocation0]]
  $region61: #{tpu_custom_call.1} parent=0
    _
  %s10 = ssub.s32 1, %s8
  %s11 = scalar_select 0, %s10, %s8
  loop: start=0, step=1, limit=4
  $region2: #{tpu_custom_call.1} parent=0 // loop_pre_header
    _
  $region3: #{tpu_custom_call.1} parent=0 // loop_header
    %s13 = sphi 0, %s17
    %p14 = scmp.ge.s32.totalorder %s13, 4
    %s23 = sphi 0, %s25
    %s26 = sphi 0, %s23
    %s27 = sphi 0, %s26
    %s43 = sphi 0, %s27
    %s47 = sphi 0, %s47
    %s49 = sphi 0, %s47
    %s50 = sphi 0, %s49
    %s64 = sphi 0, %s50
    %s68 = sphi 0, %s68
    %s70 = sphi 0, %s68
    %s71 = sphi 0, %s70
    %s85 = sphi 0, %s71
    %s89 = sphi 0, %s89
    %s91 = sphi 0, %s89
    %s92 = sphi 0, %s91
    %s106 = sphi 0, %s92
    %s110 = sphi 0, %s110
    %s112 = sphi 0, %s110
    %s113 = sphi 0, %s112
    %s127 = sphi 0, %s113
    %s131 = sphi 0, %s131
    %s133 = sphi 0, %s131
    %s134 = sphi 0, %s133
    %s148 = sphi 0, %s134
    %s152 = sphi 0, %s152
    %s154 = sphi 0, %s152
    %s155 = sphi 0, %s154
    %s169 = sphi 0, %s155
    %s175 = sphi 0, %s177
    %s178 = sphi 0, %s175
    %s179 = sphi 0, %s178
    %s195 = sphi 0, %s179
  $region4: #{tpu_custom_call.1} parent=0 // loop_header_branch
    %16 = sbr.rel (%p14) target = $region8
  $region5: #{tpu_custom_call.1} parent=0 // loop_body
    %s18 = ssub.s32 %s13, 1
    %s19 = ssub.s32 %s13, 2
    %s20 = sadd.s32 %s13, 1
    %s21 = ssub.s32 %s13, %s20
    %p22 = scmp.eq.s32.totalorder %s21, 0
    %s24 = sadd.s32 %s23, 1
    %s25 = scalar_select %p22, %s23, %s24
    %p28 = pneg %p22
    %p29 = scmp.eq.s32.totalorder %s13, 1
    %p30 = por %p28, %p29
    %p31 = scmp.ne.s32.totalorder %s23, %s26
    %p32 = scmp.eq.s32.totalorder %s13, 0
    %p33 = por %p31, %p32
    %p34 = scmp.ne.s32.totalorder %s23, %s26
    %p35 = scmp.eq.s32.totalorder %s18, 1
    %p36 = por %p34, %p35
    %p37 = scmp.ne.s32.totalorder %s26, %s27
    %p38 = scmp.eq.s32.totalorder %s18, 0
    %p39 = por %p37, %p38
    %p40 = scmp.ne.s32.totalorder %s26, %s27
    %p41 = scmp.eq.s32.totalorder %s19, 1
    %p42 = por %p40, %p41
    %p44 = scmp.ne.s32.totalorder %s27, %s43
    %p45 = scmp.eq.s32.totalorder %s19, 0
    %p46 = por %p44, %p45
    %s48 = sadd.s32 %s47, 1
    %p51 = scmp.eq.s32.totalorder %s13, 1
    %p52 = scmp.ne.s32.totalorder %s47, %s49
    %p53 = scmp.eq.s32.totalorder %s13, 0
    %p54 = por %p52, %p53
    %p55 = scmp.ne.s32.totalorder %s47, %s49
    %p56 = scmp.eq.s32.totalorder %s18, 1
    %p57 = por %p55, %p56
    %p58 = scmp.ne.s32.totalorder %s49, %s50
    %p59 = scmp.eq.s32.totalorder %s18, 0
    %p60 = por %p58, %p59
    %p61 = scmp.ne.s32.totalorder %s49, %s50
    %p62 = scmp.eq.s32.totalorder %s19, 1
    %p63 = por %p61, %p62
    %p65 = scmp.ne.s32.totalorder %s50, %s64
    %p66 = scmp.eq.s32.totalorder %s19, 0
    %p67 = por %p65, %p66
    %s69 = sadd.s32 %s68, 1
    %p72 = scmp.eq.s32.totalorder %s13, 1
    %p73 = scmp.ne.s32.totalorder %s68, %s70
    %p74 = scmp.eq.s32.totalorder %s13, 0
    %p75 = por %p73, %p74
    %p76 = scmp.ne.s32.totalorder %s68, %s70
    %p77 = scmp.eq.s32.totalorder %s18, 1
    %p78 = por %p76, %p77
    %p79 = scmp.ne.s32.totalorder %s70, %s71
    %p80 = scmp.eq.s32.totalorder %s18, 0
    %p81 = por %p79, %p80
    %p82 = scmp.ne.s32.totalorder %s70, %s71
    %p83 = scmp.eq.s32.totalorder %s19, 1
    %p84 = por %p82, %p83
    %p86 = scmp.ne.s32.totalorder %s71, %s85
    %p87 = scmp.eq.s32.totalorder %s19, 0
    %p88 = por %p86, %p87
    %s90 = sadd.s32 %s89, 1
    %p93 = scmp.eq.s32.totalorder %s13, 1
    %p94 = scmp.ne.s32.totalorder %s89, %s91
    %p95 = scmp.eq.s32.totalorder %s13, 0
    %p96 = por %p94, %p95
    %p97 = scmp.ne.s32.totalorder %s89, %s91
    %p98 = scmp.eq.s32.totalorder %s18, 1
    %p99 = por %p97, %p98
    %p100 = scmp.ne.s32.totalorder %s91, %s92
    %p101 = scmp.eq.s32.totalorder %s18, 0
    %p102 = por %p100, %p101
    %p103 = scmp.ne.s32.totalorder %s91, %s92
    %p104 = scmp.eq.s32.totalorder %s19, 1
    %p105 = por %p103, %p104
    %p107 = scmp.ne.s32.totalorder %s92, %s106
    %p108 = scmp.eq.s32.totalorder %s19, 0
    %p109 = por %p107, %p108
    %s111 = sadd.s32 %s110, 1
    %p114 = scmp.eq.s32.totalorder %s13, 1
    %p115 = scmp.ne.s32.totalorder %s110, %s112
    %p116 = scmp.eq.s32.totalorder %s13, 0
    %p117 = por %p115, %p116
    %p118 = scmp.ne.s32.totalorder %s110, %s112
    %p119 = scmp.eq.s32.totalorder %s18, 1
    %p120 = por %p118, %p119
    %p121 = scmp.ne.s32.totalorder %s112, %s113
    %p122 = scmp.eq.s32.totalorder %s18, 0
    %p123 = por %p121, %p122
    %p124 = scmp.ne.s32.totalorder %s112, %s113
    %p125 = scmp.eq.s32.totalorder %s19, 1
    %p126 = por %p124, %p125
    %p128 = scmp.ne.s32.totalorder %s113, %s127
    %p129 = scmp.eq.s32.totalorder %s19, 0
    %p130 = por %p128, %p129
    %s132 = sadd.s32 %s131, 1
    %p135 = scmp.eq.s32.totalorder %s13, 1
    %p136 = scmp.ne.s32.totalorder %s131, %s133
    %p137 = scmp.eq.s32.totalorder %s13, 0
    %p138 = por %p136, %p137
    %p139 = scmp.ne.s32.totalorder %s131, %s133
    %p140 = scmp.eq.s32.totalorder %s18, 1
    %p141 = por %p139, %p140
    %p142 = scmp.ne.s32.totalorder %s133, %s134
    %p143 = scmp.eq.s32.totalorder %s18, 0
    %p144 = por %p142, %p143
    %p145 = scmp.ne.s32.totalorder %s133, %s134
    %p146 = scmp.eq.s32.totalorder %s19, 1
    %p147 = por %p145, %p146
    %p149 = scmp.ne.s32.totalorder %s134, %s148
    %p150 = scmp.eq.s32.totalorder %s19, 0
    %p151 = por %p149, %p150
    %s153 = sadd.s32 %s152, 1
    %p156 = scmp.eq.s32.totalorder %s13, 1
    %p157 = scmp.ne.s32.totalorder %s152, %s154
    %p158 = scmp.eq.s32.totalorder %s13, 0
    %p159 = por %p157, %p158
    %p160 = scmp.ne.s32.totalorder %s152, %s154
    %p161 = scmp.eq.s32.totalorder %s18, 1
    %p162 = por %p160, %p161
    %p163 = scmp.ne.s32.totalorder %s154, %s155
    %p164 = scmp.eq.s32.totalorder %s18, 0
    %p165 = por %p163, %p164
    %p166 = scmp.ne.s32.totalorder %s154, %s155
    %p167 = scmp.eq.s32.totalorder %s19, 1
    %p168 = por %p166, %p167
    %p170 = scmp.ne.s32.totalorder %s155, %s169
    %p171 = scmp.eq.s32.totalorder %s19, 0
    %p172 = por %p170, %p171
    %s173 = ssub.s32 %s13, %s20
    %p174 = scmp.eq.s32.totalorder %s173, 0
    %s176 = sadd.s32 %s175, 1
    %s177 = scalar_select %p174, %s175, %s176
    %p180 = pneg %p174
    %p181 = scmp.eq.s32.totalorder %s13, 1
    %p182 = por %p180, %p181
    %p183 = scmp.ne.s32.totalorder %s175, %s178
    %p184 = scmp.eq.s32.totalorder %s13, 0
    %p185 = por %p183, %p184
    %p186 = scmp.ne.s32.totalorder %s175, %s178
    %p187 = scmp.eq.s32.totalorder %s18, 1
    %p188 = por %p186, %p187
    %p189 = scmp.ne.s32.totalorder %s178, %s179
    %p190 = scmp.eq.s32.totalorder %s18, 0
    %p191 = por %p189, %p190
    %p192 = scmp.ne.s32.totalorder %s178, %s179
    %p193 = scmp.eq.s32.totalorder %s19, 1
    %p194 = por %p192, %p193
    %p196 = scmp.ne.s32.totalorder %s179, %s195
    %p197 = scmp.eq.s32.totalorder %s19, 0
    %p198 = por %p196, %p197
    %p199 = scmp.le.s32.totalorder 1, %s13
    %p200 = scmp.lt.s32.totalorder %s13, 3
    %p201 = pnand %p199, %p200
    %p202 = pneg %p201
    // Predicated region
    $region9: #{tpu_custom_call.1} parent=5 // pred_check
      _
    $region10: #{tpu_custom_call.1} parent=5 // pred_check_branch
      %204 = sbr.rel (%p201) target = $region12
    $region11: #{tpu_custom_call.1} parent=5 // pred_region
      %s205 = ssub.s32 %s13, 1
      // Predicated region
      $region13: #{tpu_custom_call.1} parent=11 // pred_check
        %p206 = pneg %p60
      $region14: #{tpu_custom_call.1} parent=11 // pred_check_branch
        %208 = sbr.rel (%p206) target = $region16
      $region15: #{tpu_custom_call.1} parent=11 // pred_region
        _
      $region16: #{tpu_custom_call.1} parent=11 // pred_fallthru
        _
      // Predicated region
      $region17: #{tpu_custom_call.1} parent=11 // pred_check
        %p209 = pneg %p81
      $region18: #{tpu_custom_call.1} parent=11 // pred_check_branch
        %211 = sbr.rel (%p209) target = $region20
      $region19: #{tpu_custom_call.1} parent=11 // pred_region
        _
      $region20: #{tpu_custom_call.1} parent=11 // pred_fallthru
        _
      // Predicated region
      $region21: #{tpu_custom_call.1} parent=11 // pred_check
        %p212 = pneg %p102
      $region22: #{tpu_custom_call.1} parent=11 // pred_check_branch
        %214 = sbr.rel (%p212) target = $region24
      $region23: #{tpu_custom_call.1} parent=11 // pred_region
        _
      $region24: #{tpu_custom_call.1} parent=11 // pred_fallthru
        _
      // Predicated region
      $region25: #{tpu_custom_call.1} parent=11 // pred_check
        %p215 = pneg %p123
      $region26: #{tpu_custom_call.1} parent=11 // pred_check_branch
        %217 = sbr.rel (%p215) target = $region28
      $region27: #{tpu_custom_call.1} parent=11 // pred_region
        _
      $region28: #{tpu_custom_call.1} parent=11 // pred_fallthru
        _
      // Predicated region
      $region29: #{tpu_custom_call.1} parent=11 // pred_check
        %p218 = pneg %p144
      $region30: #{tpu_custom_call.1} parent=11 // pred_check_branch
        %220 = sbr.rel (%p218) target = $region32
      $region31: #{tpu_custom_call.1} parent=11 // pred_region
        _
      $region32: #{tpu_custom_call.1} parent=11 // pred_fallthru
        _
      // Predicated region
      $region33: #{tpu_custom_call.1} parent=11 // pred_check
        %p221 = pneg %p165
      $region34: #{tpu_custom_call.1} parent=11 // pred_check_branch
        %223 = sbr.rel (%p221) target = $region36
      $region35: #{tpu_custom_call.1} parent=11 // pred_region
        _
      $region36: #{tpu_custom_call.1} parent=11 // pred_fallthru
        _
    $region12: #{tpu_custom_call.1} parent=5 // pred_fallthru
      _
    %p224 = scmp.lt.s32.totalorder %s13, 2
    // Predicated region
    $region37: #{tpu_custom_call.1} parent=5 // pred_check
      %p225 = pneg %p224
    $region38: #{tpu_custom_call.1} parent=5 // pred_check_branch
      %227 = sbr.rel (%p225) target = $region40
    $region39: #{tpu_custom_call.1} parent=5 // pred_region
      // Predicated region
      $region41: #{tpu_custom_call.1} parent=39 // pred_check
        %p228 = pneg %p33
      $region42: #{tpu_custom_call.1} parent=39 // pred_check_branch
        %230 = sbr.rel (%p228) target = $region44
      $region43: #{tpu_custom_call.1} parent=39 // pred_region
        %p231 = scmp.lt.s32.totalorder %s13, 1
        %s232 = scalar_select %p231, %s13, 1
        %s233 = smul.addr %s232, 32
        %s234 = smul.addr %s233, 8
        %s235 = scalar_lea.vmem %s0, %s234
      $region44: #{tpu_custom_call.1} parent=39 // pred_fallthru
        _
    $region40: #{tpu_custom_call.1} parent=5 // pred_fallthru
      _
    %p236 = scmp.le.s32.totalorder 1, %s13
    %p237 = scmp.lt.s32.totalorder %s13, 3
    %p238 = pnand %p236, %p237
    %p239 = pneg %p238
    // Predicated region
    $region45: #{tpu_custom_call.1} parent=5 // pred_check
      _
    $region46: #{tpu_custom_call.1} parent=5 // pred_check_branch
      %241 = sbr.rel (%p238) target = $region48
    $region47: #{tpu_custom_call.1} parent=5 // pred_region
      %s242 = ssub.s32 %s13, 1
      %p243 = scmp.lt.s32.totalorder %s18, 1
      %s244 = scalar_select %p243, %s18, 1
      %s245 = smul.addr %s244, 32
      %s246 = smul.addr %s245, 8
      %s247 = scalar_lea.vmem %s0, %s246
      %p248 = pneg %p39
      %p249 = pneg %p36
      %p250 = pneg %p60
      %p251 = pneg %p57
      %p252 = pneg %p81
      %p253 = pneg %p78
      %p254 = pneg %p102
      %p255 = pneg %p99
      %p256 = pneg %p123
      %p257 = pneg %p120
      %p258 = pneg %p144
      %p259 = pneg %p141
      %p260 = pneg %p165
      %p261 = pneg %p162
      %p262 = pneg %p191
      %p263 = pneg %p188
      %p264 = scmp.lt.s32.totalorder %s18, 1
      %s265 = scalar_select %p264, %s18, 1
      %s266 = smul.addr %s265, 32
      %s267 = smul.addr %s266, 8
      %s268 = scalar_lea.vmem %s7, %s267
      %p269 = scmp.lt.s32.totalorder %s18, 1
      %s270 = scalar_select %p269, %s18, 1
      %s271 = smul.addr %s270, 32
      %s272 = smul.addr %s271, 8
      %s273 = scalar_lea.vmem %s0, %s272
      %p274 = scmp.lt.s32.totalorder %s18, 1
      %s275 = scalar_select %p274, %s18, 1
      %s276 = smul.addr %s275, 32
      %s277 = smul.addr %s276, 8
      %s278 = scalar_lea.vmem %s7, %s277
      %v279 = vld [vmem:[%s273] sm:$0xff]
      %v280 = vld [vmem:[%s273 + $0x8] sm:$0xff]
      %v281 = vld [vmem:[%s273 + $0x10] sm:$0xff]
      %v282 = vld [vmem:[%s273 + $0x18] sm:$0xff]
      %v283 = vld [vmem:[%s273 + $0x20] sm:$0xff]
      %v284 = vld [vmem:[%s273 + $0x28] sm:$0xff]
      %v285 = vld [vmem:[%s273 + $0x30] sm:$0xff]
      %v286 = vld [vmem:[%s273 + $0x38] sm:$0xff]
      %v287 = vld [vmem:[%s273 + $0x40] sm:$0xff]
      %v288 = vld [vmem:[%s273 + $0x48] sm:$0xff]
      %v289 = vld [vmem:[%s273 + $0x50] sm:$0xff]
      %v290 = vld [vmem:[%s273 + $0x58] sm:$0xff]
      %v291 = vld [vmem:[%s273 + $0x60] sm:$0xff]
      %v292 = vld [vmem:[%s273 + $0x68] sm:$0xff]
      %v293 = vld [vmem:[%s273 + $0x70] sm:$0xff]
      %v294 = vld [vmem:[%s273 + $0x78] sm:$0xff]
      %v295 = vld [vmem:[%s273 + $0x80] sm:$0xff]
      %v296 = vld [vmem:[%s273 + $0x88] sm:$0xff]
      %v297 = vld [vmem:[%s273 + $0x90] sm:$0xff]
      %v298 = vld [vmem:[%s273 + $0x98] sm:$0xff]
      %v299 = vld [vmem:[%s273 + $0xa0] sm:$0xff]
      %v300 = vld [vmem:[%s273 + $0xa8] sm:$0xff]
      %v301 = vld [vmem:[%s273 + $0xb0] sm:$0xff]
      %v302 = vld [vmem:[%s273 + $0xb8] sm:$0xff]
      %v303 = vld [vmem:[%s273 + $0xc0] sm:$0xff]
      %v304 = vld [vmem:[%s273 + $0xc8] sm:$0xff]
      %v305 = vld [vmem:[%s273 + $0xd0] sm:$0xff]
      %v306 = vld [vmem:[%s273 + $0xd8] sm:$0xff]
      %v307 = vld [vmem:[%s273 + $0xe0] sm:$0xff]
      %v308 = vld [vmem:[%s273 + $0xe8] sm:$0xff]
      %v309 = vld [vmem:[%s273 + $0xf0] sm:$0xff]
      %v310 = vld [vmem:[%s273 + $0xf8] sm:$0xff]
      %s311 = scalar_lea.vmem [#allocation2], 24
      %vm312 = vcmask 31744
      %313 = vst.msk [vmem:[%s311 + $0x1] sm:$0xff] %vm312, %v279
      %314 = vst.msk [vmem:[%s311 + $0x9] sm:$0xff] %vm312, %v280
      %315 = vst.msk [vmem:[%s311 + $0x19] sm:$0xff] %vm312, %v281
      %316 = vst.msk [vmem:[%s311 + $0x21] sm:$0xff] %vm312, %v282
      %317 = vst.msk [vmem:[%s311 + $0x31] sm:$0xff] %vm312, %v283
      %318 = vst.msk [vmem:[%s311 + $0x39] sm:$0xff] %vm312, %v284
      %319 = vst.msk [vmem:[%s311 + $0x49] sm:$0xff] %vm312, %v285
      %320 = vst.msk [vmem:[%s311 + $0x51] sm:$0xff] %vm312, %v286
      %321 = vst.msk [vmem:[%s311 + $0x61] sm:$0xff] %vm312, %v287
      %322 = vst.msk [vmem:[%s311 + $0x69] sm:$0xff] %vm312, %v288
      %323 = vst.msk [vmem:[%s311 + $0x79] sm:$0xff] %vm312, %v289
      %324 = vst.msk [vmem:[%s311 + $0x81] sm:$0xff] %vm312, %v290
      %325 = vst.msk [vmem:[%s311 + $0x91] sm:$0xff] %vm312, %v291
      %326 = vst.msk [vmem:[%s311 + $0x99] sm:$0xff] %vm312, %v292
      %327 = vst.msk [vmem:[%s311 + $0xa9] sm:$0xff] %vm312, %v293
      %328 = vst.msk [vmem:[%s311 + $0xb1] sm:$0xff] %vm312, %v294
      %329 = vst.msk [vmem:[%s311 + $0xc1] sm:$0xff] %vm312, %v295
      %330 = vst.msk [vmem:[%s311 + $0xc9] sm:$0xff] %vm312, %v296
      %331 = vst.msk [vmem:[%s311 + $0xd9] sm:$0xff] %vm312, %v297
      %332 = vst.msk [vmem:[%s311 + $0xe1] sm:$0xff] %vm312, %v298
      %333 = vst.msk [vmem:[%s311 + $0xf1] sm:$0xff] %vm312, %v299
      %334 = vst.msk [vmem:[%s311 + $0xf9] sm:$0xff] %vm312, %v300
      %335 = vst.msk [vmem:[%s311 + $0x109] sm:$0xff] %vm312, %v301
      %336 = vst.msk [vmem:[%s311 + $0x111] sm:$0xff] %vm312, %v302
      %337 = vst.msk [vmem:[%s311 + $0x121] sm:$0xff] %vm312, %v303
      %338 = vst.msk [vmem:[%s311 + $0x129] sm:$0xff] %vm312, %v304
      %339 = vst.msk [vmem:[%s311 + $0x139] sm:$0xff] %vm312, %v305
      %340 = vst.msk [vmem:[%s311 + $0x141] sm:$0xff] %vm312, %v306
      %341 = vst.msk [vmem:[%s311 + $0x151] sm:$0xff] %vm312, %v307
      %342 = vst.msk [vmem:[%s311 + $0x159] sm:$0xff] %vm312, %v308
      %343 = vst.msk [vmem:[%s311 + $0x169] sm:$0xff] %vm312, %v309
      %344 = vst.msk [vmem:[%s311 + $0x171] sm:$0xff] %vm312, %v310
      %vm345 = vcmask 25601
      %346 = vst.msk [vmem:[%s311 - $0x1] sm:$0x2] %vm345, %v279
      %347 = vst.msk [vmem:[%s311 + $0x17] sm:$0x2] %vm345, %v281
      %348 = vst.msk [vmem:[%s311 + $0x2f] sm:$0x2] %vm345, %v283
      %349 = vst.msk [vmem:[%s311 + $0x47] sm:$0x2] %vm345, %v285
      %350 = vst.msk [vmem:[%s311 + $0x5f] sm:$0x2] %vm345, %v287
      %351 = vst.msk [vmem:[%s311 + $0x77] sm:$0x2] %vm345, %v289
      %352 = vst.msk [vmem:[%s311 + $0x8f] sm:$0x2] %vm345, %v291
      %353 = vst.msk [vmem:[%s311 + $0xa7] sm:$0x2] %vm345, %v293
      %354 = vst.msk [vmem:[%s311 + $0xbf] sm:$0x2] %vm345, %v295
      %355 = vst.msk [vmem:[%s311 + $0xd7] sm:$0x2] %vm345, %v297
      %356 = vst.msk [vmem:[%s311 + $0xef] sm:$0x2] %vm345, %v299
      %357 = vst.msk [vmem:[%s311 + $0x107] sm:$0x2] %vm345, %v301
      %358 = vst.msk [vmem:[%s311 + $0x11f] sm:$0x2] %vm345, %v303
      %359 = vst.msk [vmem:[%s311 + $0x137] sm:$0x2] %vm345, %v305
      %360 = vst.msk [vmem:[%s311 + $0x14f] sm:$0x2] %vm345, %v307
      %361 = vst.msk [vmem:[%s311 + $0x167] sm:$0x2] %vm345, %v309
      %vm362 = vcmask 30726
      %363 = vst.msk [vmem:[%s311 + $0xb] sm:$0x40] %vm362, %v280
      %364 = vst.msk [vmem:[%s311 + $0x23] sm:$0x40] %vm362, %v282
      %365 = vst.msk [vmem:[%s311 + $0x3b] sm:$0x40] %vm362, %v284
      %366 = vst.msk [vmem:[%s311 + $0x53] sm:$0x40] %vm362, %v286
      %367 = vst.msk [vmem:[%s311 + $0x6b] sm:$0x40] %vm362, %v288
      %368 = vst.msk [vmem:[%s311 + $0x83] sm:$0x40] %vm362, %v290
      %369 = vst.msk [vmem:[%s311 + $0x9b] sm:$0x40] %vm362, %v292
      %370 = vst.msk [vmem:[%s311 + $0xb3] sm:$0x40] %vm362, %v294
      %371 = vst.msk [vmem:[%s311 + $0xcb] sm:$0x40] %vm362, %v296
      %372 = vst.msk [vmem:[%s311 + $0xe3] sm:$0x40] %vm362, %v298
      %373 = vst.msk [vmem:[%s311 + $0xfb] sm:$0x40] %vm362, %v300
      %374 = vst.msk [vmem:[%s311 + $0x113] sm:$0x40] %vm362, %v302
      %375 = vst.msk [vmem:[%s311 + $0x12b] sm:$0x40] %vm362, %v304
      %376 = vst.msk [vmem:[%s311 + $0x143] sm:$0x40] %vm362, %v306
      %377 = vst.msk [vmem:[%s311 + $0x15b] sm:$0x40] %vm362, %v308
      %378 = vst.msk [vmem:[%s311 + $0x173] sm:$0x40] %vm362, %v310
      %v380 = vrot.slane %v281, 1
      %vm383 = vcmask 1040384
      %v384 = vrot.slane %v281, 7
      %v385 = vrot.slane %v282, 7
      %v386 = vsel %vm383, %v384, %v385
      %v390 = vrot.slane %v282, 5
      %v392 = vsel %vm383, %v380, %v384
      %v393 = vsel %vm383, %v385, %v390
      %v395 = vrot.slane %v307, 1
      %v398 = vrot.slane %v307, 7
      %v399 = vrot.slane %v308, 7
      %v400 = vsel %vm383, %v398, %v399
      %v404 = vrot.slane %v308, 5
      %v406 = vsel %vm383, %v395, %v398
      %v407 = vsel %vm383, %v399, %v404
      %408 = vst.msk [vmem:[#allocation2] sm:$0xff] %vm312, %v392
      %409 = vst.msk [vmem:[#allocation2 + $0x8] sm:$0xff] %vm312, %v386
      %vm410 = vcmask 25600
      %411 = vst.msk [vmem:[#allocation2 + $0x10] sm:$0x3] %vm410, %v393
      %s412 = scalar_lea.vmem [#allocation2], 408
      %413 = vst.msk [vmem:[%s412] sm:$0xff] %vm312, %v406
      %414 = vst.msk [vmem:[%s412 + $0x8] sm:$0xff] %vm312, %v400
      %415 = vst.msk [vmem:[%s412 + $0x10] sm:$0x3] %vm410, %v407
      %v416 = vld [vmem:[#allocation2] sm:$0xff]
      %v417 = vld [vmem:[#allocation2 + $0x8] sm:$0xff]
      %v418 = vld [vmem:[#allocation2 + $0x18] sm:$0xff]
      %v419 = vld [vmem:[#allocation2 + $0x20] sm:$0xff]
      %v420 = vld [vmem:[#allocation2 + $0x30] sm:$0xff]
      %v421 = vld [vmem:[#allocation2 + $0x38] sm:$0xff]
      %v422 = vld [vmem:[#allocation2 + $0x48] sm:$0xff]
      %v423 = vld [vmem:[#allocation2 + $0x50] sm:$0xff]
      %v424 = vld [vmem:[#allocation2 + $0x60] sm:$0xff]
      %v425 = vld [vmem:[#allocation2 + $0x68] sm:$0xff]
      %v426 = vld [vmem:[#allocation2 + $0x78] sm:$0xff]
      %v427 = vld [vmem:[#allocation2 + $0x80] sm:$0xff]
      %v428 = vld [vmem:[#allocation2 + $0x90] sm:$0xff]
      %v429 = vld [vmem:[#allocation2 + $0x98] sm:$0xff]
      %v430 = vld [vmem:[#allocation2 + $0xa8] sm:$0xff]
      %v431 = vld [vmem:[#allocation2 + $0xb0] sm:$0xff]
      %v432 = vld [vmem:[#allocation2 + $0xc0] sm:$0xff]
      %v433 = vld [vmem:[#allocation2 + $0xc8] sm:$0xff]
      %v434 = vld [vmem:[#allocation2 + $0xd8] sm:$0xff]
      %v435 = vld [vmem:[#allocation2 + $0xe0] sm:$0xff]
      %v436 = vld [vmem:[#allocation2 + $0xf0] sm:$0xff]
      %v437 = vld [vmem:[#allocation2 + $0xf8] sm:$0xff]
      %v438 = vld [vmem:[#allocation2 + $0x108] sm:$0xff]
      %v439 = vld [vmem:[#allocation2 + $0x110] sm:$0xff]
      %v440 = vld [vmem:[#allocation2 + $0x120] sm:$0xff]
      %v441 = vld [vmem:[#allocation2 + $0x128] sm:$0xff]
      %v442 = vld [vmem:[#allocation2 + $0x138] sm:$0xff]
      %v443 = vld [vmem:[#allocation2 + $0x140] sm:$0xff]
      %v444 = vld [vmem:[#allocation2 + $0x150] sm:$0xff]
      %v445 = vld [vmem:[#allocation2 + $0x158] sm:$0xff]
      %v446 = vld [vmem:[#allocation2 + $0x168] sm:$0xff]
      %v447 = vld [vmem:[#allocation2 + $0x170] sm:$0xff]
      %v448 = vld [vmem:[#allocation2 + $0x180] sm:$0xff]
      %v449 = vld [vmem:[#allocation2 + $0x188] sm:$0xff]
      %v450 = vld [vmem:[#allocation2 + $0x198] sm:$0xff]
      %v451 = vld [vmem:[#allocation2 + $0x1a0] sm:$0xff]
      %v452 = vld [vmem:[#allocation2 + $0x1] sm:$0xff]
      %v453 = vld [vmem:[#allocation2 + $0x9] sm:$0xff]
      %v454 = vld [vmem:[#allocation2 + $0x19] sm:$0xff]
      %v455 = vld [vmem:[#allocation2 + $0x21] sm:$0xff]
      %v456 = vld [vmem:[#allocation2 + $0x31] sm:$0xff]
      %v457 = vld [vmem:[#allocation2 + $0x39] sm:$0xff]
      %v458 = vld [vmem:[#allocation2 + $0x49] sm:$0xff]
      %v459 = vld [vmem:[#allocation2 + $0x51] sm:$0xff]
      %v460 = vld [vmem:[#allocation2 + $0x61] sm:$0xff]
      %v461 = vld [vmem:[#allocation2 + $0x69] sm:$0xff]
      %v462 = vld [vmem:[#allocation2 + $0x79] sm:$0xff]
      %v463 = vld [vmem:[#allocation2 + $0x81] sm:$0xff]
      %v464 = vld [vmem:[#allocation2 + $0x91] sm:$0xff]
      %v465 = vld [vmem:[#allocation2 + $0x99] sm:$0xff]
      %v466 = vld [vmem:[#allocation2 + $0xa9] sm:$0xff]
      %v467 = vld [vmem:[#allocation2 + $0xb1] sm:$0xff]
      %v468 = vld [vmem:[#allocation2 + $0xc1] sm:$0xff]
      %v469 = vld [vmem:[#allocation2 + $0xc9] sm:$0xff]
      %v470 = vld [vmem:[#allocation2 + $0xd9] sm:$0xff]
      %v471 = vld [vmem:[#allocation2 + $0xe1] sm:$0xff]
      %v472 = vld [vmem:[#allocation2 + $0xf1] sm:$0xff]
      %v473 = vld [vmem:[#allocation2 + $0xf9] sm:$0xff]
      %v474 = vld [vmem:[#allocation2 + $0x109] sm:$0xff]
      %v475 = vld [vmem:[#allocation2 + $0x111] sm:$0xff]
      %v476 = vld [vmem:[#allocation2 + $0x121] sm:$0xff]
      %v477 = vld [vmem:[#allocation2 + $0x129] sm:$0xff]
      %v478 = vld [vmem:[#allocation2 + $0x139] sm:$0xff]
      %v479 = vld [vmem:[#allocation2 + $0x141] sm:$0xff]
      %v480 = vld [vmem:[#allocation2 + $0x151] sm:$0xff]
      %v481 = vld [vmem:[#allocation2 + $0x159] sm:$0xff]
      %v482 = vld [vmem:[#allocation2 + $0x169] sm:$0xff]
      %v483 = vld [vmem:[#allocation2 + $0x171] sm:$0xff]
      %v484 = vld [vmem:[#allocation2 + $0x181] sm:$0xff]
      %v485 = vld [vmem:[#allocation2 + $0x189] sm:$0xff]
      %v486 = vld [vmem:[#allocation2 + $0x199] sm:$0xff]
      %v487 = vld [vmem:[#allocation2 + $0x1a1] sm:$0xff]
      %v488 = vld [vmem:[#allocation2 + $0x2] sm:$0xff]
      %v489 = vld [vmem:[#allocation2 + $0xa] sm:$0xff]
      %v490 = vld [vmem:[#allocation2 + $0x1a] sm:$0xff]
      %v491 = vld [vmem:[#allocation2 + $0x22] sm:$0xff]
      %v492 = vld [vmem:[#allocation2 + $0x32] sm:$0xff]
      %v493 = vld [vmem:[#allocation2 + $0x3a] sm:$0xff]
      %v494 = vld [vmem:[#allocation2 + $0x4a] sm:$0xff]
      %v495 = vld [vmem:[#allocation2 + $0x52] sm:$0xff]
      %v496 = vld [vmem:[#allocation2 + $0x62] sm:$0xff]
      %v497 = vld [vmem:[#allocation2 + $0x6a] sm:$0xff]
      %v498 = vld [vmem:[#allocation2 + $0x7a] sm:$0xff]
      %v499 = vld [vmem:[#allocation2 + $0x82] sm:$0xff]
      %v500 = vld [vmem:[#allocation2 + $0x92] sm:$0xff]
      %v501 = vld [vmem:[#allocation2 + $0x9a] sm:$0xff]
      %v502 = vld [vmem:[#allocation2 + $0xaa] sm:$0xff]
      %v503 = vld [vmem:[#allocation2 + $0xb2] sm:$0xff]
      %v504 = vld [vmem:[#allocation2 + $0xc2] sm:$0xff]
      %v505 = vld [vmem:[#allocation2 + $0xca] sm:$0xff]
      %v506 = vld [vmem:[#allocation2 + $0xda] sm:$0xff]
      %v507 = vld [vmem:[#allocation2 + $0xe2] sm:$0xff]
      %v508 = vld [vmem:[#allocation2 + $0xf2] sm:$0xff]
      %v509 = vld [vmem:[#allocation2 + $0xfa] sm:$0xff]
      %v510 = vld [vmem:[#allocation2 + $0x10a] sm:$0xff]
      %v511 = vld [vmem:[#allocation2 + $0x112] sm:$0xff]
      %v512 = vld [vmem:[#allocation2 + $0x122] sm:$0xff]
      %v513 = vld [vmem:[#allocation2 + $0x12a] sm:$0xff]
      %v514 = vld [vmem:[#allocation2 + $0x13a] sm:$0xff]
      %v515 = vld [vmem:[#allocation2 + $0x142] sm:$0xff]
      %v516 = vld [vmem:[#allocation2 + $0x152] sm:$0xff]
      %v517 = vld [vmem:[#allocation2 + $0x15a] sm:$0xff]
      %v518 = vld [vmem:[#allocation2 + $0x16a] sm:$0xff]
      %v519 = vld [vmem:[#allocation2 + $0x172] sm:$0xff]
      %v520 = vld [vmem:[#allocation2 + $0x182] sm:$0xff]
      %v521 = vld [vmem:[#allocation2 + $0x18a] sm:$0xff]
      %v522 = vld [vmem:[#allocation2 + $0x19a] sm:$0xff]
      %v523 = vld [vmem:[#allocation2 + $0x1a2] sm:$0xff]
      %560 = vrot.lane.b32.xlu0 %v452, 4
      %v561 = vpop.permute.xlu0 %560
      %562 = vrot.lane.b32.xlu0 %v453, 4
      %v563 = vpop.permute.xlu0 %562
      %564 = vrot.lane.b32.xlu0 %v454, 4
      %v565 = vpop.permute.xlu0 %564
      %566 = vrot.lane.b32.xlu0 %v455, 4
      %v567 = vpop.permute.xlu0 %566
      %568 = vrot.lane.b32.xlu0 %v456, 4
      %v569 = vpop.permute.xlu0 %568
      %570 = vrot.lane.b32.xlu0 %v457, 4
      %v571 = vpop.permute.xlu0 %570
      %572 = vrot.lane.b32.xlu0 %v458, 4
      %v573 = vpop.permute.xlu0 %572
      %574 = vrot.lane.b32.xlu0 %v459, 4
      %v575 = vpop.permute.xlu0 %574
      %576 = vrot.lane.b32.xlu0 %v460, 4
      %v577 = vpop.permute.xlu0 %576
      %578 = vrot.lane.b32.xlu0 %v461, 4
      %v579 = vpop.permute.xlu0 %578
      %580 = vrot.lane.b32.xlu0 %v462, 4
      %v581 = vpop.permute.xlu0 %580
      %582 = vrot.lane.b32.xlu0 %v463, 4
      %v583 = vpop.permute.xlu0 %582
      %584 = vrot.lane.b32.xlu0 %v464, 4
      %v585 = vpop.permute.xlu0 %584
      %586 = vrot.lane.b32.xlu0 %v465, 4
      %v587 = vpop.permute.xlu0 %586
      %588 = vrot.lane.b32.xlu0 %v466, 4
      %v589 = vpop.permute.xlu0 %588
      %590 = vrot.lane.b32.xlu0 %v467, 4
      %v591 = vpop.permute.xlu0 %590
      %592 = vrot.lane.b32.xlu0 %v468, 4
      %v593 = vpop.permute.xlu0 %592
      %594 = vrot.lane.b32.xlu0 %v469, 4
      %v595 = vpop.permute.xlu0 %594
      %596 = vrot.lane.b32.xlu0 %v470, 4
      %v597 = vpop.permute.xlu0 %596
      %598 = vrot.lane.b32.xlu0 %v471, 4
      %v599 = vpop.permute.xlu0 %598
      %600 = vrot.lane.b32.xlu0 %v472, 4
      %v601 = vpop.permute.xlu0 %600
      %602 = vrot.lane.b32.xlu0 %v473, 4
      %v603 = vpop.permute.xlu0 %602
      %604 = vrot.lane.b32.xlu0 %v474, 4
      %v605 = vpop.permute.xlu0 %604
      %606 = vrot.lane.b32.xlu0 %v475, 4
      %v607 = vpop.permute.xlu0 %606
      %608 = vrot.lane.b32.xlu0 %v476, 4
      %v609 = vpop.permute.xlu0 %608
      %610 = vrot.lane.b32.xlu0 %v477, 4
      %v611 = vpop.permute.xlu0 %610
      %612 = vrot.lane.b32.xlu0 %v478, 4
      %v613 = vpop.permute.xlu0 %612
      %614 = vrot.lane.b32.xlu0 %v479, 4
      %v615 = vpop.permute.xlu0 %614
      %616 = vrot.lane.b32.xlu0 %v480, 4
      %v617 = vpop.permute.xlu0 %616
      %618 = vrot.lane.b32.xlu0 %v481, 4
      %v619 = vpop.permute.xlu0 %618
      %620 = vrot.lane.b32.xlu0 %v482, 4
      %v621 = vpop.permute.xlu0 %620
      %622 = vrot.lane.b32.xlu0 %v483, 4
      %v623 = vpop.permute.xlu0 %622
      %624 = vrot.lane.b32.xlu0 %v484, 4
      %v625 = vpop.permute.xlu0 %624
      %626 = vrot.lane.b32.xlu0 %v485, 4
      %v627 = vpop.permute.xlu0 %626
      %628 = vrot.lane.b32.xlu0 %v486, 4
      %v629 = vpop.permute.xlu0 %628
      %630 = vrot.lane.b32.xlu0 %v487, 4
      %v631 = vpop.permute.xlu0 %630
      %704 = vrot.lane.b32.xlu0 %v488, 8
      %v705 = vpop.permute.xlu0 %704
      %706 = vrot.lane.b32.xlu0 %v489, 8
      %v707 = vpop.permute.xlu0 %706
      %708 = vrot.lane.b32.xlu0 %v490, 8
      %v709 = vpop.permute.xlu0 %708
      %710 = vrot.lane.b32.xlu0 %v491, 8
      %v711 = vpop.permute.xlu0 %710
      %712 = vrot.lane.b32.xlu0 %v492, 8
      %v713 = vpop.permute.xlu0 %712
      %714 = vrot.lane.b32.xlu0 %v493, 8
      %v715 = vpop.permute.xlu0 %714
      %716 = vrot.lane.b32.xlu0 %v494, 8
      %v717 = vpop.permute.xlu0 %716
      %718 = vrot.lane.b32.xlu0 %v495, 8
      %v719 = vpop.permute.xlu0 %718
      %720 = vrot.lane.b32.xlu0 %v496, 8
      %v721 = vpop.permute.xlu0 %720
      %722 = vrot.lane.b32.xlu0 %v497, 8
      %v723 = vpop.permute.xlu0 %722
      %724 = vrot.lane.b32.xlu0 %v498, 8
      %v725 = vpop.permute.xlu0 %724
      %726 = vrot.lane.b32.xlu0 %v499, 8
      %v727 = vpop.permute.xlu0 %726
      %728 = vrot.lane.b32.xlu0 %v500, 8
      %v729 = vpop.permute.xlu0 %728
      %730 = vrot.lane.b32.xlu0 %v501, 8
      %v731 = vpop.permute.xlu0 %730
      %732 = vrot.lane.b32.xlu0 %v502, 8
      %v733 = vpop.permute.xlu0 %732
      %734 = vrot.lane.b32.xlu0 %v503, 8
      %v735 = vpop.permute.xlu0 %734
      %736 = vrot.lane.b32.xlu0 %v504, 8
      %v737 = vpop.permute.xlu0 %736
      %738 = vrot.lane.b32.xlu0 %v505, 8
      %v739 = vpop.permute.xlu0 %738
      %740 = vrot.lane.b32.xlu0 %v506, 8
      %v741 = vpop.permute.xlu0 %740
      %742 = vrot.lane.b32.xlu0 %v507, 8
      %v743 = vpop.permute.xlu0 %742
      %744 = vrot.lane.b32.xlu0 %v508, 8
      %v745 = vpop.permute.xlu0 %744
      %746 = vrot.lane.b32.xlu0 %v509, 8
      %v747 = vpop.permute.xlu0 %746
      %748 = vrot.lane.b32.xlu0 %v510, 8
      %v749 = vpop.permute.xlu0 %748
      %750 = vrot.lane.b32.xlu0 %v511, 8
      %v751 = vpop.permute.xlu0 %750
      %752 = vrot.lane.b32.xlu0 %v512, 8
      %v753 = vpop.permute.xlu0 %752
      %754 = vrot.lane.b32.xlu0 %v513, 8
      %v755 = vpop.permute.xlu0 %754
      %756 = vrot.lane.b32.xlu0 %v514, 8
      %v757 = vpop.permute.xlu0 %756
      %758 = vrot.lane.b32.xlu0 %v515, 8
      %v759 = vpop.permute.xlu0 %758
      %760 = vrot.lane.b32.xlu0 %v516, 8
      %v761 = vpop.permute.xlu0 %760
      %762 = vrot.lane.b32.xlu0 %v517, 8
      %v763 = vpop.permute.xlu0 %762
      %764 = vrot.lane.b32.xlu0 %v518, 8
      %v765 = vpop.permute.xlu0 %764
      %766 = vrot.lane.b32.xlu0 %v519, 8
      %v767 = vpop.permute.xlu0 %766
      %768 = vrot.lane.b32.xlu0 %v520, 8
      %v769 = vpop.permute.xlu0 %768
      %770 = vrot.lane.b32.xlu0 %v521, 8
      %v771 = vpop.permute.xlu0 %770
      %772 = vrot.lane.b32.xlu0 %v522, 8
      %v773 = vpop.permute.xlu0 %772
      %774 = vrot.lane.b32.xlu0 %v523, 8
      %v775 = vpop.permute.xlu0 %774
      %v812 = vsel %vm312, %v416, %v561
      %v813 = vsel %vm312, %v417, %v563
      %v814 = vsel %vm312, %v418, %v565
      %v815 = vsel %vm312, %v419, %v567
      %v816 = vsel %vm312, %v420, %v569
      %v817 = vsel %vm312, %v421, %v571
      %v818 = vsel %vm312, %v422, %v573
      %v819 = vsel %vm312, %v423, %v575
      %v820 = vsel %vm312, %v424, %v577
      %v821 = vsel %vm312, %v425, %v579
      %v822 = vsel %vm312, %v426, %v581
      %v823 = vsel %vm312, %v427, %v583
      %v824 = vsel %vm312, %v428, %v585
      %v825 = vsel %vm312, %v429, %v587
      %v826 = vsel %vm312, %v430, %v589
      %v827 = vsel %vm312, %v431, %v591
      %v828 = vsel %vm312, %v432, %v593
      %v829 = vsel %vm312, %v433, %v595
      %v830 = vsel %vm312, %v434, %v597
      %v831 = vsel %vm312, %v435, %v599
      %v832 = vsel %vm312, %v436, %v601
      %v833 = vsel %vm312, %v437, %v603
      %v834 = vsel %vm312, %v438, %v605
      %v835 = vsel %vm312, %v439, %v607
      %v836 = vsel %vm312, %v440, %v609
      %v837 = vsel %vm312, %v441, %v611
      %v838 = vsel %vm312, %v442, %v613
      %v839 = vsel %vm312, %v443, %v615
      %v840 = vsel %vm312, %v444, %v617
      %v841 = vsel %vm312, %v445, %v619
      %v842 = vsel %vm312, %v446, %v621
      %v843 = vsel %vm312, %v447, %v623
      %v844 = vsel %vm312, %v448, %v625
      %v845 = vsel %vm312, %v449, %v627
      %v846 = vsel %vm312, %v450, %v629
      %v847 = vsel %vm312, %v451, %v631
      %vm848 = vcmask 64512
      %v849 = vsel %vm848, %v812, %v705
      %v850 = vsel %vm848, %v813, %v707
      %v851 = vsel %vm848, %v814, %v709
      %v852 = vsel %vm848, %v815, %v711
      %v853 = vsel %vm848, %v816, %v713
      %v854 = vsel %vm848, %v817, %v715
      %v855 = vsel %vm848, %v818, %v717
      %v856 = vsel %vm848, %v819, %v719
      %v857 = vsel %vm848, %v820, %v721
      %v858 = vsel %vm848, %v821, %v723
      %v859 = vsel %vm848, %v822, %v725
      %v860 = vsel %vm848, %v823, %v727
      %v861 = vsel %vm848, %v824, %v729
      %v862 = vsel %vm848, %v825, %v731
      %v863 = vsel %vm848, %v826, %v733
      %v864 = vsel %vm848, %v827, %v735
      %v865 = vsel %vm848, %v828, %v737
      %v866 = vsel %vm848, %v829, %v739
      %v867 = vsel %vm848, %v830, %v741
      %v868 = vsel %vm848, %v831, %v743
      %v869 = vsel %vm848, %v832, %v745
      %v870 = vsel %vm848, %v833, %v747
      %v871 = vsel %vm848, %v834, %v749
      %v872 = vsel %vm848, %v835, %v751
      %v873 = vsel %vm848, %v836, %v753
      %v874 = vsel %vm848, %v837, %v755
      %v875 = vsel %vm848, %v838, %v757
      %v876 = vsel %vm848, %v839, %v759
      %v877 = vsel %vm848, %v840, %v761
      %v878 = vsel %vm848, %v841, %v763
      %v879 = vsel %vm848, %v842, %v765
      %v880 = vsel %vm848, %v843, %v767
      %v881 = vsel %vm848, %v844, %v769
      %v882 = vsel %vm848, %v845, %v771
      %v883 = vsel %vm848, %v846, %v773
      %v884 = vsel %vm848, %v847, %v775
      %v885 = vld [vmem:[%s1] sm:$0xff]
      %v886 = vld [vmem:[%s1 + $0x8] sm:$0xf]
      %s887 = scalar_lea.vmem %s1, 16
      %v888 = vld [vmem:[%s887] sm:$0xff]
      %v889 = vld [vmem:[%s887 + $0x8] sm:$0xf]
      %vm890 = vcmask 97280
      %v892 = vsel %vm890, %v851, 0
      %v895 = vsel %vm890, %v852, 0
      %v898 = vsel %vm890, %v853, 0
      %v901 = vsel %vm890, %v854, 0
      %v904 = vsel %vm890, %v855, 0
      %v907 = vsel %vm890, %v856, 0
      %v910 = vsel %vm890, %v857, 0
      %v913 = vsel %vm890, %v858, 0
      %v916 = vsel %vm890, %v859, 0
      %v919 = vsel %vm890, %v860, 0
      %v922 = vsel %vm890, %v861, 0
      %v925 = vsel %vm890, %v862, 0
      %v928 = vsel %vm890, %v863, 0
      %v931 = vsel %vm890, %v864, 0
      %v934 = vsel %vm890, %v865, 0
      %v937 = vsel %vm890, %v866, 0
      %v940 = vsel %vm890, %v867, 0
      %v943 = vsel %vm890, %v868, 0
      %v946 = vsel %vm890, %v869, 0
      %v949 = vsel %vm890, %v870, 0
      %v952 = vsel %vm890, %v871, 0
      %v955 = vsel %vm890, %v872, 0
      %v958 = vsel %vm890, %v873, 0
      %v961 = vsel %vm890, %v874, 0
      %v964 = vsel %vm890, %v875, 0
      %v967 = vsel %vm890, %v876, 0
      %v970 = vsel %vm890, %v877, 0
      %v973 = vsel %vm890, %v878, 0
      %v976 = vsel %vm890, %v879, 0
      %v979 = vsel %vm890, %v880, 0
      %v982 = vsel %vm890, %v881, 0
      %v985 = vsel %vm890, %v882, 0
      %vm987 = vcmask 1043456
      %v989 = vsel %vm987, %v889, 0
      %991 = vmatprep.subr.mxu0 0.0
      %992 = vmatpush1.msra.mxu0 0.0
      %993 = vmatprep.subr.mxu0 0.0
      %994 = vmatpush1.msra.mxu0 0.0
      %995 = vmatprep.subr.mxu0 0.0
      %996 = vmatpush1.msra.mxu0 0.0
      %997 = vmatprep.subr.mxu0 0.0
      %998 = vmatpush1.msra.mxu0 0.0
      %999 = vmatprep.subr.mxu0 0.0
      %1000 = vmatpush1.msra.mxu0 0.0
      %1001 = vmatprep.subr.mxu0 0.0
      %1002 = vmatpush1.msra.mxu0 0.0
      %1003 = vmatprep.subr.mxu0 0.0
      %1004 = vmatpush1.msra.mxu0 0.0
      %1005 = vmatprep.subr.mxu0 0.0
      %1006 = vmatpush1.msra.mxu0 0.0
      %1007 = vmatprep.subr.mxu0 0.0
      %1008 = vmatpush1.msra.mxu0 0.0
      %1009 = vmatprep.subr.mxu0 0.0
      %1010 = vmatpush1.msra.mxu0 0.0
      %1011 = vmatprep.subr.mxu0 0.0
      %1012 = vmatpush1.msra.mxu0 0.0
      %1013 = vmatprep.subr.mxu0 0.0
      %1014 = vmatpush1.msra.mxu0 0.0
      %1015 = vmatprep.subr.mxu0 0.0
      %1016 = vmatpush1.msra.mxu0 0.0
      %1017 = vmatprep.subr.mxu0 0.0
      %1018 = vmatpush1.msra.mxu0 0.0
      %1019 = vmatprep.subr.mxu0 0.0
      %1020 = vmatpush1.msra.mxu0 %v989
      %1021 = vmatprep.subr.mxu0 0.0
      %1022 = vmatpush1.msra.mxu0 %v888
      %1023 = vmatprep.subr.mxu0 0.0
      %1024 = vmatpush2.msra.mxu0 0.0
      %1025 = vmatprep.subr.mxu0 0.0
      %1026 = vmatpush2.msra.mxu0 0.0
      %1027 = vmatprep.subr.mxu0 0.0
      %1028 = vmatpush2.msra.mxu0 0.0
      %1029 = vmatprep.subr.mxu0 0.0
      %1030 = vmatpush2.msra.mxu0 0.0
      %1031 = vmatprep.subr.mxu0 0.0
      %1032 = vmatpush2.msra.mxu0 0.0
      %1033 = vmatprep.subr.mxu0 0.0
      %1034 = vmatpush2.msra.mxu0 0.0
      %1035 = vmatprep.subr.mxu0 0.0
      %1036 = vmatpush2.msra.mxu0 0.0
      %1037 = vmatprep.subr.mxu0 0.0
      %1038 = vmatpush2.msra.mxu0 0.0
      %1039 = vmatprep.subr.mxu0 0.0
      %1040 = vmatpush2.msra.mxu0 0.0
      %1041 = vmatprep.subr.mxu0 0.0
      %1042 = vmatpush2.msra.mxu0 0.0
      %1043 = vmatprep.subr.mxu0 0.0
      %1044 = vmatpush2.msra.mxu0 0.0
      %1045 = vmatprep.subr.mxu0 0.0
      %1046 = vmatpush2.msra.mxu0 0.0
      %1047 = vmatprep.subr.mxu0 0.0
      %1048 = vmatpush2.msra.mxu0 0.0
      %1049 = vmatprep.subr.mxu0 0.0
      %1050 = vmatpush2.msra.mxu0 0.0
      %1051 = vmatprep.subr.mxu0 0.0
      %1052 = vmatpush2.msra.mxu0 0.0
      %1053 = vmatprep.subr.mxu0 0.0
      %1054 = vmatpush2.msra.mxu0 0.0
      %1055 = vmatprep.mubr.f32.mxu0 0.0
      %1056 = vmatmul.mubr.f32.gmra.mxu0 %v892
      %v1057 = vpop.f32.mrf.mxu0
      %v1058 = vadd.f32 0.0, %v1057
      %v1059 = vpop.f32.mrf.mxu0
      %1060 = vmatprep.mubr.f32.mxu0 0.0
      %1061 = vmatmul.mubr.f32.gmra.mxu0 %v895
      %v1062 = vpop.f32.mrf.mxu0
      %v1063 = vadd.f32 0.0, %v1062
      %v1064 = vpop.f32.mrf.mxu0
      %1065 = vmatprep.mubr.f32.mxu0 0.0
      %1066 = vmatmul.mubr.f32.gmra.mxu0 %v898
      %v1067 = vpop.f32.mrf.mxu0
      %v1068 = vadd.f32 0.0, %v1067
      %v1069 = vpop.f32.mrf.mxu0
      %1070 = vmatprep.mubr.f32.mxu0 0.0
      %1071 = vmatmul.mubr.f32.gmra.mxu0 %v901
      %v1072 = vpop.f32.mrf.mxu0
      %v1073 = vadd.f32 0.0, %v1072
      %v1074 = vpop.f32.mrf.mxu0
      %1075 = vmatprep.mubr.f32.mxu0 0.0
      %1076 = vmatmul.mubr.f32.gmra.mxu0 %v904
      %v1077 = vpop.f32.mrf.mxu0
      %v1078 = vadd.f32 0.0, %v1077
      %v1079 = vpop.f32.mrf.mxu0
      %1080 = vmatprep.mubr.f32.mxu0 0.0
      %1081 = vmatmul.mubr.f32.gmra.mxu0 %v907
      %v1082 = vpop.f32.mrf.mxu0
      %v1083 = vadd.f32 0.0, %v1082
      %v1084 = vpop.f32.mrf.mxu0
      %1085 = vmatprep.mubr.f32.mxu0 0.0
      %1086 = vmatmul.mubr.f32.gmra.mxu0 %v910
      %v1087 = vpop.f32.mrf.mxu0
      %v1088 = vadd.f32 0.0, %v1087
      %v1089 = vpop.f32.mrf.mxu0
      %1090 = vmatprep.mubr.f32.mxu0 0.0
      %1091 = vmatmul.mubr.f32.gmra.mxu0 %v913
      %v1092 = vpop.f32.mrf.mxu0
      %v1093 = vadd.f32 0.0, %v1092
      %v1094 = vpop.f32.mrf.mxu0
      %1095 = vmatprep.mubr.f32.mxu0 0.0
      %1096 = vmatmul.mubr.f32.gmra.mxu0 %v916
      %v1097 = vpop.f32.mrf.mxu0
      %v1098 = vadd.f32 0.0, %v1097
      %v1099 = vpop.f32.mrf.mxu0
      %1100 = vmatprep.mubr.f32.mxu0 0.0
      %1101 = vmatmul.mubr.f32.gmra.mxu0 %v919
      %v1102 = vpop.f32.mrf.mxu0
      %v1103 = vadd.f32 0.0, %v1102
      %v1104 = vpop.f32.mrf.mxu0
      %1105 = vmatprep.mubr.f32.mxu0 0.0
      %1106 = vmatmul.mubr.f32.gmra.mxu0 %v922
      %v1107 = vpop.f32.mrf.mxu0
      %v1108 = vadd.f32 0.0, %v1107
      %v1109 = vpop.f32.mrf.mxu0
      %1110 = vmatprep.mubr.f32.mxu0 0.0
      %1111 = vmatmul.mubr.f32.gmra.mxu0 %v925
      %v1112 = vpop.f32.mrf.mxu0
      %v1113 = vadd.f32 0.0, %v1112
      %v1114 = vpop.f32.mrf.mxu0
      %1115 = vmatprep.mubr.f32.mxu0 0.0
      %1116 = vmatmul.mubr.f32.gmra.mxu0 %v928
      %v1117 = vpop.f32.mrf.mxu0
      %v1118 = vadd.f32 0.0, %v1117
      %v1119 = vpop.f32.mrf.mxu0
      %1120 = vmatprep.mubr.f32.mxu0 0.0
      %1121 = vmatmul.mubr.f32.gmra.mxu0 %v931
      %v1122 = vpop.f32.mrf.mxu0
      %v1123 = vadd.f32 0.0, %v1122
      %v1124 = vpop.f32.mrf.mxu0
      %1125 = vmatprep.mubr.f32.mxu0 0.0
      %1126 = vmatmul.mubr.f32.gmra.mxu0 %v934
      %v1127 = vpop.f32.mrf.mxu0
      %v1128 = vadd.f32 0.0, %v1127
      %v1129 = vpop.f32.mrf.mxu0
      %1130 = vmatprep.mubr.f32.mxu0 0.0
      %1131 = vmatmul.mubr.f32.gmra.mxu0 %v937
      %v1132 = vpop.f32.mrf.mxu0
      %v1133 = vadd.f32 0.0, %v1132
      %v1134 = vpop.f32.mrf.mxu0
      %1135 = vmatprep.mubr.f32.mxu0 0.0
      %1136 = vmatmul.mubr.f32.gmra.mxu0 %v940
      %v1137 = vpop.f32.mrf.mxu0
      %v1138 = vadd.f32 0.0, %v1137
      %v1139 = vpop.f32.mrf.mxu0
      %1140 = vmatprep.mubr.f32.mxu0 0.0
      %1141 = vmatmul.mubr.f32.gmra.mxu0 %v943
      %v1142 = vpop.f32.mrf.mxu0
      %v1143 = vadd.f32 0.0, %v1142
      %v1144 = vpop.f32.mrf.mxu0
      %1145 = vmatprep.mubr.f32.mxu0 0.0
      %1146 = vmatmul.mubr.f32.gmra.mxu0 %v946
      %v1147 = vpop.f32.mrf.mxu0
      %v1148 = vadd.f32 0.0, %v1147
      %v1149 = vpop.f32.mrf.mxu0
      %1150 = vmatprep.mubr.f32.mxu0 0.0
      %1151 = vmatmul.mubr.f32.gmra.mxu0 %v949
      %v1152 = vpop.f32.mrf.mxu0
      %v1153 = vadd.f32 0.0, %v1152
      %v1154 = vpop.f32.mrf.mxu0
      %1155 = vmatprep.mubr.f32.mxu0 0.0
      %1156 = vmatmul.mubr.f32.gmra.mxu0 %v952
      %v1157 = vpop.f32.mrf.mxu0
      %v1158 = vadd.f32 0.0, %v1157
      %v1159 = vpop.f32.mrf.mxu0
      %1160 = vmatprep.mubr.f32.mxu0 0.0
      %1161 = vmatmul.mubr.f32.gmra.mxu0 %v955
      %v1162 = vpop.f32.mrf.mxu0
      %v1163 = vadd.f32 0.0, %v1162
      %v1164 = vpop.f32.mrf.mxu0
      %1165 = vmatprep.mubr.f32.mxu0 0.0
      %1166 = vmatmul.mubr.f32.gmra.mxu0 %v958
      %v1167 = vpop.f32.mrf.mxu0
      %v1168 = vadd.f32 0.0, %v1167
      %v1169 = vpop.f32.mrf.mxu0
      %1170 = vmatprep.mubr.f32.mxu0 0.0
      %1171 = vmatmul.mubr.f32.gmra.mxu0 %v961
      %v1172 = vpop.f32.mrf.mxu0
      %v1173 = vadd.f32 0.0, %v1172
      %v1174 = vpop.f32.mrf.mxu0
      %1175 = vmatprep.mubr.f32.mxu0 0.0
      %1176 = vmatmul.mubr.f32.gmra.mxu0 %v964
      %v1177 = vpop.f32.mrf.mxu0
      %v1178 = vadd.f32 0.0, %v1177
      %v1179 = vpop.f32.mrf.mxu0
      %1180 = vmatprep.mubr.f32.mxu0 0.0
      %1181 = vmatmul.mubr.f32.gmra.mxu0 %v967
      %v1182 = vpop.f32.mrf.mxu0
      %v1183 = vadd.f32 0.0, %v1182
      %v1184 = vpop.f32.mrf.mxu0
      %1185 = vmatprep.mubr.f32.mxu0 0.0
      %1186 = vmatmul.mubr.f32.gmra.mxu0 %v970
      %v1187 = vpop.f32.mrf.mxu0
      %v1188 = vadd.f32 0.0, %v1187
      %v1189 = vpop.f32.mrf.mxu0
      %1190 = vmatprep.mubr.f32.mxu0 0.0
      %1191 = vmatmul.mubr.f32.gmra.mxu0 %v973
      %v1192 = vpop.f32.mrf.mxu0
      %v1193 = vadd.f32 0.0, %v1192
      %v1194 = vpop.f32.mrf.mxu0
      %1195 = vmatprep.mubr.f32.mxu0 0.0
      %1196 = vmatmul.mubr.f32.gmra.mxu0 %v976
      %v1197 = vpop.f32.mrf.mxu0
      %v1198 = vadd.f32 0.0, %v1197
      %v1199 = vpop.f32.mrf.mxu0
      %1200 = vmatprep.mubr.f32.mxu0 0.0
      %1201 = vmatmul.mubr.f32.gmra.mxu0 %v979
      %v1202 = vpop.f32.mrf.mxu0
      %v1203 = vadd.f32 0.0, %v1202
      %v1204 = vpop.f32.mrf.mxu0
      %1205 = vmatprep.mubr.f32.mxu0 0.0
      %1206 = vmatmul.mubr.f32.gmra.mxu0 %v982
      %v1207 = vpop.f32.mrf.mxu0
      %v1208 = vadd.f32 0.0, %v1207
      %v1209 = vpop.f32.mrf.mxu0
      %1210 = vmatprep.mubr.f32.mxu0 0.0
      %1211 = vmatmul.mubr.f32.gmra.mxu0 %v985
      %v1212 = vpop.f32.mrf.mxu0
      %v1213 = vadd.f32 0.0, %v1212
      %v1214 = vpop.f32.mrf.mxu0
      %1215 = vdwg.mxu0
      %v1217 = vsel %vm890, %v849, 0
      %v1220 = vsel %vm890, %v850, 0
      %v1223 = vsel %vm987, %v886, 0
      %1225 = vmatprep.subr.mxu0 0.0
      %1226 = vmatpush1.msra.mxu0 0.0
      %1227 = vmatprep.subr.mxu0 0.0
      %1228 = vmatpush1.msra.mxu0 0.0
      %1229 = vmatprep.subr.mxu0 0.0
      %1230 = vmatpush1.msra.mxu0 0.0
      %1231 = vmatprep.subr.mxu0 0.0
      %1232 = vmatpush1.msra.mxu0 0.0
      %1233 = vmatprep.subr.mxu0 0.0
      %1234 = vmatpush1.msra.mxu0 0.0
      %1235 = vmatprep.subr.mxu0 0.0
      %1236 = vmatpush1.msra.mxu0 0.0
      %1237 = vmatprep.subr.mxu0 0.0
      %1238 = vmatpush1.msra.mxu0 0.0
      %1239 = vmatprep.subr.mxu0 0.0
      %1240 = vmatpush1.msra.mxu0 0.0
      %1241 = vmatprep.subr.mxu0 0.0
      %1242 = vmatpush1.msra.mxu0 0.0
      %1243 = vmatprep.subr.mxu0 0.0
      %1244 = vmatpush1.msra.mxu0 0.0
      %1245 = vmatprep.subr.mxu0 0.0
      %1246 = vmatpush1.msra.mxu0 0.0
      %1247 = vmatprep.subr.mxu0 0.0
      %1248 = vmatpush1.msra.mxu0 0.0
      %1249 = vmatprep.subr.mxu0 0.0
      %1250 = vmatpush1.msra.mxu0 0.0
      %1251 = vmatprep.subr.mxu0 0.0
      %1252 = vmatpush1.msra.mxu0 0.0
      %1253 = vmatprep.subr.mxu0 0.0
      %1254 = vmatpush1.msra.mxu0 %v1223
      %1255 = vmatprep.subr.mxu0 0.0
      %1256 = vmatpush1.msra.mxu0 %v885
      %1257 = vmatprep.subr.mxu0 0.0
      %1258 = vmatpush2.msra.mxu0 0.0
      %1259 = vmatprep.subr.mxu0 0.0
      %1260 = vmatpush2.msra.mxu0 0.0
      %1261 = vmatprep.subr.mxu0 0.0
      %1262 = vmatpush2.msra.mxu0 0.0
      %1263 = vmatprep.subr.mxu0 0.0
      %1264 = vmatpush2.msra.mxu0 0.0
      %1265 = vmatprep.subr.mxu0 0.0
      %1266 = vmatpush2.msra.mxu0 0.0
      %1267 = vmatprep.subr.mxu0 0.0
      %1268 = vmatpush2.msra.mxu0 0.0
      %1269 = vmatprep.subr.mxu0 0.0
      %1270 = vmatpush2.msra.mxu0 0.0
      %1271 = vmatprep.subr.mxu0 0.0
      %1272 = vmatpush2.msra.mxu0 0.0
      %1273 = vmatprep.subr.mxu0 0.0
      %1274 = vmatpush2.msra.mxu0 0.0
      %1275 = vmatprep.subr.mxu0 0.0
      %1276 = vmatpush2.msra.mxu0 0.0
      %1277 = vmatprep.subr.mxu0 0.0
      %1278 = vmatpush2.msra.mxu0 0.0
      %1279 = vmatprep.subr.mxu0 0.0
      %1280 = vmatpush2.msra.mxu0 0.0
      %1281 = vmatprep.subr.mxu0 0.0
      %1282 = vmatpush2.msra.mxu0 0.0
      %1283 = vmatprep.subr.mxu0 0.0
      %1284 = vmatpush2.msra.mxu0 0.0
      %1285 = vmatprep.subr.mxu0 0.0
      %1286 = vmatpush2.msra.mxu0 0.0
      %1287 = vmatprep.subr.mxu0 0.0
      %1288 = vmatpush2.msra.mxu0 0.0
      %1289 = vmatprep.mubr.f32.mxu0 0.0
      %1290 = vmatmul.mubr.f32.gmra.mxu0 %v1217
      %v1291 = vpop.f32.mrf.mxu0
      %v1292 = vadd.f32 %v1058, %v1291
      %v1293 = vpop.f32.mrf.mxu0
      %1294 = vmatprep.mubr.f32.mxu0 0.0
      %1295 = vmatmul.mubr.f32.gmra.mxu0 %v1220
      %v1296 = vpop.f32.mrf.mxu0
      %v1297 = vadd.f32 %v1063, %v1296
      %v1298 = vpop.f32.mrf.mxu0
      %1299 = vmatprep.mubr.f32.mxu0 0.0
      %1300 = vmatmul.mubr.f32.gmra.mxu0 %v892
      %v1301 = vpop.f32.mrf.mxu0
      %v1302 = vadd.f32 %v1068, %v1301
      %v1303 = vpop.f32.mrf.mxu0
      %1304 = vmatprep.mubr.f32.mxu0 0.0
      %1305 = vmatmul.mubr.f32.gmra.mxu0 %v895
      %v1306 = vpop.f32.mrf.mxu0
      %v1307 = vadd.f32 %v1073, %v1306
      %v1308 = vpop.f32.mrf.mxu0
      %1309 = vmatprep.mubr.f32.mxu0 0.0
      %1310 = vmatmul.mubr.f32.gmra.mxu0 %v898
      %v1311 = vpop.f32.mrf.mxu0
      %v1312 = vadd.f32 %v1078, %v1311
      %v1313 = vpop.f32.mrf.mxu0
      %1314 = vmatprep.mubr.f32.mxu0 0.0
      %1315 = vmatmul.mubr.f32.gmra.mxu0 %v901
      %v1316 = vpop.f32.mrf.mxu0
      %v1317 = vadd.f32 %v1083, %v1316
      %v1318 = vpop.f32.mrf.mxu0
      %1319 = vmatprep.mubr.f32.mxu0 0.0
      %1320 = vmatmul.mubr.f32.gmra.mxu0 %v904
      %v1321 = vpop.f32.mrf.mxu0
      %v1322 = vadd.f32 %v1088, %v1321
      %v1323 = vpop.f32.mrf.mxu0
      %1324 = vmatprep.mubr.f32.mxu0 0.0
      %1325 = vmatmul.mubr.f32.gmra.mxu0 %v907
      %v1326 = vpop.f32.mrf.mxu0
      %v1327 = vadd.f32 %v1093, %v1326
      %v1328 = vpop.f32.mrf.mxu0
      %1329 = vmatprep.mubr.f32.mxu0 0.0
      %1330 = vmatmul.mubr.f32.gmra.mxu0 %v910
      %v1331 = vpop.f32.mrf.mxu0
      %v1332 = vadd.f32 %v1098, %v1331
      %v1333 = vpop.f32.mrf.mxu0
      %1334 = vmatprep.mubr.f32.mxu0 0.0
      %1335 = vmatmul.mubr.f32.gmra.mxu0 %v913
      %v1336 = vpop.f32.mrf.mxu0
      %v1337 = vadd.f32 %v1103, %v1336
      %v1338 = vpop.f32.mrf.mxu0
      %1339 = vmatprep.mubr.f32.mxu0 0.0
      %1340 = vmatmul.mubr.f32.gmra.mxu0 %v916
      %v1341 = vpop.f32.mrf.mxu0
      %v1342 = vadd.f32 %v1108, %v1341
      %v1343 = vpop.f32.mrf.mxu0
      %1344 = vmatprep.mubr.f32.mxu0 0.0
      %1345 = vmatmul.mubr.f32.gmra.mxu0 %v919
      %v1346 = vpop.f32.mrf.mxu0
      %v1347 = vadd.f32 %v1113, %v1346
      %v1348 = vpop.f32.mrf.mxu0
      %1349 = vmatprep.mubr.f32.mxu0 0.0
      %1350 = vmatmul.mubr.f32.gmra.mxu0 %v922
      %v1351 = vpop.f32.mrf.mxu0
      %v1352 = vadd.f32 %v1118, %v1351
      %v1353 = vpop.f32.mrf.mxu0
      %1354 = vmatprep.mubr.f32.mxu0 0.0
      %1355 = vmatmul.mubr.f32.gmra.mxu0 %v925
      %v1356 = vpop.f32.mrf.mxu0
      %v1357 = vadd.f32 %v1123, %v1356
      %v1358 = vpop.f32.mrf.mxu0
      %1359 = vmatprep.mubr.f32.mxu0 0.0
      %1360 = vmatmul.mubr.f32.gmra.mxu0 %v928
      %v1361 = vpop.f32.mrf.mxu0
      %v1362 = vadd.f32 %v1128, %v1361
      %v1363 = vpop.f32.mrf.mxu0
      %1364 = vmatprep.mubr.f32.mxu0 0.0
      %1365 = vmatmul.mubr.f32.gmra.mxu0 %v931
      %v1366 = vpop.f32.mrf.mxu0
      %v1367 = vadd.f32 %v1133, %v1366
      %v1368 = vpop.f32.mrf.mxu0
      %1369 = vmatprep.mubr.f32.mxu0 0.0
      %1370 = vmatmul.mubr.f32.gmra.mxu0 %v934
      %v1371 = vpop.f32.mrf.mxu0
      %v1372 = vadd.f32 %v1138, %v1371
      %v1373 = vpop.f32.mrf.mxu0
      %1374 = vmatprep.mubr.f32.mxu0 0.0
      %1375 = vmatmul.mubr.f32.gmra.mxu0 %v937
      %v1376 = vpop.f32.mrf.mxu0
      %v1377 = vadd.f32 %v1143, %v1376
      %v1378 = vpop.f32.mrf.mxu0
      %1379 = vmatprep.mubr.f32.mxu0 0.0
      %1380 = vmatmul.mubr.f32.gmra.mxu0 %v940
      %v1381 = vpop.f32.mrf.mxu0
      %v1382 = vadd.f32 %v1148, %v1381
      %v1383 = vpop.f32.mrf.mxu0
      %1384 = vmatprep.mubr.f32.mxu0 0.0
      %1385 = vmatmul.mubr.f32.gmra.mxu0 %v943
      %v1386 = vpop.f32.mrf.mxu0
      %v1387 = vadd.f32 %v1153, %v1386
      %v1388 = vpop.f32.mrf.mxu0
      %1389 = vmatprep.mubr.f32.mxu0 0.0
      %1390 = vmatmul.mubr.f32.gmra.mxu0 %v946
      %v1391 = vpop.f32.mrf.mxu0
      %v1392 = vadd.f32 %v1158, %v1391
      %v1393 = vpop.f32.mrf.mxu0
      %1394 = vmatprep.mubr.f32.mxu0 0.0
      %1395 = vmatmul.mubr.f32.gmra.mxu0 %v949
      %v1396 = vpop.f32.mrf.mxu0
      %v1397 = vadd.f32 %v1163, %v1396
      %v1398 = vpop.f32.mrf.mxu0
      %1399 = vmatprep.mubr.f32.mxu0 0.0
      %1400 = vmatmul.mubr.f32.gmra.mxu0 %v952
      %v1401 = vpop.f32.mrf.mxu0
      %v1402 = vadd.f32 %v1168, %v1401
      %v1403 = vpop.f32.mrf.mxu0
      %1404 = vmatprep.mubr.f32.mxu0 0.0
      %1405 = vmatmul.mubr.f32.gmra.mxu0 %v955
      %v1406 = vpop.f32.mrf.mxu0
      %v1407 = vadd.f32 %v1173, %v1406
      %v1408 = vpop.f32.mrf.mxu0
      %1409 = vmatprep.mubr.f32.mxu0 0.0
      %1410 = vmatmul.mubr.f32.gmra.mxu0 %v958
      %v1411 = vpop.f32.mrf.mxu0
      %v1412 = vadd.f32 %v1178, %v1411
      %v1413 = vpop.f32.mrf.mxu0
      %1414 = vmatprep.mubr.f32.mxu0 0.0
      %1415 = vmatmul.mubr.f32.gmra.mxu0 %v961
      %v1416 = vpop.f32.mrf.mxu0
      %v1417 = vadd.f32 %v1183, %v1416
      %v1418 = vpop.f32.mrf.mxu0
      %1419 = vmatprep.mubr.f32.mxu0 0.0
      %1420 = vmatmul.mubr.f32.gmra.mxu0 %v964
      %v1421 = vpop.f32.mrf.mxu0
      %v1422 = vadd.f32 %v1188, %v1421
      %v1423 = vpop.f32.mrf.mxu0
      %1424 = vmatprep.mubr.f32.mxu0 0.0
      %1425 = vmatmul.mubr.f32.gmra.mxu0 %v967
      %v1426 = vpop.f32.mrf.mxu0
      %v1427 = vadd.f32 %v1193, %v1426
      %v1428 = vpop.f32.mrf.mxu0
      %1429 = vmatprep.mubr.f32.mxu0 0.0
      %1430 = vmatmul.mubr.f32.gmra.mxu0 %v970
      %v1431 = vpop.f32.mrf.mxu0
      %v1432 = vadd.f32 %v1198, %v1431
      %v1433 = vpop.f32.mrf.mxu0
      %1434 = vmatprep.mubr.f32.mxu0 0.0
      %1435 = vmatmul.mubr.f32.gmra.mxu0 %v973
      %v1436 = vpop.f32.mrf.mxu0
      %v1437 = vadd.f32 %v1203, %v1436
      %v1438 = vpop.f32.mrf.mxu0
      %1439 = vmatprep.mubr.f32.mxu0 0.0
      %1440 = vmatmul.mubr.f32.gmra.mxu0 %v976
      %v1441 = vpop.f32.mrf.mxu0
      %v1442 = vadd.f32 %v1208, %v1441
      %v1443 = vpop.f32.mrf.mxu0
      %1444 = vmatprep.mubr.f32.mxu0 0.0
      %1445 = vmatmul.mubr.f32.gmra.mxu0 %v979
      %v1446 = vpop.f32.mrf.mxu0
      %v1447 = vadd.f32 %v1213, %v1446
      %v1448 = vpop.f32.mrf.mxu0
      %1449 = vdwg.mxu0
      %s1450 = scalar_lea.vmem %s1, 32
      %v1451 = vld [vmem:[%s1450] sm:$0xff]
      %v1452 = vld [vmem:[%s1450 + $0x8] sm:$0xf]
      %v1454 = vsel %vm890, %v883, 0
      %v1457 = vsel %vm890, %v884, 0
      %v1460 = vsel %vm987, %v1452, 0
      %1462 = vmatprep.subr.mxu0 0.0
      %1463 = vmatpush1.msra.mxu0 0.0
      %1464 = vmatprep.subr.mxu0 0.0
      %1465 = vmatpush1.msra.mxu0 0.0
      %1466 = vmatprep.subr.mxu0 0.0
      %1467 = vmatpush1.msra.mxu0 0.0
      %1468 = vmatprep.subr.mxu0 0.0
      %1469 = vmatpush1.msra.mxu0 0.0
      %1470 = vmatprep.subr.mxu0 0.0
      %1471 = vmatpush1.msra.mxu0 0.0
      %1472 = vmatprep.subr.mxu0 0.0
      %1473 = vmatpush1.msra.mxu0 0.0
      %1474 = vmatprep.subr.mxu0 0.0
      %1475 = vmatpush1.msra.mxu0 0.0
      %1476 = vmatprep.subr.mxu0 0.0
      %1477 = vmatpush1.msra.mxu0 0.0
      %1478 = vmatprep.subr.mxu0 0.0
      %1479 = vmatpush1.msra.mxu0 0.0
      %1480 = vmatprep.subr.mxu0 0.0
      %1481 = vmatpush1.msra.mxu0 0.0
      %1482 = vmatprep.subr.mxu0 0.0
      %1483 = vmatpush1.msra.mxu0 0.0
      %1484 = vmatprep.subr.mxu0 0.0
      %1485 = vmatpush1.msra.mxu0 0.0
      %1486 = vmatprep.subr.mxu0 0.0
      %1487 = vmatpush1.msra.mxu0 0.0
      %1488 = vmatprep.subr.mxu0 0.0
      %1489 = vmatpush1.msra.mxu0 0.0
      %1490 = vmatprep.subr.mxu0 0.0
      %1491 = vmatpush1.msra.mxu0 %v1460
      %1492 = vmatprep.subr.mxu0 0.0
      %1493 = vmatpush1.msra.mxu0 %v1451
      %1494 = vmatprep.subr.mxu0 0.0
      %1495 = vmatpush2.msra.mxu0 0.0
      %1496 = vmatprep.subr.mxu0 0.0
      %1497 = vmatpush2.msra.mxu0 0.0
      %1498 = vmatprep.subr.mxu0 0.0
      %1499 = vmatpush2.msra.mxu0 0.0
      %1500 = vmatprep.subr.mxu0 0.0
      %1501 = vmatpush2.msra.mxu0 0.0
      %1502 = vmatprep.subr.mxu0 0.0
      %1503 = vmatpush2.msra.mxu0 0.0
      %1504 = vmatprep.subr.mxu0 0.0
      %1505 = vmatpush2.msra.mxu0 0.0
      %1506 = vmatprep.subr.mxu0 0.0
      %1507 = vmatpush2.msra.mxu0 0.0
      %1508 = vmatprep.subr.mxu0 0.0
      %1509 = vmatpush2.msra.mxu0 0.0
      %1510 = vmatprep.subr.mxu0 0.0
      %1511 = vmatpush2.msra.mxu0 0.0
      %1512 = vmatprep.subr.mxu0 0.0
      %1513 = vmatpush2.msra.mxu0 0.0
      %1514 = vmatprep.subr.mxu0 0.0
      %1515 = vmatpush2.msra.mxu0 0.0
      %1516 = vmatprep.subr.mxu0 0.0
      %1517 = vmatpush2.msra.mxu0 0.0
      %1518 = vmatprep.subr.mxu0 0.0
      %1519 = vmatpush2.msra.mxu0 0.0
      %1520 = vmatprep.subr.mxu0 0.0
      %1521 = vmatpush2.msra.mxu0 0.0
      %1522 = vmatprep.subr.mxu0 0.0
      %1523 = vmatpush2.msra.mxu0 0.0
      %1524 = vmatprep.subr.mxu0 0.0
      %1525 = vmatpush2.msra.mxu0 0.0
      %1526 = vmatprep.mubr.f32.mxu0 0.0
      %1527 = vmatmul.mubr.f32.gmra.mxu0 %v898
      %v1528 = vpop.f32.mrf.mxu0
      %v1529 = vadd.f32 0.0, %v1528
      %v1530 = vpop.f32.mrf.mxu0
      %1531 = vmatprep.mubr.f32.mxu0 0.0
      %1532 = vmatmul.mubr.f32.gmra.mxu0 %v901
      %v1533 = vpop.f32.mrf.mxu0
      %v1534 = vadd.f32 0.0, %v1533
      %v1535 = vpop.f32.mrf.mxu0
      %1536 = vmatprep.mubr.f32.mxu0 0.0
      %1537 = vmatmul.mubr.f32.gmra.mxu0 %v904
      %v1538 = vpop.f32.mrf.mxu0
      %v1539 = vadd.f32 0.0, %v1538
      %v1540 = vpop.f32.mrf.mxu0
      %1541 = vmatprep.mubr.f32.mxu0 0.0
      %1542 = vmatmul.mubr.f32.gmra.mxu0 %v907
      %v1543 = vpop.f32.mrf.mxu0
      %v1544 = vadd.f32 0.0, %v1543
      %v1545 = vpop.f32.mrf.mxu0
      %1546 = vmatprep.mubr.f32.mxu0 0.0
      %1547 = vmatmul.mubr.f32.gmra.mxu0 %v910
      %v1548 = vpop.f32.mrf.mxu0
      %v1549 = vadd.f32 0.0, %v1548
      %v1550 = vpop.f32.mrf.mxu0
      %1551 = vmatprep.mubr.f32.mxu0 0.0
      %1552 = vmatmul.mubr.f32.gmra.mxu0 %v913
      %v1553 = vpop.f32.mrf.mxu0
      %v1554 = vadd.f32 0.0, %v1553
      %v1555 = vpop.f32.mrf.mxu0
      %1556 = vmatprep.mubr.f32.mxu0 0.0
      %1557 = vmatmul.mubr.f32.gmra.mxu0 %v916
      %v1558 = vpop.f32.mrf.mxu0
      %v1559 = vadd.f32 0.0, %v1558
      %v1560 = vpop.f32.mrf.mxu0
      %1561 = vmatprep.mubr.f32.mxu0 0.0
      %1562 = vmatmul.mubr.f32.gmra.mxu0 %v919
      %v1563 = vpop.f32.mrf.mxu0
      %v1564 = vadd.f32 0.0, %v1563
      %v1565 = vpop.f32.mrf.mxu0
      %1566 = vmatprep.mubr.f32.mxu0 0.0
      %1567 = vmatmul.mubr.f32.gmra.mxu0 %v922
      %v1568 = vpop.f32.mrf.mxu0
      %v1569 = vadd.f32 0.0, %v1568
      %v1570 = vpop.f32.mrf.mxu0
      %1571 = vmatprep.mubr.f32.mxu0 0.0
      %1572 = vmatmul.mubr.f32.gmra.mxu0 %v925
      %v1573 = vpop.f32.mrf.mxu0
      %v1574 = vadd.f32 0.0, %v1573
      %v1575 = vpop.f32.mrf.mxu0
      %1576 = vmatprep.mubr.f32.mxu0 0.0
      %1577 = vmatmul.mubr.f32.gmra.mxu0 %v928
      %v1578 = vpop.f32.mrf.mxu0
      %v1579 = vadd.f32 0.0, %v1578
      %v1580 = vpop.f32.mrf.mxu0
      %1581 = vmatprep.mubr.f32.mxu0 0.0
      %1582 = vmatmul.mubr.f32.gmra.mxu0 %v931
      %v1583 = vpop.f32.mrf.mxu0
      %v1584 = vadd.f32 0.0, %v1583
      %v1585 = vpop.f32.mrf.mxu0
      %1586 = vmatprep.mubr.f32.mxu0 0.0
      %1587 = vmatmul.mubr.f32.gmra.mxu0 %v934
      %v1588 = vpop.f32.mrf.mxu0
      %v1589 = vadd.f32 0.0, %v1588
      %v1590 = vpop.f32.mrf.mxu0
      %1591 = vmatprep.mubr.f32.mxu0 0.0
      %1592 = vmatmul.mubr.f32.gmra.mxu0 %v937
      %v1593 = vpop.f32.mrf.mxu0
      %v1594 = vadd.f32 0.0, %v1593
      %v1595 = vpop.f32.mrf.mxu0
      %1596 = vmatprep.mubr.f32.mxu0 0.0
      %1597 = vmatmul.mubr.f32.gmra.mxu0 %v940
      %v1598 = vpop.f32.mrf.mxu0
      %v1599 = vadd.f32 0.0, %v1598
      %v1600 = vpop.f32.mrf.mxu0
      %1601 = vmatprep.mubr.f32.mxu0 0.0
      %1602 = vmatmul.mubr.f32.gmra.mxu0 %v943
      %v1603 = vpop.f32.mrf.mxu0
      %v1604 = vadd.f32 0.0, %v1603
      %v1605 = vpop.f32.mrf.mxu0
      %1606 = vmatprep.mubr.f32.mxu0 0.0
      %1607 = vmatmul.mubr.f32.gmra.mxu0 %v946
      %v1608 = vpop.f32.mrf.mxu0
      %v1609 = vadd.f32 0.0, %v1608
      %v1610 = vpop.f32.mrf.mxu0
      %1611 = vmatprep.mubr.f32.mxu0 0.0
      %1612 = vmatmul.mubr.f32.gmra.mxu0 %v949
      %v1613 = vpop.f32.mrf.mxu0
      %v1614 = vadd.f32 0.0, %v1613
      %v1615 = vpop.f32.mrf.mxu0
      %1616 = vmatprep.mubr.f32.mxu0 0.0
      %1617 = vmatmul.mubr.f32.gmra.mxu0 %v952
      %v1618 = vpop.f32.mrf.mxu0
      %v1619 = vadd.f32 0.0, %v1618
      %v1620 = vpop.f32.mrf.mxu0
      %1621 = vmatprep.mubr.f32.mxu0 0.0
      %1622 = vmatmul.mubr.f32.gmra.mxu0 %v955
      %v1623 = vpop.f32.mrf.mxu0
      %v1624 = vadd.f32 0.0, %v1623
      %v1625 = vpop.f32.mrf.mxu0
      %1626 = vmatprep.mubr.f32.mxu0 0.0
      %1627 = vmatmul.mubr.f32.gmra.mxu0 %v958
      %v1628 = vpop.f32.mrf.mxu0
      %v1629 = vadd.f32 0.0, %v1628
      %v1630 = vpop.f32.mrf.mxu0
      %1631 = vmatprep.mubr.f32.mxu0 0.0
      %1632 = vmatmul.mubr.f32.gmra.mxu0 %v961
      %v1633 = vpop.f32.mrf.mxu0
      %v1634 = vadd.f32 0.0, %v1633
      %v1635 = vpop.f32.mrf.mxu0
      %1636 = vmatprep.mubr.f32.mxu0 0.0
      %1637 = vmatmul.mubr.f32.gmra.mxu0 %v964
      %v1638 = vpop.f32.mrf.mxu0
      %v1639 = vadd.f32 0.0, %v1638
      %v1640 = vpop.f32.mrf.mxu0
      %1641 = vmatprep.mubr.f32.mxu0 0.0
      %1642 = vmatmul.mubr.f32.gmra.mxu0 %v967
      %v1643 = vpop.f32.mrf.mxu0
      %v1644 = vadd.f32 0.0, %v1643
      %v1645 = vpop.f32.mrf.mxu0
      %1646 = vmatprep.mubr.f32.mxu0 0.0
      %1647 = vmatmul.mubr.f32.gmra.mxu0 %v970
      %v1648 = vpop.f32.mrf.mxu0
      %v1649 = vadd.f32 0.0, %v1648
      %v1650 = vpop.f32.mrf.mxu0
      %1651 = vmatprep.mubr.f32.mxu0 0.0
      %1652 = vmatmul.mubr.f32.gmra.mxu0 %v973
      %v1653 = vpop.f32.mrf.mxu0
      %v1654 = vadd.f32 0.0, %v1653
      %v1655 = vpop.f32.mrf.mxu0
      %1656 = vmatprep.mubr.f32.mxu0 0.0
      %1657 = vmatmul.mubr.f32.gmra.mxu0 %v976
      %v1658 = vpop.f32.mrf.mxu0
      %v1659 = vadd.f32 0.0, %v1658
      %v1660 = vpop.f32.mrf.mxu0
      %1661 = vmatprep.mubr.f32.mxu0 0.0
      %1662 = vmatmul.mubr.f32.gmra.mxu0 %v979
      %v1663 = vpop.f32.mrf.mxu0
      %v1664 = vadd.f32 0.0, %v1663
      %v1665 = vpop.f32.mrf.mxu0
      %1666 = vmatprep.mubr.f32.mxu0 0.0
      %1667 = vmatmul.mubr.f32.gmra.mxu0 %v982
      %v1668 = vpop.f32.mrf.mxu0
      %v1669 = vadd.f32 0.0, %v1668
      %v1670 = vpop.f32.mrf.mxu0
      %1671 = vmatprep.mubr.f32.mxu0 0.0
      %1672 = vmatmul.mubr.f32.gmra.mxu0 %v985
      %v1673 = vpop.f32.mrf.mxu0
      %v1674 = vadd.f32 0.0, %v1673
      %v1675 = vpop.f32.mrf.mxu0
      %1676 = vmatprep.mubr.f32.mxu0 0.0
      %1677 = vmatmul.mubr.f32.gmra.mxu0 %v1454
      %v1678 = vpop.f32.mrf.mxu0
      %v1679 = vadd.f32 0.0, %v1678
      %v1680 = vpop.f32.mrf.mxu0
      %1681 = vmatprep.mubr.f32.mxu0 0.0
      %1682 = vmatmul.mubr.f32.gmra.mxu0 %v1457
      %v1683 = vpop.f32.mrf.mxu0
      %v1684 = vadd.f32 0.0, %v1683
      %v1685 = vpop.f32.mrf.mxu0
      %1686 = vdwg.mxu0
      %v1687 = vadd.f32 %v1292, %v1529
      %v1688 = vadd.f32 %v1297, %v1534
      %v1689 = vadd.f32 %v1302, %v1539
      %v1690 = vadd.f32 %v1307, %v1544
      %v1691 = vadd.f32 %v1312, %v1549
      %v1692 = vadd.f32 %v1317, %v1554
      %v1693 = vadd.f32 %v1322, %v1559
      %v1694 = vadd.f32 %v1327, %v1564
      %v1695 = vadd.f32 %v1332, %v1569
      %v1696 = vadd.f32 %v1337, %v1574
      %v1697 = vadd.f32 %v1342, %v1579
      %v1698 = vadd.f32 %v1347, %v1584
      %v1699 = vadd.f32 %v1352, %v1589
      %v1700 = vadd.f32 %v1357, %v1594
      %v1701 = vadd.f32 %v1362, %v1599
      %v1702 = vadd.f32 %v1367, %v1604
      %v1703 = vadd.f32 %v1372, %v1609
      %v1704 = vadd.f32 %v1377, %v1614
      %v1705 = vadd.f32 %v1382, %v1619
      %v1706 = vadd.f32 %v1387, %v1624
      %v1707 = vadd.f32 %v1392, %v1629
      %v1708 = vadd.f32 %v1397, %v1634
      %v1709 = vadd.f32 %v1402, %v1639
      %v1710 = vadd.f32 %v1407, %v1644
      %v1711 = vadd.f32 %v1412, %v1649
      %v1712 = vadd.f32 %v1417, %v1654
      %v1713 = vadd.f32 %v1422, %v1659
      %v1714 = vadd.f32 %v1427, %v1664
      %v1715 = vadd.f32 %v1432, %v1669
      %v1716 = vadd.f32 %v1437, %v1674
      %v1717 = vadd.f32 %v1442, %v1679
      %v1718 = vadd.f32 %v1447, %v1684
      %v1719 = vsel %vm312, %v1687, 0.0
      %v1720 = vsel %vm312, %v1688, 0.0
      %v1721 = vadd.f32 %v1719, %v1720
      %v1722 = vsel %vm312, %v1689, 0.0
      %v1723 = vadd.f32 %v1721, %v1722
      %v1724 = vsel %vm312, %v1690, 0.0
      %v1725 = vadd.f32 %v1723, %v1724
      %v1726 = vsel %vm312, %v1691, 0.0
      %v1727 = vadd.f32 %v1725, %v1726
      %v1728 = vsel %vm312, %v1692, 0.0
      %v1729 = vadd.f32 %v1727, %v1728
      %v1730 = vsel %vm312, %v1693, 0.0
      %v1731 = vadd.f32 %v1729, %v1730
      %v1732 = vsel %vm312, %v1694, 0.0
      %v1733 = vadd.f32 %v1731, %v1732
      %v1734 = vsel %vm312, %v1695, 0.0
      %v1735 = vadd.f32 %v1733, %v1734
      %v1736 = vsel %vm312, %v1696, 0.0
      %v1737 = vadd.f32 %v1735, %v1736
      %v1738 = vsel %vm312, %v1697, 0.0
      %v1739 = vadd.f32 %v1737, %v1738
      %v1740 = vsel %vm312, %v1698, 0.0
      %v1741 = vadd.f32 %v1739, %v1740
      %v1742 = vsel %vm312, %v1699, 0.0
      %v1743 = vadd.f32 %v1741, %v1742
      %v1744 = vsel %vm312, %v1700, 0.0
      %v1745 = vadd.f32 %v1743, %v1744
      %v1746 = vsel %vm312, %v1701, 0.0
      %v1747 = vadd.f32 %v1745, %v1746
      %v1748 = vsel %vm312, %v1702, 0.0
      %v1749 = vadd.f32 %v1747, %v1748
      %v1750 = vsel %vm312, %v1703, 0.0
      %v1751 = vadd.f32 %v1749, %v1750
      %v1752 = vsel %vm312, %v1704, 0.0
      %v1753 = vadd.f32 %v1751, %v1752
      %v1754 = vsel %vm312, %v1705, 0.0
      %v1755 = vadd.f32 %v1753, %v1754
      %v1756 = vsel %vm312, %v1706, 0.0
      %v1757 = vadd.f32 %v1755, %v1756
      %v1758 = vsel %vm312, %v1707, 0.0
      %v1759 = vadd.f32 %v1757, %v1758
      %v1760 = vsel %vm312, %v1708, 0.0
      %v1761 = vadd.f32 %v1759, %v1760
      %v1762 = vsel %vm312, %v1709, 0.0
      %v1763 = vadd.f32 %v1761, %v1762
      %v1764 = vsel %vm312, %v1710, 0.0
      %v1765 = vadd.f32 %v1763, %v1764
      %v1766 = vsel %vm312, %v1711, 0.0
      %v1767 = vadd.f32 %v1765, %v1766
      %v1768 = vsel %vm312, %v1712, 0.0
      %v1769 = vadd.f32 %v1767, %v1768
      %v1770 = vsel %vm312, %v1713, 0.0
      %v1771 = vadd.f32 %v1769, %v1770
      %v1772 = vsel %vm312, %v1714, 0.0
      %v1773 = vadd.f32 %v1771, %v1772
      %v1774 = vsel %vm312, %v1715, 0.0
      %v1775 = vadd.f32 %v1773, %v1774
      %v1776 = vsel %vm312, %v1716, 0.0
      %v1777 = vadd.f32 %v1775, %v1776
      %v1778 = vsel %vm312, %v1717, 0.0
      %v1779 = vadd.f32 %v1777, %v1778
      %v1780 = vsel %vm312, %v1718, 0.0
      %v1781 = vadd.f32 %v1779, %v1780
      %v1782 = vrot.slane %v1781, 4
      %v1783 = vadd.f32 %v1781, %v1782
      %v1784 = vrot.slane %v1783, 2
      %v1785 = vadd.f32 %v1783, %v1784
      %v1786 = vrot.slane %v1785, 1
      %v1787 = vadd.f32 %v1785, %v1786
      %v1788 = vmul.f32 %v1687, %v1687
      %v1789 = vmul.f32 %v1688, %v1688
      %v1790 = vmul.f32 %v1689, %v1689
      %v1791 = vmul.f32 %v1690, %v1690
      %v1792 = vmul.f32 %v1691, %v1691
      %v1793 = vmul.f32 %v1692, %v1692
      %v1794 = vmul.f32 %v1693, %v1693
      %v1795 = vmul.f32 %v1694, %v1694
      %v1796 = vmul.f32 %v1695, %v1695
      %v1797 = vmul.f32 %v1696, %v1696
      %v1798 = vmul.f32 %v1697, %v1697
      %v1799 = vmul.f32 %v1698, %v1698
      %v1800 = vmul.f32 %v1699, %v1699
      %v1801 = vmul.f32 %v1700, %v1700
      %v1802 = vmul.f32 %v1701, %v1701
      %v1803 = vmul.f32 %v1702, %v1702
      %v1804 = vmul.f32 %v1703, %v1703
      %v1805 = vmul.f32 %v1704, %v1704
      %v1806 = vmul.f32 %v1705, %v1705
      %v1807 = vmul.f32 %v1706, %v1706
      %v1808 = vmul.f32 %v1707, %v1707
      %v1809 = vmul.f32 %v1708, %v1708
      %v1810 = vmul.f32 %v1709, %v1709
      %v1811 = vmul.f32 %v1710, %v1710
      %v1812 = vmul.f32 %v1711, %v1711
      %v1813 = vmul.f32 %v1712, %v1712
      %v1814 = vmul.f32 %v1713, %v1713
      %v1815 = vmul.f32 %v1714, %v1714
      %v1816 = vmul.f32 %v1715, %v1715
      %v1817 = vmul.f32 %v1716, %v1716
      %v1818 = vmul.f32 %v1717, %v1717
      %v1819 = vmul.f32 %v1718, %v1718
      %v1820 = vsel %vm312, %v1788, 0.0
      %v1821 = vsel %vm312, %v1789, 0.0
      %v1822 = vadd.f32 %v1820, %v1821
      %v1823 = vsel %vm312, %v1790, 0.0
      %v1824 = vadd.f32 %v1822, %v1823
      %v1825 = vsel %vm312, %v1791, 0.0
      %v1826 = vadd.f32 %v1824, %v1825
      %v1827 = vsel %vm312, %v1792, 0.0
      %v1828 = vadd.f32 %v1826, %v1827
      %v1829 = vsel %vm312, %v1793, 0.0
      %v1830 = vadd.f32 %v1828, %v1829
      %v1831 = vsel %vm312, %v1794, 0.0
      %v1832 = vadd.f32 %v1830, %v1831
      %v1833 = vsel %vm312, %v1795, 0.0
      %v1834 = vadd.f32 %v1832, %v1833
      %v1835 = vsel %vm312, %v1796, 0.0
      %v1836 = vadd.f32 %v1834, %v1835
      %v1837 = vsel %vm312, %v1797, 0.0
      %v1838 = vadd.f32 %v1836, %v1837
      %v1839 = vsel %vm312, %v1798, 0.0
      %v1840 = vadd.f32 %v1838, %v1839
      %v1841 = vsel %vm312, %v1799, 0.0
      %v1842 = vadd.f32 %v1840, %v1841
      %v1843 = vsel %vm312, %v1800, 0.0
      %v1844 = vadd.f32 %v1842, %v1843
      %v1845 = vsel %vm312, %v1801, 0.0
      %v1846 = vadd.f32 %v1844, %v1845
      %v1847 = vsel %vm312, %v1802, 0.0
      %v1848 = vadd.f32 %v1846, %v1847
      %v1849 = vsel %vm312, %v1803, 0.0
      %v1850 = vadd.f32 %v1848, %v1849
      %v1851 = vsel %vm312, %v1804, 0.0
      %v1852 = vadd.f32 %v1850, %v1851
      %v1853 = vsel %vm312, %v1805, 0.0
      %v1854 = vadd.f32 %v1852, %v1853
      %v1855 = vsel %vm312, %v1806, 0.0
      %v1856 = vadd.f32 %v1854, %v1855
      %v1857 = vsel %vm312, %v1807, 0.0
      %v1858 = vadd.f32 %v1856, %v1857
      %v1859 = vsel %vm312, %v1808, 0.0
      %v1860 = vadd.f32 %v1858, %v1859
      %v1861 = vsel %vm312, %v1809, 0.0
      %v1862 = vadd.f32 %v1860, %v1861
      %v1863 = vsel %vm312, %v1810, 0.0
      %v1864 = vadd.f32 %v1862, %v1863
      %v1865 = vsel %vm312, %v1811, 0.0
      %v1866 = vadd.f32 %v1864, %v1865
      %v1867 = vsel %vm312, %v1812, 0.0
      %v1868 = vadd.f32 %v1866, %v1867
      %v1869 = vsel %vm312, %v1813, 0.0
      %v1870 = vadd.f32 %v1868, %v1869
      %v1871 = vsel %vm312, %v1814, 0.0
      %v1872 = vadd.f32 %v1870, %v1871
      %v1873 = vsel %vm312, %v1815, 0.0
      %v1874 = vadd.f32 %v1872, %v1873
      %v1875 = vsel %vm312, %v1816, 0.0
      %v1876 = vadd.f32 %v1874, %v1875
      %v1877 = vsel %vm312, %v1817, 0.0
      %v1878 = vadd.f32 %v1876, %v1877
      %v1879 = vsel %vm312, %v1818, 0.0
      %v1880 = vadd.f32 %v1878, %v1879
      %v1881 = vsel %vm312, %v1819, 0.0
      %v1882 = vadd.f32 %v1880, %v1881
      %v1883 = vrot.slane %v1882, 4
      %v1884 = vadd.f32 %v1882, %v1883
      %v1885 = vrot.slane %v1884, 2
      %v1886 = vadd.f32 %v1884, %v1885
      %v1887 = vrot.slane %v1886, 1
      %v1888 = vadd.f32 %v1886, %v1887
      %v1889 = vmul.f32 %v1787, 0.00390625
      %v1890 = vmul.f32 %v1888, 0.00390625
      %v1891 = vmul.f32 %v1889, %v1889
      %v1892 = vsub.f32 %v1890, %v1891
      %v1893 = vmax.f32 %v1892, 0.0
      %v1894 = vld [vmem:[%s2] sm:$0x1]
      %v1895 = vadd.f32 %v1893, 1e-05
      %v1896 = vrsqrt.pop %v1895
      %v1897 = vmul.f32 %v1894, %v1896
      %v1898 = vld [vmem:[%s3] sm:$0x1]
      %v1899 = vmul.f32 %v1889, %v1897
      %v1900 = vsub.f32 %v1898, %v1899
      %v1902 = vlaneseq
      %v1903 = vshrl.u32 %v1902, 7
      %v1904 = vsub.s32 0, %v1903
      %v1905 = vrot.slane %v1897, %v1904
      %v1907 = vmul.f32 %v1687, %v1905
      %v1908 = vmul.f32 %v1688, %v1905
      %v1909 = vmul.f32 %v1689, %v1905
      %v1910 = vmul.f32 %v1690, %v1905
      %v1911 = vmul.f32 %v1691, %v1905
      %v1912 = vmul.f32 %v1692, %v1905
      %v1913 = vmul.f32 %v1693, %v1905
      %v1914 = vmul.f32 %v1694, %v1905
      %v1915 = vmul.f32 %v1695, %v1905
      %v1916 = vmul.f32 %v1696, %v1905
      %v1917 = vmul.f32 %v1697, %v1905
      %v1918 = vmul.f32 %v1698, %v1905
      %v1919 = vmul.f32 %v1699, %v1905
      %v1920 = vmul.f32 %v1700, %v1905
      %v1921 = vmul.f32 %v1701, %v1905
      %v1922 = vmul.f32 %v1702, %v1905
      %v1923 = vmul.f32 %v1703, %v1905
      %v1924 = vmul.f32 %v1704, %v1905
      %v1925 = vmul.f32 %v1705, %v1905
      %v1926 = vmul.f32 %v1706, %v1905
      %v1927 = vmul.f32 %v1707, %v1905
      %v1928 = vmul.f32 %v1708, %v1905
      %v1929 = vmul.f32 %v1709, %v1905
      %v1930 = vmul.f32 %v1710, %v1905
      %v1931 = vmul.f32 %v1711, %v1905
      %v1932 = vmul.f32 %v1712, %v1905
      %v1933 = vmul.f32 %v1713, %v1905
      %v1934 = vmul.f32 %v1714, %v1905
      %v1935 = vmul.f32 %v1715, %v1905
      %v1936 = vmul.f32 %v1716, %v1905
      %v1937 = vmul.f32 %v1717, %v1905
      %v1938 = vmul.f32 %v1718, %v1905
      %v1940 = vlaneseq
      %v1941 = vshrl.u32 %v1940, 7
      %v1942 = vsub.s32 0, %v1941
      %v1943 = vrot.slane %v1900, %v1942
      %v1945 = vadd.f32 %v1907, %v1943
      %v1946 = vadd.f32 %v1908, %v1943
      %v1947 = vadd.f32 %v1909, %v1943
      %v1948 = vadd.f32 %v1910, %v1943
      %v1949 = vadd.f32 %v1911, %v1943
      %v1950 = vadd.f32 %v1912, %v1943
      %v1951 = vadd.f32 %v1913, %v1943
      %v1952 = vadd.f32 %v1914, %v1943
      %v1953 = vadd.f32 %v1915, %v1943
      %v1954 = vadd.f32 %v1916, %v1943
      %v1955 = vadd.f32 %v1917, %v1943
      %v1956 = vadd.f32 %v1918, %v1943
      %v1957 = vadd.f32 %v1919, %v1943
      %v1958 = vadd.f32 %v1920, %v1943
      %v1959 = vadd.f32 %v1921, %v1943
      %v1960 = vadd.f32 %v1922, %v1943
      %v1961 = vadd.f32 %v1923, %v1943
      %v1962 = vadd.f32 %v1924, %v1943
      %v1963 = vadd.f32 %v1925, %v1943
      %v1964 = vadd.f32 %v1926, %v1943
      %v1965 = vadd.f32 %v1927, %v1943
      %v1966 = vadd.f32 %v1928, %v1943
      %v1967 = vadd.f32 %v1929, %v1943
      %v1968 = vadd.f32 %v1930, %v1943
      %v1969 = vadd.f32 %v1931, %v1943
      %v1970 = vadd.f32 %v1932, %v1943
      %v1971 = vadd.f32 %v1933, %v1943
      %v1972 = vadd.f32 %v1934, %v1943
      %v1973 = vadd.f32 %v1935, %v1943
      %v1974 = vadd.f32 %v1936, %v1943
      %v1975 = vadd.f32 %v1937, %v1943
      %v1976 = vadd.f32 %v1938, %v1943
      %v1977 = vmax.f32 %v1945, 0.0
      %v1978 = vmax.f32 %v1946, 0.0
      %v1979 = vmax.f32 %v1947, 0.0
      %v1980 = vmax.f32 %v1948, 0.0
      %v1981 = vmax.f32 %v1949, 0.0
      %v1982 = vmax.f32 %v1950, 0.0
      %v1983 = vmax.f32 %v1951, 0.0
      %v1984 = vmax.f32 %v1952, 0.0
      %v1985 = vmax.f32 %v1953, 0.0
      %v1986 = vmax.f32 %v1954, 0.0
      %v1987 = vmax.f32 %v1955, 0.0
      %v1988 = vmax.f32 %v1956, 0.0
      %v1989 = vmax.f32 %v1957, 0.0
      %v1990 = vmax.f32 %v1958, 0.0
      %v1991 = vmax.f32 %v1959, 0.0
      %v1992 = vmax.f32 %v1960, 0.0
      %v1993 = vmax.f32 %v1961, 0.0
      %v1994 = vmax.f32 %v1962, 0.0
      %v1995 = vmax.f32 %v1963, 0.0
      %v1996 = vmax.f32 %v1964, 0.0
      %v1997 = vmax.f32 %v1965, 0.0
      %v1998 = vmax.f32 %v1966, 0.0
      %v1999 = vmax.f32 %v1967, 0.0
      %v2000 = vmax.f32 %v1968, 0.0
      %v2001 = vmax.f32 %v1969, 0.0
      %v2002 = vmax.f32 %v1970, 0.0
      %v2003 = vmax.f32 %v1971, 0.0
      %v2004 = vmax.f32 %v1972, 0.0
      %v2005 = vmax.f32 %v1973, 0.0
      %v2006 = vmax.f32 %v1974, 0.0
      %v2007 = vmax.f32 %v1975, 0.0
      %v2008 = vmax.f32 %v1976, 0.0
      %2009 = vst.msk [vmem:[%s311 + $0x1] sm:$0xff] %vm312, %v1977
      %2010 = vst.msk [vmem:[%s311 + $0x9] sm:$0xff] %vm312, %v1978
      %2011 = vst.msk [vmem:[%s311 + $0x19] sm:$0xff] %vm312, %v1979
      %2012 = vst.msk [vmem:[%s311 + $0x21] sm:$0xff] %vm312, %v1980
      %2013 = vst.msk [vmem:[%s311 + $0x31] sm:$0xff] %vm312, %v1981
      %2014 = vst.msk [vmem:[%s311 + $0x39] sm:$0xff] %vm312, %v1982
      %2015 = vst.msk [vmem:[%s311 + $0x49] sm:$0xff] %vm312, %v1983
      %2016 = vst.msk [vmem:[%s311 + $0x51] sm:$0xff] %vm312, %v1984
      %2017 = vst.msk [vmem:[%s311 + $0x61] sm:$0xff] %vm312, %v1985
      %2018 = vst.msk [vmem:[%s311 + $0x69] sm:$0xff] %vm312, %v1986
      %2019 = vst.msk [vmem:[%s311 + $0x79] sm:$0xff] %vm312, %v1987
      %2020 = vst.msk [vmem:[%s311 + $0x81] sm:$0xff] %vm312, %v1988
      %2021 = vst.msk [vmem:[%s311 + $0x91] sm:$0xff] %vm312, %v1989
      %2022 = vst.msk [vmem:[%s311 + $0x99] sm:$0xff] %vm312, %v1990
      %2023 = vst.msk [vmem:[%s311 + $0xa9] sm:$0xff] %vm312, %v1991
      %2024 = vst.msk [vmem:[%s311 + $0xb1] sm:$0xff] %vm312, %v1992
      %2025 = vst.msk [vmem:[%s311 + $0xc1] sm:$0xff] %vm312, %v1993
      %2026 = vst.msk [vmem:[%s311 + $0xc9] sm:$0xff] %vm312, %v1994
      %2027 = vst.msk [vmem:[%s311 + $0xd9] sm:$0xff] %vm312, %v1995
      %2028 = vst.msk [vmem:[%s311 + $0xe1] sm:$0xff] %vm312, %v1996
      %2029 = vst.msk [vmem:[%s311 + $0xf1] sm:$0xff] %vm312, %v1997
      %2030 = vst.msk [vmem:[%s311 + $0xf9] sm:$0xff] %vm312, %v1998
      %2031 = vst.msk [vmem:[%s311 + $0x109] sm:$0xff] %vm312, %v1999
      %2032 = vst.msk [vmem:[%s311 + $0x111] sm:$0xff] %vm312, %v2000
      %2033 = vst.msk [vmem:[%s311 + $0x121] sm:$0xff] %vm312, %v2001
      %2034 = vst.msk [vmem:[%s311 + $0x129] sm:$0xff] %vm312, %v2002
      %2035 = vst.msk [vmem:[%s311 + $0x139] sm:$0xff] %vm312, %v2003
      %2036 = vst.msk [vmem:[%s311 + $0x141] sm:$0xff] %vm312, %v2004
      %2037 = vst.msk [vmem:[%s311 + $0x151] sm:$0xff] %vm312, %v2005
      %2038 = vst.msk [vmem:[%s311 + $0x159] sm:$0xff] %vm312, %v2006
      %2039 = vst.msk [vmem:[%s311 + $0x169] sm:$0xff] %vm312, %v2007
      %2040 = vst.msk [vmem:[%s311 + $0x171] sm:$0xff] %vm312, %v2008
      %2041 = vst.msk [vmem:[%s311 - $0x1] sm:$0x2] %vm345, %v1977
      %2042 = vst.msk [vmem:[%s311 + $0x17] sm:$0x2] %vm345, %v1979
      %2043 = vst.msk [vmem:[%s311 + $0x2f] sm:$0x2] %vm345, %v1981
      %2044 = vst.msk [vmem:[%s311 + $0x47] sm:$0x2] %vm345, %v1983
      %2045 = vst.msk [vmem:[%s311 + $0x5f] sm:$0x2] %vm345, %v1985
      %2046 = vst.msk [vmem:[%s311 + $0x77] sm:$0x2] %vm345, %v1987
      %2047 = vst.msk [vmem:[%s311 + $0x8f] sm:$0x2] %vm345, %v1989
      %2048 = vst.msk [vmem:[%s311 + $0xa7] sm:$0x2] %vm345, %v1991
      %2049 = vst.msk [vmem:[%s311 + $0xbf] sm:$0x2] %vm345, %v1993
      %2050 = vst.msk [vmem:[%s311 + $0xd7] sm:$0x2] %vm345, %v1995
      %2051 = vst.msk [vmem:[%s311 + $0xef] sm:$0x2] %vm345, %v1997
      %2052 = vst.msk [vmem:[%s311 + $0x107] sm:$0x2] %vm345, %v1999
      %2053 = vst.msk [vmem:[%s311 + $0x11f] sm:$0x2] %vm345, %v2001
      %2054 = vst.msk [vmem:[%s311 + $0x137] sm:$0x2] %vm345, %v2003
      %2055 = vst.msk [vmem:[%s311 + $0x14f] sm:$0x2] %vm345, %v2005
      %2056 = vst.msk [vmem:[%s311 + $0x167] sm:$0x2] %vm345, %v2007
      %2057 = vst.msk [vmem:[%s311 + $0xb] sm:$0x40] %vm362, %v1978
      %2058 = vst.msk [vmem:[%s311 + $0x23] sm:$0x40] %vm362, %v1980
      %2059 = vst.msk [vmem:[%s311 + $0x3b] sm:$0x40] %vm362, %v1982
      %2060 = vst.msk [vmem:[%s311 + $0x53] sm:$0x40] %vm362, %v1984
      %2061 = vst.msk [vmem:[%s311 + $0x6b] sm:$0x40] %vm362, %v1986
      %2062 = vst.msk [vmem:[%s311 + $0x83] sm:$0x40] %vm362, %v1988
      %2063 = vst.msk [vmem:[%s311 + $0x9b] sm:$0x40] %vm362, %v1990
      %2064 = vst.msk [vmem:[%s311 + $0xb3] sm:$0x40] %vm362, %v1992
      %2065 = vst.msk [vmem:[%s311 + $0xcb] sm:$0x40] %vm362, %v1994
      %2066 = vst.msk [vmem:[%s311 + $0xe3] sm:$0x40] %vm362, %v1996
      %2067 = vst.msk [vmem:[%s311 + $0xfb] sm:$0x40] %vm362, %v1998
      %2068 = vst.msk [vmem:[%s311 + $0x113] sm:$0x40] %vm362, %v2000
      %2069 = vst.msk [vmem:[%s311 + $0x12b] sm:$0x40] %vm362, %v2002
      %2070 = vst.msk [vmem:[%s311 + $0x143] sm:$0x40] %vm362, %v2004
      %2071 = vst.msk [vmem:[%s311 + $0x15b] sm:$0x40] %vm362, %v2006
      %2072 = vst.msk [vmem:[%s311 + $0x173] sm:$0x40] %vm362, %v2008
      %v2074 = vrot.slane %v1979, 1
      %v2077 = vrot.slane %v1979, 7
      %v2078 = vrot.slane %v1980, 7
      %v2079 = vsel %vm383, %v2077, %v2078
      %v2083 = vrot.slane %v1980, 5
      %v2085 = vsel %vm383, %v2074, %v2077
      %v2086 = vsel %vm383, %v2078, %v2083
      %v2088 = vrot.slane %v2005, 1
      %v2091 = vrot.slane %v2005, 7
      %v2092 = vrot.slane %v2006, 7
      %v2093 = vsel %vm383, %v2091, %v2092
      %v2097 = vrot.slane %v2006, 5
      %v2099 = vsel %vm383, %v2088, %v2091
      %v2100 = vsel %vm383, %v2092, %v2097
      %2101 = vst.msk [vmem:[#allocation2] sm:$0xff] %vm312, %v2085
      %2102 = vst.msk [vmem:[#allocation2 + $0x8] sm:$0xff] %vm312, %v2079
      %2103 = vst.msk [vmem:[#allocation2 + $0x10] sm:$0x3] %vm410, %v2086
      %2104 = vst.msk [vmem:[%s412] sm:$0xff] %vm312, %v2099
      %2105 = vst.msk [vmem:[%s412 + $0x8] sm:$0xff] %vm312, %v2093
      %2106 = vst.msk [vmem:[%s412 + $0x10] sm:$0x3] %vm410, %v2100
      %v2107 = vld [vmem:[#allocation2] sm:$0xff]
      %v2108 = vld [vmem:[#allocation2 + $0x8] sm:$0xff]
      %v2109 = vld [vmem:[#allocation2 + $0x18] sm:$0xff]
      %v2110 = vld [vmem:[#allocation2 + $0x20] sm:$0xff]
      %v2111 = vld [vmem:[#allocation2 + $0x30] sm:$0xff]
      %v2112 = vld [vmem:[#allocation2 + $0x38] sm:$0xff]
      %v2113 = vld [vmem:[#allocation2 + $0x48] sm:$0xff]
      %v2114 = vld [vmem:[#allocation2 + $0x50] sm:$0xff]
      %v2115 = vld [vmem:[#allocation2 + $0x60] sm:$0xff]
      %v2116 = vld [vmem:[#allocation2 + $0x68] sm:$0xff]
      %v2117 = vld [vmem:[#allocation2 + $0x78] sm:$0xff]
      %v2118 = vld [vmem:[#allocation2 + $0x80] sm:$0xff]
      %v2119 = vld [vmem:[#allocation2 + $0x90] sm:$0xff]
      %v2120 = vld [vmem:[#allocation2 + $0x98] sm:$0xff]
      %v2121 = vld [vmem:[#allocation2 + $0xa8] sm:$0xff]
      %v2122 = vld [vmem:[#allocation2 + $0xb0] sm:$0xff]
      %v2123 = vld [vmem:[#allocation2 + $0xc0] sm:$0xff]
      %v2124 = vld [vmem:[#allocation2 + $0xc8] sm:$0xff]
      %v2125 = vld [vmem:[#allocation2 + $0xd8] sm:$0xff]
      %v2126 = vld [vmem:[#allocation2 + $0xe0] sm:$0xff]
      %v2127 = vld [vmem:[#allocation2 + $0xf0] sm:$0xff]
      %v2128 = vld [vmem:[#allocation2 + $0xf8] sm:$0xff]
      %v2129 = vld [vmem:[#allocation2 + $0x108] sm:$0xff]
      %v2130 = vld [vmem:[#allocation2 + $0x110] sm:$0xff]
      %v2131 = vld [vmem:[#allocation2 + $0x120] sm:$0xff]
      %v2132 = vld [vmem:[#allocation2 + $0x128] sm:$0xff]
      %v2133 = vld [vmem:[#allocation2 + $0x138] sm:$0xff]
      %v2134 = vld [vmem:[#allocation2 + $0x140] sm:$0xff]
      %v2135 = vld [vmem:[#allocation2 + $0x150] sm:$0xff]
      %v2136 = vld [vmem:[#allocation2 + $0x158] sm:$0xff]
      %v2137 = vld [vmem:[#allocation2 + $0x168] sm:$0xff]
      %v2138 = vld [vmem:[#allocation2 + $0x170] sm:$0xff]
      %v2139 = vld [vmem:[#allocation2 + $0x180] sm:$0xff]
      %v2140 = vld [vmem:[#allocation2 + $0x188] sm:$0xff]
      %v2141 = vld [vmem:[#allocation2 + $0x198] sm:$0xff]
      %v2142 = vld [vmem:[#allocation2 + $0x1a0] sm:$0xff]
      %v2143 = vld [vmem:[#allocation2 + $0x1] sm:$0xff]
      %v2144 = vld [vmem:[#allocation2 + $0x9] sm:$0xff]
      %v2145 = vld [vmem:[#allocation2 + $0x19] sm:$0xff]
      %v2146 = vld [vmem:[#allocation2 + $0x21] sm:$0xff]
      %v2147 = vld [vmem:[#allocation2 + $0x31] sm:$0xff]
      %v2148 = vld [vmem:[#allocation2 + $0x39] sm:$0xff]
      %v2149 = vld [vmem:[#allocation2 + $0x49] sm:$0xff]
      %v2150 = vld [vmem:[#allocation2 + $0x51] sm:$0xff]
      %v2151 = vld [vmem:[#allocation2 + $0x61] sm:$0xff]
      %v2152 = vld [vmem:[#allocation2 + $0x69] sm:$0xff]
      %v2153 = vld [vmem:[#allocation2 + $0x79] sm:$0xff]
      %v2154 = vld [vmem:[#allocation2 + $0x81] sm:$0xff]
      %v2155 = vld [vmem:[#allocation2 + $0x91] sm:$0xff]
      %v2156 = vld [vmem:[#allocation2 + $0x99] sm:$0xff]
      %v2157 = vld [vmem:[#allocation2 + $0xa9] sm:$0xff]
      %v2158 = vld [vmem:[#allocation2 + $0xb1] sm:$0xff]
      %v2159 = vld [vmem:[#allocation2 + $0xc1] sm:$0xff]
      %v2160 = vld [vmem:[#allocation2 + $0xc9] sm:$0xff]
      %v2161 = vld [vmem:[#allocation2 + $0xd9] sm:$0xff]
      %v2162 = vld [vmem:[#allocation2 + $0xe1] sm:$0xff]
      %v2163 = vld [vmem:[#allocation2 + $0xf1] sm:$0xff]
      %v2164 = vld [vmem:[#allocation2 + $0xf9] sm:$0xff]
      %v2165 = vld [vmem:[#allocation2 + $0x109] sm:$0xff]
      %v2166 = vld [vmem:[#allocation2 + $0x111] sm:$0xff]
      %v2167 = vld [vmem:[#allocation2 + $0x121] sm:$0xff]
      %v2168 = vld [vmem:[#allocation2 + $0x129] sm:$0xff]
      %v2169 = vld [vmem:[#allocation2 + $0x139] sm:$0xff]
      %v2170 = vld [vmem:[#allocation2 + $0x141] sm:$0xff]
      %v2171 = vld [vmem:[#allocation2 + $0x151] sm:$0xff]
      %v2172 = vld [vmem:[#allocation2 + $0x159] sm:$0xff]
      %v2173 = vld [vmem:[#allocation2 + $0x169] sm:$0xff]
      %v2174 = vld [vmem:[#allocation2 + $0x171] sm:$0xff]
      %v2175 = vld [vmem:[#allocation2 + $0x181] sm:$0xff]
      %v2176 = vld [vmem:[#allocation2 + $0x189] sm:$0xff]
      %v2177 = vld [vmem:[#allocation2 + $0x199] sm:$0xff]
      %v2178 = vld [vmem:[#allocation2 + $0x1a1] sm:$0xff]
      %v2179 = vld [vmem:[#allocation2 + $0x2] sm:$0xff]
      %v2180 = vld [vmem:[#allocation2 + $0xa] sm:$0xff]
      %v2181 = vld [vmem:[#allocation2 + $0x1a] sm:$0xff]
      %v2182 = vld [vmem:[#allocation2 + $0x22] sm:$0xff]
      %v2183 = vld [vmem:[#allocation2 + $0x32] sm:$0xff]
      %v2184 = vld [vmem:[#allocation2 + $0x3a] sm:$0xff]
      %v2185 = vld [vmem:[#allocation2 + $0x4a] sm:$0xff]
      %v2186 = vld [vmem:[#allocation2 + $0x52] sm:$0xff]
      %v2187 = vld [vmem:[#allocation2 + $0x62] sm:$0xff]
      %v2188 = vld [vmem:[#allocation2 + $0x6a] sm:$0xff]
      %v2189 = vld [vmem:[#allocation2 + $0x7a] sm:$0xff]
      %v2190 = vld [vmem:[#allocation2 + $0x82] sm:$0xff]
      %v2191 = vld [vmem:[#allocation2 + $0x92] sm:$0xff]
      %v2192 = vld [vmem:[#allocation2 + $0x9a] sm:$0xff]
      %v2193 = vld [vmem:[#allocation2 + $0xaa] sm:$0xff]
      %v2194 = vld [vmem:[#allocation2 + $0xb2] sm:$0xff]
      %v2195 = vld [vmem:[#allocation2 + $0xc2] sm:$0xff]
      %v2196 = vld [vmem:[#allocation2 + $0xca] sm:$0xff]
      %v2197 = vld [vmem:[#allocation2 + $0xda] sm:$0xff]
      %v2198 = vld [vmem:[#allocation2 + $0xe2] sm:$0xff]
      %v2199 = vld [vmem:[#allocation2 + $0xf2] sm:$0xff]
      %v2200 = vld [vmem:[#allocation2 + $0xfa] sm:$0xff]
      %v2201 = vld [vmem:[#allocation2 + $0x10a] sm:$0xff]
      %v2202 = vld [vmem:[#allocation2 + $0x112] sm:$0xff]
      %v2203 = vld [vmem:[#allocation2 + $0x122] sm:$0xff]
      %v2204 = vld [vmem:[#allocation2 + $0x12a] sm:$0xff]
      %v2205 = vld [vmem:[#allocation2 + $0x13a] sm:$0xff]
      %v2206 = vld [vmem:[#allocation2 + $0x142] sm:$0xff]
      %v2207 = vld [vmem:[#allocation2 + $0x152] sm:$0xff]
      %v2208 = vld [vmem:[#allocation2 + $0x15a] sm:$0xff]
      %v2209 = vld [vmem:[#allocation2 + $0x16a] sm:$0xff]
      %v2210 = vld [vmem:[#allocation2 + $0x172] sm:$0xff]
      %v2211 = vld [vmem:[#allocation2 + $0x182] sm:$0xff]
      %v2212 = vld [vmem:[#allocation2 + $0x18a] sm:$0xff]
      %v2213 = vld [vmem:[#allocation2 + $0x19a] sm:$0xff]
      %v2214 = vld [vmem:[#allocation2 + $0x1a2] sm:$0xff]
      %2251 = vrot.lane.b32.xlu0 %v2143, 4
      %v2252 = vpop.permute.xlu0 %2251
      %2253 = vrot.lane.b32.xlu0 %v2144, 4
      %v2254 = vpop.permute.xlu0 %2253
      %2255 = vrot.lane.b32.xlu0 %v2145, 4
      %v2256 = vpop.permute.xlu0 %2255
      %2257 = vrot.lane.b32.xlu0 %v2146, 4
      %v2258 = vpop.permute.xlu0 %2257
      %2259 = vrot.lane.b32.xlu0 %v2147, 4
      %v2260 = vpop.permute.xlu0 %2259
      %2261 = vrot.lane.b32.xlu0 %v2148, 4
      %v2262 = vpop.permute.xlu0 %2261
      %2263 = vrot.lane.b32.xlu0 %v2149, 4
      %v2264 = vpop.permute.xlu0 %2263
      %2265 = vrot.lane.b32.xlu0 %v2150, 4
      %v2266 = vpop.permute.xlu0 %2265
      %2267 = vrot.lane.b32.xlu0 %v2151, 4
      %v2268 = vpop.permute.xlu0 %2267
      %2269 = vrot.lane.b32.xlu0 %v2152, 4
      %v2270 = vpop.permute.xlu0 %2269
      %2271 = vrot.lane.b32.xlu0 %v2153, 4
      %v2272 = vpop.permute.xlu0 %2271
      %2273 = vrot.lane.b32.xlu0 %v2154, 4
      %v2274 = vpop.permute.xlu0 %2273
      %2275 = vrot.lane.b32.xlu0 %v2155, 4
      %v2276 = vpop.permute.xlu0 %2275
      %2277 = vrot.lane.b32.xlu0 %v2156, 4
      %v2278 = vpop.permute.xlu0 %2277
      %2279 = vrot.lane.b32.xlu0 %v2157, 4
      %v2280 = vpop.permute.xlu0 %2279
      %2281 = vrot.lane.b32.xlu0 %v2158, 4
      %v2282 = vpop.permute.xlu0 %2281
      %2283 = vrot.lane.b32.xlu0 %v2159, 4
      %v2284 = vpop.permute.xlu0 %2283
      %2285 = vrot.lane.b32.xlu0 %v2160, 4
      %v2286 = vpop.permute.xlu0 %2285
      %2287 = vrot.lane.b32.xlu0 %v2161, 4
      %v2288 = vpop.permute.xlu0 %2287
      %2289 = vrot.lane.b32.xlu0 %v2162, 4
      %v2290 = vpop.permute.xlu0 %2289
      %2291 = vrot.lane.b32.xlu0 %v2163, 4
      %v2292 = vpop.permute.xlu0 %2291
      %2293 = vrot.lane.b32.xlu0 %v2164, 4
      %v2294 = vpop.permute.xlu0 %2293
      %2295 = vrot.lane.b32.xlu0 %v2165, 4
      %v2296 = vpop.permute.xlu0 %2295
      %2297 = vrot.lane.b32.xlu0 %v2166, 4
      %v2298 = vpop.permute.xlu0 %2297
      %2299 = vrot.lane.b32.xlu0 %v2167, 4
      %v2300 = vpop.permute.xlu0 %2299
      %2301 = vrot.lane.b32.xlu0 %v2168, 4
      %v2302 = vpop.permute.xlu0 %2301
      %2303 = vrot.lane.b32.xlu0 %v2169, 4
      %v2304 = vpop.permute.xlu0 %2303
      %2305 = vrot.lane.b32.xlu0 %v2170, 4
      %v2306 = vpop.permute.xlu0 %2305
      %2307 = vrot.lane.b32.xlu0 %v2171, 4
      %v2308 = vpop.permute.xlu0 %2307
      %2309 = vrot.lane.b32.xlu0 %v2172, 4
      %v2310 = vpop.permute.xlu0 %2309
      %2311 = vrot.lane.b32.xlu0 %v2173, 4
      %v2312 = vpop.permute.xlu0 %2311
      %2313 = vrot.lane.b32.xlu0 %v2174, 4
      %v2314 = vpop.permute.xlu0 %2313
      %2315 = vrot.lane.b32.xlu0 %v2175, 4
      %v2316 = vpop.permute.xlu0 %2315
      %2317 = vrot.lane.b32.xlu0 %v2176, 4
      %v2318 = vpop.permute.xlu0 %2317
      %2319 = vrot.lane.b32.xlu0 %v2177, 4
      %v2320 = vpop.permute.xlu0 %2319
      %2321 = vrot.lane.b32.xlu0 %v2178, 4
      %v2322 = vpop.permute.xlu0 %2321
      %2395 = vrot.lane.b32.xlu0 %v2179, 8
      %v2396 = vpop.permute.xlu0 %2395
      %2397 = vrot.lane.b32.xlu0 %v2180, 8
      %v2398 = vpop.permute.xlu0 %2397
      %2399 = vrot.lane.b32.xlu0 %v2181, 8
      %v2400 = vpop.permute.xlu0 %2399
      %2401 = vrot.lane.b32.xlu0 %v2182, 8
      %v2402 = vpop.permute.xlu0 %2401
      %2403 = vrot.lane.b32.xlu0 %v2183, 8
      %v2404 = vpop.permute.xlu0 %2403
      %2405 = vrot.lane.b32.xlu0 %v2184, 8
      %v2406 = vpop.permute.xlu0 %2405
      %2407 = vrot.lane.b32.xlu0 %v2185, 8
      %v2408 = vpop.permute.xlu0 %2407
      %2409 = vrot.lane.b32.xlu0 %v2186, 8
      %v2410 = vpop.permute.xlu0 %2409
      %2411 = vrot.lane.b32.xlu0 %v2187, 8
      %v2412 = vpop.permute.xlu0 %2411
      %2413 = vrot.lane.b32.xlu0 %v2188, 8
      %v2414 = vpop.permute.xlu0 %2413
      %2415 = vrot.lane.b32.xlu0 %v2189, 8
      %v2416 = vpop.permute.xlu0 %2415
      %2417 = vrot.lane.b32.xlu0 %v2190, 8
      %v2418 = vpop.permute.xlu0 %2417
      %2419 = vrot.lane.b32.xlu0 %v2191, 8
      %v2420 = vpop.permute.xlu0 %2419
      %2421 = vrot.lane.b32.xlu0 %v2192, 8
      %v2422 = vpop.permute.xlu0 %2421
      %2423 = vrot.lane.b32.xlu0 %v2193, 8
      %v2424 = vpop.permute.xlu0 %2423
      %2425 = vrot.lane.b32.xlu0 %v2194, 8
      %v2426 = vpop.permute.xlu0 %2425
      %2427 = vrot.lane.b32.xlu0 %v2195, 8
      %v2428 = vpop.permute.xlu0 %2427
      %2429 = vrot.lane.b32.xlu0 %v2196, 8
      %v2430 = vpop.permute.xlu0 %2429
      %2431 = vrot.lane.b32.xlu0 %v2197, 8
      %v2432 = vpop.permute.xlu0 %2431
      %2433 = vrot.lane.b32.xlu0 %v2198, 8
      %v2434 = vpop.permute.xlu0 %2433
      %2435 = vrot.lane.b32.xlu0 %v2199, 8
      %v2436 = vpop.permute.xlu0 %2435
      %2437 = vrot.lane.b32.xlu0 %v2200, 8
      %v2438 = vpop.permute.xlu0 %2437
      %2439 = vrot.lane.b32.xlu0 %v2201, 8
      %v2440 = vpop.permute.xlu0 %2439
      %2441 = vrot.lane.b32.xlu0 %v2202, 8
      %v2442 = vpop.permute.xlu0 %2441
      %2443 = vrot.lane.b32.xlu0 %v2203, 8
      %v2444 = vpop.permute.xlu0 %2443
      %2445 = vrot.lane.b32.xlu0 %v2204, 8
      %v2446 = vpop.permute.xlu0 %2445
      %2447 = vrot.lane.b32.xlu0 %v2205, 8
      %v2448 = vpop.permute.xlu0 %2447
      %2449 = vrot.lane.b32.xlu0 %v2206, 8
      %v2450 = vpop.permute.xlu0 %2449
      %2451 = vrot.lane.b32.xlu0 %v2207, 8
      %v2452 = vpop.permute.xlu0 %2451
      %2453 = vrot.lane.b32.xlu0 %v2208, 8
      %v2454 = vpop.permute.xlu0 %2453
      %2455 = vrot.lane.b32.xlu0 %v2209, 8
      %v2456 = vpop.permute.xlu0 %2455
      %2457 = vrot.lane.b32.xlu0 %v2210, 8
      %v2458 = vpop.permute.xlu0 %2457
      %2459 = vrot.lane.b32.xlu0 %v2211, 8
      %v2460 = vpop.permute.xlu0 %2459
      %2461 = vrot.lane.b32.xlu0 %v2212, 8
      %v2462 = vpop.permute.xlu0 %2461
      %2463 = vrot.lane.b32.xlu0 %v2213, 8
      %v2464 = vpop.permute.xlu0 %2463
      %2465 = vrot.lane.b32.xlu0 %v2214, 8
      %v2466 = vpop.permute.xlu0 %2465
      %v2503 = vsel %vm312, %v2107, %v2252
      %v2504 = vsel %vm312, %v2108, %v2254
      %v2505 = vsel %vm312, %v2109, %v2256
      %v2506 = vsel %vm312, %v2110, %v2258
      %v2507 = vsel %vm312, %v2111, %v2260
      %v2508 = vsel %vm312, %v2112, %v2262
      %v2509 = vsel %vm312, %v2113, %v2264
      %v2510 = vsel %vm312, %v2114, %v2266
      %v2511 = vsel %vm312, %v2115, %v2268
      %v2512 = vsel %vm312, %v2116, %v2270
      %v2513 = vsel %vm312, %v2117, %v2272
      %v2514 = vsel %vm312, %v2118, %v2274
      %v2515 = vsel %vm312, %v2119, %v2276
      %v2516 = vsel %vm312, %v2120, %v2278
      %v2517 = vsel %vm312, %v2121, %v2280
      %v2518 = vsel %vm312, %v2122, %v2282
      %v2519 = vsel %vm312, %v2123, %v2284
      %v2520 = vsel %vm312, %v2124, %v2286
      %v2521 = vsel %vm312, %v2125, %v2288
      %v2522 = vsel %vm312, %v2126, %v2290
      %v2523 = vsel %vm312, %v2127, %v2292
      %v2524 = vsel %vm312, %v2128, %v2294
      %v2525 = vsel %vm312, %v2129, %v2296
      %v2526 = vsel %vm312, %v2130, %v2298
      %v2527 = vsel %vm312, %v2131, %v2300
      %v2528 = vsel %vm312, %v2132, %v2302
      %v2529 = vsel %vm312, %v2133, %v2304
      %v2530 = vsel %vm312, %v2134, %v2306
      %v2531 = vsel %vm312, %v2135, %v2308
      %v2532 = vsel %vm312, %v2136, %v2310
      %v2533 = vsel %vm312, %v2137, %v2312
      %v2534 = vsel %vm312, %v2138, %v2314
      %v2535 = vsel %vm312, %v2139, %v2316
      %v2536 = vsel %vm312, %v2140, %v2318
      %v2537 = vsel %vm312, %v2141, %v2320
      %v2538 = vsel %vm312, %v2142, %v2322
      %v2539 = vsel %vm848, %v2503, %v2396
      %v2540 = vsel %vm848, %v2504, %v2398
      %v2541 = vsel %vm848, %v2505, %v2400
      %v2542 = vsel %vm848, %v2506, %v2402
      %v2543 = vsel %vm848, %v2507, %v2404
      %v2544 = vsel %vm848, %v2508, %v2406
      %v2545 = vsel %vm848, %v2509, %v2408
      %v2546 = vsel %vm848, %v2510, %v2410
      %v2547 = vsel %vm848, %v2511, %v2412
      %v2548 = vsel %vm848, %v2512, %v2414
      %v2549 = vsel %vm848, %v2513, %v2416
      %v2550 = vsel %vm848, %v2514, %v2418
      %v2551 = vsel %vm848, %v2515, %v2420
      %v2552 = vsel %vm848, %v2516, %v2422
      %v2553 = vsel %vm848, %v2517, %v2424
      %v2554 = vsel %vm848, %v2518, %v2426
      %v2555 = vsel %vm848, %v2519, %v2428
      %v2556 = vsel %vm848, %v2520, %v2430
      %v2557 = vsel %vm848, %v2521, %v2432
      %v2558 = vsel %vm848, %v2522, %v2434
      %v2559 = vsel %vm848, %v2523, %v2436
      %v2560 = vsel %vm848, %v2524, %v2438
      %v2561 = vsel %vm848, %v2525, %v2440
      %v2562 = vsel %vm848, %v2526, %v2442
      %v2563 = vsel %vm848, %v2527, %v2444
      %v2564 = vsel %vm848, %v2528, %v2446
      %v2565 = vsel %vm848, %v2529, %v2448
      %v2566 = vsel %vm848, %v2530, %v2450
      %v2567 = vsel %vm848, %v2531, %v2452
      %v2568 = vsel %vm848, %v2532, %v2454
      %v2569 = vsel %vm848, %v2533, %v2456
      %v2570 = vsel %vm848, %v2534, %v2458
      %v2571 = vsel %vm848, %v2535, %v2460
      %v2572 = vsel %vm848, %v2536, %v2462
      %v2573 = vsel %vm848, %v2537, %v2464
      %v2574 = vsel %vm848, %v2538, %v2466
      %v2575 = vld [vmem:[%s4] sm:$0xff]
      %v2576 = vld [vmem:[%s4 + $0x8] sm:$0xf]
      %s2577 = scalar_lea.vmem %s4, 16
      %v2578 = vld [vmem:[%s2577] sm:$0xff]
      %v2579 = vld [vmem:[%s2577 + $0x8] sm:$0xf]
      %v2581 = vsel %vm890, %v2541, 0
      %v2584 = vsel %vm890, %v2542, 0
      %v2587 = vsel %vm890, %v2543, 0
      %v2590 = vsel %vm890, %v2544, 0
      %v2593 = vsel %vm890, %v2545, 0
      %v2596 = vsel %vm890, %v2546, 0
      %v2599 = vsel %vm890, %v2547, 0
      %v2602 = vsel %vm890, %v2548, 0
      %v2605 = vsel %vm890, %v2549, 0
      %v2608 = vsel %vm890, %v2550, 0
      %v2611 = vsel %vm890, %v2551, 0
      %v2614 = vsel %vm890, %v2552, 0
      %v2617 = vsel %vm890, %v2553, 0
      %v2620 = vsel %vm890, %v2554, 0
      %v2623 = vsel %vm890, %v2555, 0
      %v2626 = vsel %vm890, %v2556, 0
      %v2629 = vsel %vm890, %v2557, 0
      %v2632 = vsel %vm890, %v2558, 0
      %v2635 = vsel %vm890, %v2559, 0
      %v2638 = vsel %vm890, %v2560, 0
      %v2641 = vsel %vm890, %v2561, 0
      %v2644 = vsel %vm890, %v2562, 0
      %v2647 = vsel %vm890, %v2563, 0
      %v2650 = vsel %vm890, %v2564, 0
      %v2653 = vsel %vm890, %v2565, 0
      %v2656 = vsel %vm890, %v2566, 0
      %v2659 = vsel %vm890, %v2567, 0
      %v2662 = vsel %vm890, %v2568, 0
      %v2665 = vsel %vm890, %v2569, 0
      %v2668 = vsel %vm890, %v2570, 0
      %v2671 = vsel %vm890, %v2571, 0
      %v2674 = vsel %vm890, %v2572, 0
      %v2677 = vsel %vm987, %v2579, 0
      %2679 = vmatprep.subr.mxu0 0.0
      %2680 = vmatpush1.msra.mxu0 0.0
      %2681 = vmatprep.subr.mxu0 0.0
      %2682 = vmatpush1.msra.mxu0 0.0
      %2683 = vmatprep.subr.mxu0 0.0
      %2684 = vmatpush1.msra.mxu0 0.0
      %2685 = vmatprep.subr.mxu0 0.0
      %2686 = vmatpush1.msra.mxu0 0.0
      %2687 = vmatprep.subr.mxu0 0.0
      %2688 = vmatpush1.msra.mxu0 0.0
      %2689 = vmatprep.subr.mxu0 0.0
      %2690 = vmatpush1.msra.mxu0 0.0
      %2691 = vmatprep.subr.mxu0 0.0
      %2692 = vmatpush1.msra.mxu0 0.0
      %2693 = vmatprep.subr.mxu0 0.0
      %2694 = vmatpush1.msra.mxu0 0.0
      %2695 = vmatprep.subr.mxu0 0.0
      %2696 = vmatpush1.msra.mxu0 0.0
      %2697 = vmatprep.subr.mxu0 0.0
      %2698 = vmatpush1.msra.mxu0 0.0
      %2699 = vmatprep.subr.mxu0 0.0
      %2700 = vmatpush1.msra.mxu0 0.0
      %2701 = vmatprep.subr.mxu0 0.0
      %2702 = vmatpush1.msra.mxu0 0.0
      %2703 = vmatprep.subr.mxu0 0.0
      %2704 = vmatpush1.msra.mxu0 0.0
      %2705 = vmatprep.subr.mxu0 0.0
      %2706 = vmatpush1.msra.mxu0 0.0
      %2707 = vmatprep.subr.mxu0 0.0
      %2708 = vmatpush1.msra.mxu0 %v2677
      %2709 = vmatprep.subr.mxu0 0.0
      %2710 = vmatpush1.msra.mxu0 %v2578
      %2711 = vmatprep.subr.mxu0 0.0
      %2712 = vmatpush2.msra.mxu0 0.0
      %2713 = vmatprep.subr.mxu0 0.0
      %2714 = vmatpush2.msra.mxu0 0.0
      %2715 = vmatprep.subr.mxu0 0.0
      %2716 = vmatpush2.msra.mxu0 0.0
      %2717 = vmatprep.subr.mxu0 0.0
      %2718 = vmatpush2.msra.mxu0 0.0
      %2719 = vmatprep.subr.mxu0 0.0
      %2720 = vmatpush2.msra.mxu0 0.0
      %2721 = vmatprep.subr.mxu0 0.0
      %2722 = vmatpush2.msra.mxu0 0.0
      %2723 = vmatprep.subr.mxu0 0.0
      %2724 = vmatpush2.msra.mxu0 0.0
      %2725 = vmatprep.subr.mxu0 0.0
      %2726 = vmatpush2.msra.mxu0 0.0
      %2727 = vmatprep.subr.mxu0 0.0
      %2728 = vmatpush2.msra.mxu0 0.0
      %2729 = vmatprep.subr.mxu0 0.0
      %2730 = vmatpush2.msra.mxu0 0.0
      %2731 = vmatprep.subr.mxu0 0.0
      %2732 = vmatpush2.msra.mxu0 0.0
      %2733 = vmatprep.subr.mxu0 0.0
      %2734 = vmatpush2.msra.mxu0 0.0
      %2735 = vmatprep.subr.mxu0 0.0
      %2736 = vmatpush2.msra.mxu0 0.0
      %2737 = vmatprep.subr.mxu0 0.0
      %2738 = vmatpush2.msra.mxu0 0.0
      %2739 = vmatprep.subr.mxu0 0.0
      %2740 = vmatpush2.msra.mxu0 0.0
      %2741 = vmatprep.subr.mxu0 0.0
      %2742 = vmatpush2.msra.mxu0 0.0
      %2743 = vmatprep.mubr.f32.mxu0 0.0
      %2744 = vmatmul.mubr.f32.gmra.mxu0 %v2581
      %v2745 = vpop.f32.mrf.mxu0
      %v2746 = vadd.f32 0.0, %v2745
      %v2747 = vpop.f32.mrf.mxu0
      %2748 = vmatprep.mubr.f32.mxu0 0.0
      %2749 = vmatmul.mubr.f32.gmra.mxu0 %v2584
      %v2750 = vpop.f32.mrf.mxu0
      %v2751 = vadd.f32 0.0, %v2750
      %v2752 = vpop.f32.mrf.mxu0
      %2753 = vmatprep.mubr.f32.mxu0 0.0
      %2754 = vmatmul.mubr.f32.gmra.mxu0 %v2587
      %v2755 = vpop.f32.mrf.mxu0
      %v2756 = vadd.f32 0.0, %v2755
      %v2757 = vpop.f32.mrf.mxu0
      %2758 = vmatprep.mubr.f32.mxu0 0.0
      %2759 = vmatmul.mubr.f32.gmra.mxu0 %v2590
      %v2760 = vpop.f32.mrf.mxu0
      %v2761 = vadd.f32 0.0, %v2760
      %v2762 = vpop.f32.mrf.mxu0
      %2763 = vmatprep.mubr.f32.mxu0 0.0
      %2764 = vmatmul.mubr.f32.gmra.mxu0 %v2593
      %v2765 = vpop.f32.mrf.mxu0
      %v2766 = vadd.f32 0.0, %v2765
      %v2767 = vpop.f32.mrf.mxu0
      %2768 = vmatprep.mubr.f32.mxu0 0.0
      %2769 = vmatmul.mubr.f32.gmra.mxu0 %v2596
      %v2770 = vpop.f32.mrf.mxu0
      %v2771 = vadd.f32 0.0, %v2770
      %v2772 = vpop.f32.mrf.mxu0
      %2773 = vmatprep.mubr.f32.mxu0 0.0
      %2774 = vmatmul.mubr.f32.gmra.mxu0 %v2599
      %v2775 = vpop.f32.mrf.mxu0
      %v2776 = vadd.f32 0.0, %v2775
      %v2777 = vpop.f32.mrf.mxu0
      %2778 = vmatprep.mubr.f32.mxu0 0.0
      %2779 = vmatmul.mubr.f32.gmra.mxu0 %v2602
      %v2780 = vpop.f32.mrf.mxu0
      %v2781 = vadd.f32 0.0, %v2780
      %v2782 = vpop.f32.mrf.mxu0
      %2783 = vmatprep.mubr.f32.mxu0 0.0
      %2784 = vmatmul.mubr.f32.gmra.mxu0 %v2605
      %v2785 = vpop.f32.mrf.mxu0
      %v2786 = vadd.f32 0.0, %v2785
      %v2787 = vpop.f32.mrf.mxu0
      %2788 = vmatprep.mubr.f32.mxu0 0.0
      %2789 = vmatmul.mubr.f32.gmra.mxu0 %v2608
      %v2790 = vpop.f32.mrf.mxu0
      %v2791 = vadd.f32 0.0, %v2790
      %v2792 = vpop.f32.mrf.mxu0
      %2793 = vmatprep.mubr.f32.mxu0 0.0
      %2794 = vmatmul.mubr.f32.gmra.mxu0 %v2611
      %v2795 = vpop.f32.mrf.mxu0
      %v2796 = vadd.f32 0.0, %v2795
      %v2797 = vpop.f32.mrf.mxu0
      %2798 = vmatprep.mubr.f32.mxu0 0.0
      %2799 = vmatmul.mubr.f32.gmra.mxu0 %v2614
      %v2800 = vpop.f32.mrf.mxu0
      %v2801 = vadd.f32 0.0, %v2800
      %v2802 = vpop.f32.mrf.mxu0
      %2803 = vmatprep.mubr.f32.mxu0 0.0
      %2804 = vmatmul.mubr.f32.gmra.mxu0 %v2617
      %v2805 = vpop.f32.mrf.mxu0
      %v2806 = vadd.f32 0.0, %v2805
      %v2807 = vpop.f32.mrf.mxu0
      %2808 = vmatprep.mubr.f32.mxu0 0.0
      %2809 = vmatmul.mubr.f32.gmra.mxu0 %v2620
      %v2810 = vpop.f32.mrf.mxu0
      %v2811 = vadd.f32 0.0, %v2810
      %v2812 = vpop.f32.mrf.mxu0
      %2813 = vmatprep.mubr.f32.mxu0 0.0
      %2814 = vmatmul.mubr.f32.gmra.mxu0 %v2623
      %v2815 = vpop.f32.mrf.mxu0
      %v2816 = vadd.f32 0.0, %v2815
      %v2817 = vpop.f32.mrf.mxu0
      %2818 = vmatprep.mubr.f32.mxu0 0.0
      %2819 = vmatmul.mubr.f32.gmra.mxu0 %v2626
      %v2820 = vpop.f32.mrf.mxu0
      %v2821 = vadd.f32 0.0, %v2820
      %v2822 = vpop.f32.mrf.mxu0
      %2823 = vmatprep.mubr.f32.mxu0 0.0
      %2824 = vmatmul.mubr.f32.gmra.mxu0 %v2629
      %v2825 = vpop.f32.mrf.mxu0
      %v2826 = vadd.f32 0.0, %v2825
      %v2827 = vpop.f32.mrf.mxu0
      %2828 = vmatprep.mubr.f32.mxu0 0.0
      %2829 = vmatmul.mubr.f32.gmra.mxu0 %v2632
      %v2830 = vpop.f32.mrf.mxu0
      %v2831 = vadd.f32 0.0, %v2830
      %v2832 = vpop.f32.mrf.mxu0
      %2833 = vmatprep.mubr.f32.mxu0 0.0
      %2834 = vmatmul.mubr.f32.gmra.mxu0 %v2635
      %v2835 = vpop.f32.mrf.mxu0
      %v2836 = vadd.f32 0.0, %v2835
      %v2837 = vpop.f32.mrf.mxu0
      %2838 = vmatprep.mubr.f32.mxu0 0.0
      %2839 = vmatmul.mubr.f32.gmra.mxu0 %v2638
      %v2840 = vpop.f32.mrf.mxu0
      %v2841 = vadd.f32 0.0, %v2840
      %v2842 = vpop.f32.mrf.mxu0
      %2843 = vmatprep.mubr.f32.mxu0 0.0
      %2844 = vmatmul.mubr.f32.gmra.mxu0 %v2641
      %v2845 = vpop.f32.mrf.mxu0
      %v2846 = vadd.f32 0.0, %v2845
      %v2847 = vpop.f32.mrf.mxu0
      %2848 = vmatprep.mubr.f32.mxu0 0.0
      %2849 = vmatmul.mubr.f32.gmra.mxu0 %v2644
      %v2850 = vpop.f32.mrf.mxu0
      %v2851 = vadd.f32 0.0, %v2850
      %v2852 = vpop.f32.mrf.mxu0
      %2853 = vmatprep.mubr.f32.mxu0 0.0
      %2854 = vmatmul.mubr.f32.gmra.mxu0 %v2647
      %v2855 = vpop.f32.mrf.mxu0
      %v2856 = vadd.f32 0.0, %v2855
      %v2857 = vpop.f32.mrf.mxu0
      %2858 = vmatprep.mubr.f32.mxu0 0.0
      %2859 = vmatmul.mubr.f32.gmra.mxu0 %v2650
      %v2860 = vpop.f32.mrf.mxu0
      %v2861 = vadd.f32 0.0, %v2860
      %v2862 = vpop.f32.mrf.mxu0
      %2863 = vmatprep.mubr.f32.mxu0 0.0
      %2864 = vmatmul.mubr.f32.gmra.mxu0 %v2653
      %v2865 = vpop.f32.mrf.mxu0
      %v2866 = vadd.f32 0.0, %v2865
      %v2867 = vpop.f32.mrf.mxu0
      %2868 = vmatprep.mubr.f32.mxu0 0.0
      %2869 = vmatmul.mubr.f32.gmra.mxu0 %v2656
      %v2870 = vpop.f32.mrf.mxu0
      %v2871 = vadd.f32 0.0, %v2870
      %v2872 = vpop.f32.mrf.mxu0
      %2873 = vmatprep.mubr.f32.mxu0 0.0
      %2874 = vmatmul.mubr.f32.gmra.mxu0 %v2659
      %v2875 = vpop.f32.mrf.mxu0
      %v2876 = vadd.f32 0.0, %v2875
      %v2877 = vpop.f32.mrf.mxu0
      %2878 = vmatprep.mubr.f32.mxu0 0.0
      %2879 = vmatmul.mubr.f32.gmra.mxu0 %v2662
      %v2880 = vpop.f32.mrf.mxu0
      %v2881 = vadd.f32 0.0, %v2880
      %v2882 = vpop.f32.mrf.mxu0
      %2883 = vmatprep.mubr.f32.mxu0 0.0
      %2884 = vmatmul.mubr.f32.gmra.mxu0 %v2665
      %v2885 = vpop.f32.mrf.mxu0
      %v2886 = vadd.f32 0.0, %v2885
      %v2887 = vpop.f32.mrf.mxu0
      %2888 = vmatprep.mubr.f32.mxu0 0.0
      %2889 = vmatmul.mubr.f32.gmra.mxu0 %v2668
      %v2890 = vpop.f32.mrf.mxu0
      %v2891 = vadd.f32 0.0, %v2890
      %v2892 = vpop.f32.mrf.mxu0
      %2893 = vmatprep.mubr.f32.mxu0 0.0
      %2894 = vmatmul.mubr.f32.gmra.mxu0 %v2671
      %v2895 = vpop.f32.mrf.mxu0
      %v2896 = vadd.f32 0.0, %v2895
      %v2897 = vpop.f32.mrf.mxu0
      %2898 = vmatprep.mubr.f32.mxu0 0.0
      %2899 = vmatmul.mubr.f32.gmra.mxu0 %v2674
      %v2900 = vpop.f32.mrf.mxu0
      %v2901 = vadd.f32 0.0, %v2900
      %v2902 = vpop.f32.mrf.mxu0
      %2903 = vdwg.mxu0
      %v2905 = vsel %vm890, %v2539, 0
      %v2908 = vsel %vm890, %v2540, 0
      %v2911 = vsel %vm987, %v2576, 0
      %2913 = vmatprep.subr.mxu0 0.0
      %2914 = vmatpush1.msra.mxu0 0.0
      %2915 = vmatprep.subr.mxu0 0.0
      %2916 = vmatpush1.msra.mxu0 0.0
      %2917 = vmatprep.subr.mxu0 0.0
      %2918 = vmatpush1.msra.mxu0 0.0
      %2919 = vmatprep.subr.mxu0 0.0
      %2920 = vmatpush1.msra.mxu0 0.0
      %2921 = vmatprep.subr.mxu0 0.0
      %2922 = vmatpush1.msra.mxu0 0.0
      %2923 = vmatprep.subr.mxu0 0.0
      %2924 = vmatpush1.msra.mxu0 0.0
      %2925 = vmatprep.subr.mxu0 0.0
      %2926 = vmatpush1.msra.mxu0 0.0
      %2927 = vmatprep.subr.mxu0 0.0
      %2928 = vmatpush1.msra.mxu0 0.0
      %2929 = vmatprep.subr.mxu0 0.0
      %2930 = vmatpush1.msra.mxu0 0.0
      %2931 = vmatprep.subr.mxu0 0.0
      %2932 = vmatpush1.msra.mxu0 0.0
      %2933 = vmatprep.subr.mxu0 0.0
      %2934 = vmatpush1.msra.mxu0 0.0
      %2935 = vmatprep.subr.mxu0 0.0
      %2936 = vmatpush1.msra.mxu0 0.0
      %2937 = vmatprep.subr.mxu0 0.0
      %2938 = vmatpush1.msra.mxu0 0.0
      %2939 = vmatprep.subr.mxu0 0.0
      %2940 = vmatpush1.msra.mxu0 0.0
      %2941 = vmatprep.subr.mxu0 0.0
      %2942 = vmatpush1.msra.mxu0 %v2911
      %2943 = vmatprep.subr.mxu0 0.0
      %2944 = vmatpush1.msra.mxu0 %v2575
      %2945 = vmatprep.subr.mxu0 0.0
      %2946 = vmatpush2.msra.mxu0 0.0
      %2947 = vmatprep.subr.mxu0 0.0
      %2948 = vmatpush2.msra.mxu0 0.0
      %2949 = vmatprep.subr.mxu0 0.0
      %2950 = vmatpush2.msra.mxu0 0.0
      %2951 = vmatprep.subr.mxu0 0.0
      %2952 = vmatpush2.msra.mxu0 0.0
      %2953 = vmatprep.subr.mxu0 0.0
      %2954 = vmatpush2.msra.mxu0 0.0
      %2955 = vmatprep.subr.mxu0 0.0
      %2956 = vmatpush2.msra.mxu0 0.0
      %2957 = vmatprep.subr.mxu0 0.0
      %2958 = vmatpush2.msra.mxu0 0.0
      %2959 = vmatprep.subr.mxu0 0.0
      %2960 = vmatpush2.msra.mxu0 0.0
      %2961 = vmatprep.subr.mxu0 0.0
      %2962 = vmatpush2.msra.mxu0 0.0
      %2963 = vmatprep.subr.mxu0 0.0
      %2964 = vmatpush2.msra.mxu0 0.0
      %2965 = vmatprep.subr.mxu0 0.0
      %2966 = vmatpush2.msra.mxu0 0.0
      %2967 = vmatprep.subr.mxu0 0.0
      %2968 = vmatpush2.msra.mxu0 0.0
      %2969 = vmatprep.subr.mxu0 0.0
      %2970 = vmatpush2.msra.mxu0 0.0
      %2971 = vmatprep.subr.mxu0 0.0
      %2972 = vmatpush2.msra.mxu0 0.0
      %2973 = vmatprep.subr.mxu0 0.0
      %2974 = vmatpush2.msra.mxu0 0.0
      %2975 = vmatprep.subr.mxu0 0.0
      %2976 = vmatpush2.msra.mxu0 0.0
      %2977 = vmatprep.mubr.f32.mxu0 0.0
      %2978 = vmatmul.mubr.f32.gmra.mxu0 %v2905
      %v2979 = vpop.f32.mrf.mxu0
      %v2980 = vadd.f32 %v2746, %v2979
      %v2981 = vpop.f32.mrf.mxu0
      %2982 = vmatprep.mubr.f32.mxu0 0.0
      %2983 = vmatmul.mubr.f32.gmra.mxu0 %v2908
      %v2984 = vpop.f32.mrf.mxu0
      %v2985 = vadd.f32 %v2751, %v2984
      %v2986 = vpop.f32.mrf.mxu0
      %2987 = vmatprep.mubr.f32.mxu0 0.0
      %2988 = vmatmul.mubr.f32.gmra.mxu0 %v2581
      %v2989 = vpop.f32.mrf.mxu0
      %v2990 = vadd.f32 %v2756, %v2989
      %v2991 = vpop.f32.mrf.mxu0
      %2992 = vmatprep.mubr.f32.mxu0 0.0
      %2993 = vmatmul.mubr.f32.gmra.mxu0 %v2584
      %v2994 = vpop.f32.mrf.mxu0
      %v2995 = vadd.f32 %v2761, %v2994
      %v2996 = vpop.f32.mrf.mxu0
      %2997 = vmatprep.mubr.f32.mxu0 0.0
      %2998 = vmatmul.mubr.f32.gmra.mxu0 %v2587
      %v2999 = vpop.f32.mrf.mxu0
      %v3000 = vadd.f32 %v2766, %v2999
      %v3001 = vpop.f32.mrf.mxu0
      %3002 = vmatprep.mubr.f32.mxu0 0.0
      %3003 = vmatmul.mubr.f32.gmra.mxu0 %v2590
      %v3004 = vpop.f32.mrf.mxu0
      %v3005 = vadd.f32 %v2771, %v3004
      %v3006 = vpop.f32.mrf.mxu0
      %3007 = vmatprep.mubr.f32.mxu0 0.0
      %3008 = vmatmul.mubr.f32.gmra.mxu0 %v2593
      %v3009 = vpop.f32.mrf.mxu0
      %v3010 = vadd.f32 %v2776, %v3009
      %v3011 = vpop.f32.mrf.mxu0
      %3012 = vmatprep.mubr.f32.mxu0 0.0
      %3013 = vmatmul.mubr.f32.gmra.mxu0 %v2596
      %v3014 = vpop.f32.mrf.mxu0
      %v3015 = vadd.f32 %v2781, %v3014
      %v3016 = vpop.f32.mrf.mxu0
      %3017 = vmatprep.mubr.f32.mxu0 0.0
      %3018 = vmatmul.mubr.f32.gmra.mxu0 %v2599
      %v3019 = vpop.f32.mrf.mxu0
      %v3020 = vadd.f32 %v2786, %v3019
      %v3021 = vpop.f32.mrf.mxu0
      %3022 = vmatprep.mubr.f32.mxu0 0.0
      %3023 = vmatmul.mubr.f32.gmra.mxu0 %v2602
      %v3024 = vpop.f32.mrf.mxu0
      %v3025 = vadd.f32 %v2791, %v3024
      %v3026 = vpop.f32.mrf.mxu0
      %3027 = vmatprep.mubr.f32.mxu0 0.0
      %3028 = vmatmul.mubr.f32.gmra.mxu0 %v2605
      %v3029 = vpop.f32.mrf.mxu0
      %v3030 = vadd.f32 %v2796, %v3029
      %v3031 = vpop.f32.mrf.mxu0
      %3032 = vmatprep.mubr.f32.mxu0 0.0
      %3033 = vmatmul.mubr.f32.gmra.mxu0 %v2608
      %v3034 = vpop.f32.mrf.mxu0
      %v3035 = vadd.f32 %v2801, %v3034
      %v3036 = vpop.f32.mrf.mxu0
      %3037 = vmatprep.mubr.f32.mxu0 0.0
      %3038 = vmatmul.mubr.f32.gmra.mxu0 %v2611
      %v3039 = vpop.f32.mrf.mxu0
      %v3040 = vadd.f32 %v2806, %v3039
      %v3041 = vpop.f32.mrf.mxu0
      %3042 = vmatprep.mubr.f32.mxu0 0.0
      %3043 = vmatmul.mubr.f32.gmra.mxu0 %v2614
      %v3044 = vpop.f32.mrf.mxu0
      %v3045 = vadd.f32 %v2811, %v3044
      %v3046 = vpop.f32.mrf.mxu0
      %3047 = vmatprep.mubr.f32.mxu0 0.0
      %3048 = vmatmul.mubr.f32.gmra.mxu0 %v2617
      %v3049 = vpop.f32.mrf.mxu0
      %v3050 = vadd.f32 %v2816, %v3049
      %v3051 = vpop.f32.mrf.mxu0
      %3052 = vmatprep.mubr.f32.mxu0 0.0
      %3053 = vmatmul.mubr.f32.gmra.mxu0 %v2620
      %v3054 = vpop.f32.mrf.mxu0
      %v3055 = vadd.f32 %v2821, %v3054
      %v3056 = vpop.f32.mrf.mxu0
      %3057 = vmatprep.mubr.f32.mxu0 0.0
      %3058 = vmatmul.mubr.f32.gmra.mxu0 %v2623
      %v3059 = vpop.f32.mrf.mxu0
      %v3060 = vadd.f32 %v2826, %v3059
      %v3061 = vpop.f32.mrf.mxu0
      %3062 = vmatprep.mubr.f32.mxu0 0.0
      %3063 = vmatmul.mubr.f32.gmra.mxu0 %v2626
      %v3064 = vpop.f32.mrf.mxu0
      %v3065 = vadd.f32 %v2831, %v3064
      %v3066 = vpop.f32.mrf.mxu0
      %3067 = vmatprep.mubr.f32.mxu0 0.0
      %3068 = vmatmul.mubr.f32.gmra.mxu0 %v2629
      %v3069 = vpop.f32.mrf.mxu0
      %v3070 = vadd.f32 %v2836, %v3069
      %v3071 = vpop.f32.mrf.mxu0
      %3072 = vmatprep.mubr.f32.mxu0 0.0
      %3073 = vmatmul.mubr.f32.gmra.mxu0 %v2632
      %v3074 = vpop.f32.mrf.mxu0
      %v3075 = vadd.f32 %v2841, %v3074
      %v3076 = vpop.f32.mrf.mxu0
      %3077 = vmatprep.mubr.f32.mxu0 0.0
      %3078 = vmatmul.mubr.f32.gmra.mxu0 %v2635
      %v3079 = vpop.f32.mrf.mxu0
      %v3080 = vadd.f32 %v2846, %v3079
      %v3081 = vpop.f32.mrf.mxu0
      %3082 = vmatprep.mubr.f32.mxu0 0.0
      %3083 = vmatmul.mubr.f32.gmra.mxu0 %v2638
      %v3084 = vpop.f32.mrf.mxu0
      %v3085 = vadd.f32 %v2851, %v3084
      %v3086 = vpop.f32.mrf.mxu0
      %3087 = vmatprep.mubr.f32.mxu0 0.0
      %3088 = vmatmul.mubr.f32.gmra.mxu0 %v2641
      %v3089 = vpop.f32.mrf.mxu0
      %v3090 = vadd.f32 %v2856, %v3089
      %v3091 = vpop.f32.mrf.mxu0
      %3092 = vmatprep.mubr.f32.mxu0 0.0
      %3093 = vmatmul.mubr.f32.gmra.mxu0 %v2644
      %v3094 = vpop.f32.mrf.mxu0
      %v3095 = vadd.f32 %v2861, %v3094
      %v3096 = vpop.f32.mrf.mxu0
      %3097 = vmatprep.mubr.f32.mxu0 0.0
      %3098 = vmatmul.mubr.f32.gmra.mxu0 %v2647
      %v3099 = vpop.f32.mrf.mxu0
      %v3100 = vadd.f32 %v2866, %v3099
      %v3101 = vpop.f32.mrf.mxu0
      %3102 = vmatprep.mubr.f32.mxu0 0.0
      %3103 = vmatmul.mubr.f32.gmra.mxu0 %v2650
      %v3104 = vpop.f32.mrf.mxu0
      %v3105 = vadd.f32 %v2871, %v3104
      %v3106 = vpop.f32.mrf.mxu0
      %3107 = vmatprep.mubr.f32.mxu0 0.0
      %3108 = vmatmul.mubr.f32.gmra.mxu0 %v2653
      %v3109 = vpop.f32.mrf.mxu0
      %v3110 = vadd.f32 %v2876, %v3109
      %v3111 = vpop.f32.mrf.mxu0
      %3112 = vmatprep.mubr.f32.mxu0 0.0
      %3113 = vmatmul.mubr.f32.gmra.mxu0 %v2656
      %v3114 = vpop.f32.mrf.mxu0
      %v3115 = vadd.f32 %v2881, %v3114
      %v3116 = vpop.f32.mrf.mxu0
      %3117 = vmatprep.mubr.f32.mxu0 0.0
      %3118 = vmatmul.mubr.f32.gmra.mxu0 %v2659
      %v3119 = vpop.f32.mrf.mxu0
      %v3120 = vadd.f32 %v2886, %v3119
      %v3121 = vpop.f32.mrf.mxu0
      %3122 = vmatprep.mubr.f32.mxu0 0.0
      %3123 = vmatmul.mubr.f32.gmra.mxu0 %v2662
      %v3124 = vpop.f32.mrf.mxu0
      %v3125 = vadd.f32 %v2891, %v3124
      %v3126 = vpop.f32.mrf.mxu0
      %3127 = vmatprep.mubr.f32.mxu0 0.0
      %3128 = vmatmul.mubr.f32.gmra.mxu0 %v2665
      %v3129 = vpop.f32.mrf.mxu0
      %v3130 = vadd.f32 %v2896, %v3129
      %v3131 = vpop.f32.mrf.mxu0
      %3132 = vmatprep.mubr.f32.mxu0 0.0
      %3133 = vmatmul.mubr.f32.gmra.mxu0 %v2668
      %v3134 = vpop.f32.mrf.mxu0
      %v3135 = vadd.f32 %v2901, %v3134
      %v3136 = vpop.f32.mrf.mxu0
      %3137 = vdwg.mxu0
      %s3138 = scalar_lea.vmem %s4, 32
      %v3139 = vld [vmem:[%s3138] sm:$0xff]
      %v3140 = vld [vmem:[%s3138 + $0x8] sm:$0xf]
      %v3142 = vsel %vm890, %v2573, 0
      %v3145 = vsel %vm890, %v2574, 0
      %v3148 = vsel %vm987, %v3140, 0
      %3150 = vmatprep.subr.mxu0 0.0
      %3151 = vmatpush1.msra.mxu0 0.0
      %3152 = vmatprep.subr.mxu0 0.0
      %3153 = vmatpush1.msra.mxu0 0.0
      %3154 = vmatprep.subr.mxu0 0.0
      %3155 = vmatpush1.msra.mxu0 0.0
      %3156 = vmatprep.subr.mxu0 0.0
      %3157 = vmatpush1.msra.mxu0 0.0
      %3158 = vmatprep.subr.mxu0 0.0
      %3159 = vmatpush1.msra.mxu0 0.0
      %3160 = vmatprep.subr.mxu0 0.0
      %3161 = vmatpush1.msra.mxu0 0.0
      %3162 = vmatprep.subr.mxu0 0.0
      %3163 = vmatpush1.msra.mxu0 0.0
      %3164 = vmatprep.subr.mxu0 0.0
      %3165 = vmatpush1.msra.mxu0 0.0
      %3166 = vmatprep.subr.mxu0 0.0
      %3167 = vmatpush1.msra.mxu0 0.0
      %3168 = vmatprep.subr.mxu0 0.0
      %3169 = vmatpush1.msra.mxu0 0.0
      %3170 = vmatprep.subr.mxu0 0.0
      %3171 = vmatpush1.msra.mxu0 0.0
      %3172 = vmatprep.subr.mxu0 0.0
      %3173 = vmatpush1.msra.mxu0 0.0
      %3174 = vmatprep.subr.mxu0 0.0
      %3175 = vmatpush1.msra.mxu0 0.0
      %3176 = vmatprep.subr.mxu0 0.0
      %3177 = vmatpush1.msra.mxu0 0.0
      %3178 = vmatprep.subr.mxu0 0.0
      %3179 = vmatpush1.msra.mxu0 %v3148
      %3180 = vmatprep.subr.mxu0 0.0
      %3181 = vmatpush1.msra.mxu0 %v3139
      %3182 = vmatprep.subr.mxu0 0.0
      %3183 = vmatpush2.msra.mxu0 0.0
      %3184 = vmatprep.subr.mxu0 0.0
      %3185 = vmatpush2.msra.mxu0 0.0
      %3186 = vmatprep.subr.mxu0 0.0
      %3187 = vmatpush2.msra.mxu0 0.0
      %3188 = vmatprep.subr.mxu0 0.0
      %3189 = vmatpush2.msra.mxu0 0.0
      %3190 = vmatprep.subr.mxu0 0.0
      %3191 = vmatpush2.msra.mxu0 0.0
      %3192 = vmatprep.subr.mxu0 0.0
      %3193 = vmatpush2.msra.mxu0 0.0
      %3194 = vmatprep.subr.mxu0 0.0
      %3195 = vmatpush2.msra.mxu0 0.0
      %3196 = vmatprep.subr.mxu0 0.0
      %3197 = vmatpush2.msra.mxu0 0.0
      %3198 = vmatprep.subr.mxu0 0.0
      %3199 = vmatpush2.msra.mxu0 0.0
      %3200 = vmatprep.subr.mxu0 0.0
      %3201 = vmatpush2.msra.mxu0 0.0
      %3202 = vmatprep.subr.mxu0 0.0
      %3203 = vmatpush2.msra.mxu0 0.0
      %3204 = vmatprep.subr.mxu0 0.0
      %3205 = vmatpush2.msra.mxu0 0.0
      %3206 = vmatprep.subr.mxu0 0.0
      %3207 = vmatpush2.msra.mxu0 0.0
      %3208 = vmatprep.subr.mxu0 0.0
      %3209 = vmatpush2.msra.mxu0 0.0
      %3210 = vmatprep.subr.mxu0 0.0
      %3211 = vmatpush2.msra.mxu0 0.0
      %3212 = vmatprep.subr.mxu0 0.0
      %3213 = vmatpush2.msra.mxu0 0.0
      %3214 = vmatprep.mubr.f32.mxu0 0.0
      %3215 = vmatmul.mubr.f32.gmra.mxu0 %v2587
      %v3216 = vpop.f32.mrf.mxu0
      %v3217 = vadd.f32 0.0, %v3216
      %v3218 = vpop.f32.mrf.mxu0
      %3219 = vmatprep.mubr.f32.mxu0 0.0
      %3220 = vmatmul.mubr.f32.gmra.mxu0 %v2590
      %v3221 = vpop.f32.mrf.mxu0
      %v3222 = vadd.f32 0.0, %v3221
      %v3223 = vpop.f32.mrf.mxu0
      %3224 = vmatprep.mubr.f32.mxu0 0.0
      %3225 = vmatmul.mubr.f32.gmra.mxu0 %v2593
      %v3226 = vpop.f32.mrf.mxu0
      %v3227 = vadd.f32 0.0, %v3226
      %v3228 = vpop.f32.mrf.mxu0
      %3229 = vmatprep.mubr.f32.mxu0 0.0
      %3230 = vmatmul.mubr.f32.gmra.mxu0 %v2596
      %v3231 = vpop.f32.mrf.mxu0
      %v3232 = vadd.f32 0.0, %v3231
      %v3233 = vpop.f32.mrf.mxu0
      %3234 = vmatprep.mubr.f32.mxu0 0.0
      %3235 = vmatmul.mubr.f32.gmra.mxu0 %v2599
      %v3236 = vpop.f32.mrf.mxu0
      %v3237 = vadd.f32 0.0, %v3236
      %v3238 = vpop.f32.mrf.mxu0
      %3239 = vmatprep.mubr.f32.mxu0 0.0
      %3240 = vmatmul.mubr.f32.gmra.mxu0 %v2602
      %v3241 = vpop.f32.mrf.mxu0
      %v3242 = vadd.f32 0.0, %v3241
      %v3243 = vpop.f32.mrf.mxu0
      %3244 = vmatprep.mubr.f32.mxu0 0.0
      %3245 = vmatmul.mubr.f32.gmra.mxu0 %v2605
      %v3246 = vpop.f32.mrf.mxu0
      %v3247 = vadd.f32 0.0, %v3246
      %v3248 = vpop.f32.mrf.mxu0
      %3249 = vmatprep.mubr.f32.mxu0 0.0
      %3250 = vmatmul.mubr.f32.gmra.mxu0 %v2608
      %v3251 = vpop.f32.mrf.mxu0
      %v3252 = vadd.f32 0.0, %v3251
      %v3253 = vpop.f32.mrf.mxu0
      %3254 = vmatprep.mubr.f32.mxu0 0.0
      %3255 = vmatmul.mubr.f32.gmra.mxu0 %v2611
      %v3256 = vpop.f32.mrf.mxu0
      %v3257 = vadd.f32 0.0, %v3256
      %v3258 = vpop.f32.mrf.mxu0
      %3259 = vmatprep.mubr.f32.mxu0 0.0
      %3260 = vmatmul.mubr.f32.gmra.mxu0 %v2614
      %v3261 = vpop.f32.mrf.mxu0
      %v3262 = vadd.f32 0.0, %v3261
      %v3263 = vpop.f32.mrf.mxu0
      %3264 = vmatprep.mubr.f32.mxu0 0.0
      %3265 = vmatmul.mubr.f32.gmra.mxu0 %v2617
      %v3266 = vpop.f32.mrf.mxu0
      %v3267 = vadd.f32 0.0, %v3266
      %v3268 = vpop.f32.mrf.mxu0
      %3269 = vmatprep.mubr.f32.mxu0 0.0
      %3270 = vmatmul.mubr.f32.gmra.mxu0 %v2620
      %v3271 = vpop.f32.mrf.mxu0
      %v3272 = vadd.f32 0.0, %v3271
      %v3273 = vpop.f32.mrf.mxu0
      %3274 = vmatprep.mubr.f32.mxu0 0.0
      %3275 = vmatmul.mubr.f32.gmra.mxu0 %v2623
      %v3276 = vpop.f32.mrf.mxu0
      %v3277 = vadd.f32 0.0, %v3276
      %v3278 = vpop.f32.mrf.mxu0
      %3279 = vmatprep.mubr.f32.mxu0 0.0
      %3280 = vmatmul.mubr.f32.gmra.mxu0 %v2626
      %v3281 = vpop.f32.mrf.mxu0
      %v3282 = vadd.f32 0.0, %v3281
      %v3283 = vpop.f32.mrf.mxu0
      %3284 = vmatprep.mubr.f32.mxu0 0.0
      %3285 = vmatmul.mubr.f32.gmra.mxu0 %v2629
      %v3286 = vpop.f32.mrf.mxu0
      %v3287 = vadd.f32 0.0, %v3286
      %v3288 = vpop.f32.mrf.mxu0
      %3289 = vmatprep.mubr.f32.mxu0 0.0
      %3290 = vmatmul.mubr.f32.gmra.mxu0 %v2632
      %v3291 = vpop.f32.mrf.mxu0
      %v3292 = vadd.f32 0.0, %v3291
      %v3293 = vpop.f32.mrf.mxu0
      %3294 = vmatprep.mubr.f32.mxu0 0.0
      %3295 = vmatmul.mubr.f32.gmra.mxu0 %v2635
      %v3296 = vpop.f32.mrf.mxu0
      %v3297 = vadd.f32 0.0, %v3296
      %v3298 = vpop.f32.mrf.mxu0
      %3299 = vmatprep.mubr.f32.mxu0 0.0
      %3300 = vmatmul.mubr.f32.gmra.mxu0 %v2638
      %v3301 = vpop.f32.mrf.mxu0
      %v3302 = vadd.f32 0.0, %v3301
      %v3303 = vpop.f32.mrf.mxu0
      %3304 = vmatprep.mubr.f32.mxu0 0.0
      %3305 = vmatmul.mubr.f32.gmra.mxu0 %v2641
      %v3306 = vpop.f32.mrf.mxu0
      %v3307 = vadd.f32 0.0, %v3306
      %v3308 = vpop.f32.mrf.mxu0
      %3309 = vmatprep.mubr.f32.mxu0 0.0
      %3310 = vmatmul.mubr.f32.gmra.mxu0 %v2644
      %v3311 = vpop.f32.mrf.mxu0
      %v3312 = vadd.f32 0.0, %v3311
      %v3313 = vpop.f32.mrf.mxu0
      %3314 = vmatprep.mubr.f32.mxu0 0.0
      %3315 = vmatmul.mubr.f32.gmra.mxu0 %v2647
      %v3316 = vpop.f32.mrf.mxu0
      %v3317 = vadd.f32 0.0, %v3316
      %v3318 = vpop.f32.mrf.mxu0
      %3319 = vmatprep.mubr.f32.mxu0 0.0
      %3320 = vmatmul.mubr.f32.gmra.mxu0 %v2650
      %v3321 = vpop.f32.mrf.mxu0
      %v3322 = vadd.f32 0.0, %v3321
      %v3323 = vpop.f32.mrf.mxu0
      %3324 = vmatprep.mubr.f32.mxu0 0.0
      %3325 = vmatmul.mubr.f32.gmra.mxu0 %v2653
      %v3326 = vpop.f32.mrf.mxu0
      %v3327 = vadd.f32 0.0, %v3326
      %v3328 = vpop.f32.mrf.mxu0
      %3329 = vmatprep.mubr.f32.mxu0 0.0
      %3330 = vmatmul.mubr.f32.gmra.mxu0 %v2656
      %v3331 = vpop.f32.mrf.mxu0
      %v3332 = vadd.f32 0.0, %v3331
      %v3333 = vpop.f32.mrf.mxu0
      %3334 = vmatprep.mubr.f32.mxu0 0.0
      %3335 = vmatmul.mubr.f32.gmra.mxu0 %v2659
      %v3336 = vpop.f32.mrf.mxu0
      %v3337 = vadd.f32 0.0, %v3336
      %v3338 = vpop.f32.mrf.mxu0
      %3339 = vmatprep.mubr.f32.mxu0 0.0
      %3340 = vmatmul.mubr.f32.gmra.mxu0 %v2662
      %v3341 = vpop.f32.mrf.mxu0
      %v3342 = vadd.f32 0.0, %v3341
      %v3343 = vpop.f32.mrf.mxu0
      %3344 = vmatprep.mubr.f32.mxu0 0.0
      %3345 = vmatmul.mubr.f32.gmra.mxu0 %v2665
      %v3346 = vpop.f32.mrf.mxu0
      %v3347 = vadd.f32 0.0, %v3346
      %v3348 = vpop.f32.mrf.mxu0
      %3349 = vmatprep.mubr.f32.mxu0 0.0
      %3350 = vmatmul.mubr.f32.gmra.mxu0 %v2668
      %v3351 = vpop.f32.mrf.mxu0
      %v3352 = vadd.f32 0.0, %v3351
      %v3353 = vpop.f32.mrf.mxu0
      %3354 = vmatprep.mubr.f32.mxu0 0.0
      %3355 = vmatmul.mubr.f32.gmra.mxu0 %v2671
      %v3356 = vpop.f32.mrf.mxu0
      %v3357 = vadd.f32 0.0, %v3356
      %v3358 = vpop.f32.mrf.mxu0
      %3359 = vmatprep.mubr.f32.mxu0 0.0
      %3360 = vmatmul.mubr.f32.gmra.mxu0 %v2674
      %v3361 = vpop.f32.mrf.mxu0
      %v3362 = vadd.f32 0.0, %v3361
      %v3363 = vpop.f32.mrf.mxu0
      %3364 = vmatprep.mubr.f32.mxu0 0.0
      %3365 = vmatmul.mubr.f32.gmra.mxu0 %v3142
      %v3366 = vpop.f32.mrf.mxu0
      %v3367 = vadd.f32 0.0, %v3366
      %v3368 = vpop.f32.mrf.mxu0
      %3369 = vmatprep.mubr.f32.mxu0 0.0
      %3370 = vmatmul.mubr.f32.gmra.mxu0 %v3145
      %v3371 = vpop.f32.mrf.mxu0
      %v3372 = vadd.f32 0.0, %v3371
      %v3373 = vpop.f32.mrf.mxu0
      %3374 = vdwg.mxu0
      %v3375 = vadd.f32 %v2980, %v3217
      %v3376 = vadd.f32 %v2985, %v3222
      %v3377 = vadd.f32 %v2990, %v3227
      %v3378 = vadd.f32 %v2995, %v3232
      %v3379 = vadd.f32 %v3000, %v3237
      %v3380 = vadd.f32 %v3005, %v3242
      %v3381 = vadd.f32 %v3010, %v3247
      %v3382 = vadd.f32 %v3015, %v3252
      %v3383 = vadd.f32 %v3020, %v3257
      %v3384 = vadd.f32 %v3025, %v3262
      %v3385 = vadd.f32 %v3030, %v3267
      %v3386 = vadd.f32 %v3035, %v3272
      %v3387 = vadd.f32 %v3040, %v3277
      %v3388 = vadd.f32 %v3045, %v3282
      %v3389 = vadd.f32 %v3050, %v3287
      %v3390 = vadd.f32 %v3055, %v3292
      %v3391 = vadd.f32 %v3060, %v3297
      %v3392 = vadd.f32 %v3065, %v3302
      %v3393 = vadd.f32 %v3070, %v3307
      %v3394 = vadd.f32 %v3075, %v3312
      %v3395 = vadd.f32 %v3080, %v3317
      %v3396 = vadd.f32 %v3085, %v3322
      %v3397 = vadd.f32 %v3090, %v3327
      %v3398 = vadd.f32 %v3095, %v3332
      %v3399 = vadd.f32 %v3100, %v3337
      %v3400 = vadd.f32 %v3105, %v3342
      %v3401 = vadd.f32 %v3110, %v3347
      %v3402 = vadd.f32 %v3115, %v3352
      %v3403 = vadd.f32 %v3120, %v3357
      %v3404 = vadd.f32 %v3125, %v3362
      %v3405 = vadd.f32 %v3130, %v3367
      %v3406 = vadd.f32 %v3135, %v3372
      %v3407 = vsel %vm312, %v3375, 0.0
      %v3408 = vsel %vm312, %v3376, 0.0
      %v3409 = vadd.f32 %v3407, %v3408
      %v3410 = vsel %vm312, %v3377, 0.0
      %v3411 = vadd.f32 %v3409, %v3410
      %v3412 = vsel %vm312, %v3378, 0.0
      %v3413 = vadd.f32 %v3411, %v3412
      %v3414 = vsel %vm312, %v3379, 0.0
      %v3415 = vadd.f32 %v3413, %v3414
      %v3416 = vsel %vm312, %v3380, 0.0
      %v3417 = vadd.f32 %v3415, %v3416
      %v3418 = vsel %vm312, %v3381, 0.0
      %v3419 = vadd.f32 %v3417, %v3418
      %v3420 = vsel %vm312, %v3382, 0.0
      %v3421 = vadd.f32 %v3419, %v3420
      %v3422 = vsel %vm312, %v3383, 0.0
      %v3423 = vadd.f32 %v3421, %v3422
      %v3424 = vsel %vm312, %v3384, 0.0
      %v3425 = vadd.f32 %v3423, %v3424
      %v3426 = vsel %vm312, %v3385, 0.0
      %v3427 = vadd.f32 %v3425, %v3426
      %v3428 = vsel %vm312, %v3386, 0.0
      %v3429 = vadd.f32 %v3427, %v3428
      %v3430 = vsel %vm312, %v3387, 0.0
      %v3431 = vadd.f32 %v3429, %v3430
      %v3432 = vsel %vm312, %v3388, 0.0
      %v3433 = vadd.f32 %v3431, %v3432
      %v3434 = vsel %vm312, %v3389, 0.0
      %v3435 = vadd.f32 %v3433, %v3434
      %v3436 = vsel %vm312, %v3390, 0.0
      %v3437 = vadd.f32 %v3435, %v3436
      %v3438 = vsel %vm312, %v3391, 0.0
      %v3439 = vadd.f32 %v3437, %v3438
      %v3440 = vsel %vm312, %v3392, 0.0
      %v3441 = vadd.f32 %v3439, %v3440
      %v3442 = vsel %vm312, %v3393, 0.0
      %v3443 = vadd.f32 %v3441, %v3442
      %v3444 = vsel %vm312, %v3394, 0.0
      %v3445 = vadd.f32 %v3443, %v3444
      %v3446 = vsel %vm312, %v3395, 0.0
      %v3447 = vadd.f32 %v3445, %v3446
      %v3448 = vsel %vm312, %v3396, 0.0
      %v3449 = vadd.f32 %v3447, %v3448
      %v3450 = vsel %vm312, %v3397, 0.0
      %v3451 = vadd.f32 %v3449, %v3450
      %v3452 = vsel %vm312, %v3398, 0.0
      %v3453 = vadd.f32 %v3451, %v3452
      %v3454 = vsel %vm312, %v3399, 0.0
      %v3455 = vadd.f32 %v3453, %v3454
      %v3456 = vsel %vm312, %v3400, 0.0
      %v3457 = vadd.f32 %v3455, %v3456
      %v3458 = vsel %vm312, %v3401, 0.0
      %v3459 = vadd.f32 %v3457, %v3458
      %v3460 = vsel %vm312, %v3402, 0.0
      %v3461 = vadd.f32 %v3459, %v3460
      %v3462 = vsel %vm312, %v3403, 0.0
      %v3463 = vadd.f32 %v3461, %v3462
      %v3464 = vsel %vm312, %v3404, 0.0
      %v3465 = vadd.f32 %v3463, %v3464
      %v3466 = vsel %vm312, %v3405, 0.0
      %v3467 = vadd.f32 %v3465, %v3466
      %v3468 = vsel %vm312, %v3406, 0.0
      %v3469 = vadd.f32 %v3467, %v3468
      %v3470 = vrot.slane %v3469, 4
      %v3471 = vadd.f32 %v3469, %v3470
      %v3472 = vrot.slane %v3471, 2
      %v3473 = vadd.f32 %v3471, %v3472
      %v3474 = vrot.slane %v3473, 1
      %v3475 = vadd.f32 %v3473, %v3474
      %v3476 = vmul.f32 %v3375, %v3375
      %v3477 = vmul.f32 %v3376, %v3376
      %v3478 = vmul.f32 %v3377, %v3377
      %v3479 = vmul.f32 %v3378, %v3378
      %v3480 = vmul.f32 %v3379, %v3379
      %v3481 = vmul.f32 %v3380, %v3380
      %v3482 = vmul.f32 %v3381, %v3381
      %v3483 = vmul.f32 %v3382, %v3382
      %v3484 = vmul.f32 %v3383, %v3383
      %v3485 = vmul.f32 %v3384, %v3384
      %v3486 = vmul.f32 %v3385, %v3385
      %v3487 = vmul.f32 %v3386, %v3386
      %v3488 = vmul.f32 %v3387, %v3387
      %v3489 = vmul.f32 %v3388, %v3388
      %v3490 = vmul.f32 %v3389, %v3389
      %v3491 = vmul.f32 %v3390, %v3390
      %v3492 = vmul.f32 %v3391, %v3391
      %v3493 = vmul.f32 %v3392, %v3392
      %v3494 = vmul.f32 %v3393, %v3393
      %v3495 = vmul.f32 %v3394, %v3394
      %v3496 = vmul.f32 %v3395, %v3395
      %v3497 = vmul.f32 %v3396, %v3396
      %v3498 = vmul.f32 %v3397, %v3397
      %v3499 = vmul.f32 %v3398, %v3398
      %v3500 = vmul.f32 %v3399, %v3399
      %v3501 = vmul.f32 %v3400, %v3400
      %v3502 = vmul.f32 %v3401, %v3401
      %v3503 = vmul.f32 %v3402, %v3402
      %v3504 = vmul.f32 %v3403, %v3403
      %v3505 = vmul.f32 %v3404, %v3404
      %v3506 = vmul.f32 %v3405, %v3405
      %v3507 = vmul.f32 %v3406, %v3406
      %v3508 = vsel %vm312, %v3476, 0.0
      %v3509 = vsel %vm312, %v3477, 0.0
      %v3510 = vadd.f32 %v3508, %v3509
      %v3511 = vsel %vm312, %v3478, 0.0
      %v3512 = vadd.f32 %v3510, %v3511
      %v3513 = vsel %vm312, %v3479, 0.0
      %v3514 = vadd.f32 %v3512, %v3513
      %v3515 = vsel %vm312, %v3480, 0.0
      %v3516 = vadd.f32 %v3514, %v3515
      %v3517 = vsel %vm312, %v3481, 0.0
      %v3518 = vadd.f32 %v3516, %v3517
      %v3519 = vsel %vm312, %v3482, 0.0
      %v3520 = vadd.f32 %v3518, %v3519
      %v3521 = vsel %vm312, %v3483, 0.0
      %v3522 = vadd.f32 %v3520, %v3521
      %v3523 = vsel %vm312, %v3484, 0.0
      %v3524 = vadd.f32 %v3522, %v3523
      %v3525 = vsel %vm312, %v3485, 0.0
      %v3526 = vadd.f32 %v3524, %v3525
      %v3527 = vsel %vm312, %v3486, 0.0
      %v3528 = vadd.f32 %v3526, %v3527
      %v3529 = vsel %vm312, %v3487, 0.0
      %v3530 = vadd.f32 %v3528, %v3529
      %v3531 = vsel %vm312, %v3488, 0.0
      %v3532 = vadd.f32 %v3530, %v3531
      %v3533 = vsel %vm312, %v3489, 0.0
      %v3534 = vadd.f32 %v3532, %v3533
      %v3535 = vsel %vm312, %v3490, 0.0
      %v3536 = vadd.f32 %v3534, %v3535
      %v3537 = vsel %vm312, %v3491, 0.0
      %v3538 = vadd.f32 %v3536, %v3537
      %v3539 = vsel %vm312, %v3492, 0.0
      %v3540 = vadd.f32 %v3538, %v3539
      %v3541 = vsel %vm312, %v3493, 0.0
      %v3542 = vadd.f32 %v3540, %v3541
      %v3543 = vsel %vm312, %v3494, 0.0
      %v3544 = vadd.f32 %v3542, %v3543
      %v3545 = vsel %vm312, %v3495, 0.0
      %v3546 = vadd.f32 %v3544, %v3545
      %v3547 = vsel %vm312, %v3496, 0.0
      %v3548 = vadd.f32 %v3546, %v3547
      %v3549 = vsel %vm312, %v3497, 0.0
      %v3550 = vadd.f32 %v3548, %v3549
      %v3551 = vsel %vm312, %v3498, 0.0
      %v3552 = vadd.f32 %v3550, %v3551
      %v3553 = vsel %vm312, %v3499, 0.0
      %v3554 = vadd.f32 %v3552, %v3553
      %v3555 = vsel %vm312, %v3500, 0.0
      %v3556 = vadd.f32 %v3554, %v3555
      %v3557 = vsel %vm312, %v3501, 0.0
      %v3558 = vadd.f32 %v3556, %v3557
      %v3559 = vsel %vm312, %v3502, 0.0
      %v3560 = vadd.f32 %v3558, %v3559
      %v3561 = vsel %vm312, %v3503, 0.0
      %v3562 = vadd.f32 %v3560, %v3561
      %v3563 = vsel %vm312, %v3504, 0.0
      %v3564 = vadd.f32 %v3562, %v3563
      %v3565 = vsel %vm312, %v3505, 0.0
      %v3566 = vadd.f32 %v3564, %v3565
      %v3567 = vsel %vm312, %v3506, 0.0
      %v3568 = vadd.f32 %v3566, %v3567
      %v3569 = vsel %vm312, %v3507, 0.0
      %v3570 = vadd.f32 %v3568, %v3569
      %v3571 = vrot.slane %v3570, 4
      %v3572 = vadd.f32 %v3570, %v3571
      %v3573 = vrot.slane %v3572, 2
      %v3574 = vadd.f32 %v3572, %v3573
      %v3575 = vrot.slane %v3574, 1
      %v3576 = vadd.f32 %v3574, %v3575
      %v3577 = vmul.f32 %v3475, 0.00390625
      %v3578 = vmul.f32 %v3576, 0.00390625
      %v3579 = vmul.f32 %v3577, %v3577
      %v3580 = vsub.f32 %v3578, %v3579
      %v3581 = vmax.f32 %v3580, 0.0
      %v3582 = vld [vmem:[%s5] sm:$0x1]
      %v3583 = vadd.f32 %v3581, 1e-05
      %v3584 = vrsqrt.pop %v3583
      %v3585 = vmul.f32 %v3582, %v3584
      %v3586 = vld [vmem:[%s6] sm:$0x1]
      %v3587 = vmul.f32 %v3577, %v3585
      %v3588 = vsub.f32 %v3586, %v3587
      %v3590 = vlaneseq
      %v3591 = vshrl.u32 %v3590, 7
      %v3592 = vsub.s32 0, %v3591
      %v3593 = vrot.slane %v3585, %v3592
      %v3595 = vmul.f32 %v3375, %v3593
      %v3596 = vmul.f32 %v3376, %v3593
      %v3597 = vmul.f32 %v3377, %v3593
      %v3598 = vmul.f32 %v3378, %v3593
      %v3599 = vmul.f32 %v3379, %v3593
      %v3600 = vmul.f32 %v3380, %v3593
      %v3601 = vmul.f32 %v3381, %v3593
      %v3602 = vmul.f32 %v3382, %v3593
      %v3603 = vmul.f32 %v3383, %v3593
      %v3604 = vmul.f32 %v3384, %v3593
      %v3605 = vmul.f32 %v3385, %v3593
      %v3606 = vmul.f32 %v3386, %v3593
      %v3607 = vmul.f32 %v3387, %v3593
      %v3608 = vmul.f32 %v3388, %v3593
      %v3609 = vmul.f32 %v3389, %v3593
      %v3610 = vmul.f32 %v3390, %v3593
      %v3611 = vmul.f32 %v3391, %v3593
      %v3612 = vmul.f32 %v3392, %v3593
      %v3613 = vmul.f32 %v3393, %v3593
      %v3614 = vmul.f32 %v3394, %v3593
      %v3615 = vmul.f32 %v3395, %v3593
      %v3616 = vmul.f32 %v3396, %v3593
      %v3617 = vmul.f32 %v3397, %v3593
      %v3618 = vmul.f32 %v3398, %v3593
      %v3619 = vmul.f32 %v3399, %v3593
      %v3620 = vmul.f32 %v3400, %v3593
      %v3621 = vmul.f32 %v3401, %v3593
      %v3622 = vmul.f32 %v3402, %v3593
      %v3623 = vmul.f32 %v3403, %v3593
      %v3624 = vmul.f32 %v3404, %v3593
      %v3625 = vmul.f32 %v3405, %v3593
      %v3626 = vmul.f32 %v3406, %v3593
      %v3628 = vlaneseq
      %v3629 = vshrl.u32 %v3628, 7
      %v3630 = vsub.s32 0, %v3629
      %v3631 = vrot.slane %v3588, %v3630
      %v3633 = vadd.f32 %v3595, %v3631
      %v3634 = vadd.f32 %v3596, %v3631
      %v3635 = vadd.f32 %v3597, %v3631
      %v3636 = vadd.f32 %v3598, %v3631
      %v3637 = vadd.f32 %v3599, %v3631
      %v3638 = vadd.f32 %v3600, %v3631
      %v3639 = vadd.f32 %v3601, %v3631
      %v3640 = vadd.f32 %v3602, %v3631
      %v3641 = vadd.f32 %v3603, %v3631
      %v3642 = vadd.f32 %v3604, %v3631
      %v3643 = vadd.f32 %v3605, %v3631
      %v3644 = vadd.f32 %v3606, %v3631
      %v3645 = vadd.f32 %v3607, %v3631
      %v3646 = vadd.f32 %v3608, %v3631
      %v3647 = vadd.f32 %v3609, %v3631
      %v3648 = vadd.f32 %v3610, %v3631
      %v3649 = vadd.f32 %v3611, %v3631
      %v3650 = vadd.f32 %v3612, %v3631
      %v3651 = vadd.f32 %v3613, %v3631
      %v3652 = vadd.f32 %v3614, %v3631
      %v3653 = vadd.f32 %v3615, %v3631
      %v3654 = vadd.f32 %v3616, %v3631
      %v3655 = vadd.f32 %v3617, %v3631
      %v3656 = vadd.f32 %v3618, %v3631
      %v3657 = vadd.f32 %v3619, %v3631
      %v3658 = vadd.f32 %v3620, %v3631
      %v3659 = vadd.f32 %v3621, %v3631
      %v3660 = vadd.f32 %v3622, %v3631
      %v3661 = vadd.f32 %v3623, %v3631
      %v3662 = vadd.f32 %v3624, %v3631
      %v3663 = vadd.f32 %v3625, %v3631
      %v3664 = vadd.f32 %v3626, %v3631
      %v3665 = vadd.f32 %v3633, %v279
      %v3666 = vadd.f32 %v3634, %v280
      %v3667 = vadd.f32 %v3635, %v281
      %v3668 = vadd.f32 %v3636, %v282
      %v3669 = vadd.f32 %v3637, %v283
      %v3670 = vadd.f32 %v3638, %v284
      %v3671 = vadd.f32 %v3639, %v285
      %v3672 = vadd.f32 %v3640, %v286
      %v3673 = vadd.f32 %v3641, %v287
      %v3674 = vadd.f32 %v3642, %v288
      %v3675 = vadd.f32 %v3643, %v289
      %v3676 = vadd.f32 %v3644, %v290
      %v3677 = vadd.f32 %v3645, %v291
      %v3678 = vadd.f32 %v3646, %v292
      %v3679 = vadd.f32 %v3647, %v293
      %v3680 = vadd.f32 %v3648, %v294
      %v3681 = vadd.f32 %v3649, %v295
      %v3682 = vadd.f32 %v3650, %v296
      %v3683 = vadd.f32 %v3651, %v297
      %v3684 = vadd.f32 %v3652, %v298
      %v3685 = vadd.f32 %v3653, %v299
      %v3686 = vadd.f32 %v3654, %v300
      %v3687 = vadd.f32 %v3655, %v301
      %v3688 = vadd.f32 %v3656, %v302
      %v3689 = vadd.f32 %v3657, %v303
      %v3690 = vadd.f32 %v3658, %v304
      %v3691 = vadd.f32 %v3659, %v305
      %v3692 = vadd.f32 %v3660, %v306
      %v3693 = vadd.f32 %v3661, %v307
      %v3694 = vadd.f32 %v3662, %v308
      %v3695 = vadd.f32 %v3663, %v309
      %v3696 = vadd.f32 %v3664, %v310
      %3697 = vst.msk [vmem:[%s278] sm:$0xff] %vm312, %v3665
      %3698 = vst.msk [vmem:[%s278 + $0x8] sm:$0xff] %vm312, %v3666
      %3699 = vst.msk [vmem:[%s278 + $0x10] sm:$0xff] %vm312, %v3667
      %3700 = vst.msk [vmem:[%s278 + $0x18] sm:$0xff] %vm312, %v3668
      %3701 = vst.msk [vmem:[%s278 + $0x20] sm:$0xff] %vm312, %v3669
      %3702 = vst.msk [vmem:[%s278 + $0x28] sm:$0xff] %vm312, %v3670
      %3703 = vst.msk [vmem:[%s278 + $0x30] sm:$0xff] %vm312, %v3671
      %3704 = vst.msk [vmem:[%s278 + $0x38] sm:$0xff] %vm312, %v3672
      %3705 = vst.msk [vmem:[%s278 + $0x40] sm:$0xff] %vm312, %v3673
      %3706 = vst.msk [vmem:[%s278 + $0x48] sm:$0xff] %vm312, %v3674
      %3707 = vst.msk [vmem:[%s278 + $0x50] sm:$0xff] %vm312, %v3675
      %3708 = vst.msk [vmem:[%s278 + $0x58] sm:$0xff] %vm312, %v3676
      %3709 = vst.msk [vmem:[%s278 + $0x60] sm:$0xff] %vm312, %v3677
      %3710 = vst.msk [vmem:[%s278 + $0x68] sm:$0xff] %vm312, %v3678
      %3711 = vst.msk [vmem:[%s278 + $0x70] sm:$0xff] %vm312, %v3679
      %3712 = vst.msk [vmem:[%s278 + $0x78] sm:$0xff] %vm312, %v3680
      %3713 = vst.msk [vmem:[%s278 + $0x80] sm:$0xff] %vm312, %v3681
      %3714 = vst.msk [vmem:[%s278 + $0x88] sm:$0xff] %vm312, %v3682
      %3715 = vst.msk [vmem:[%s278 + $0x90] sm:$0xff] %vm312, %v3683
      %3716 = vst.msk [vmem:[%s278 + $0x98] sm:$0xff] %vm312, %v3684
      %3717 = vst.msk [vmem:[%s278 + $0xa0] sm:$0xff] %vm312, %v3685
      %3718 = vst.msk [vmem:[%s278 + $0xa8] sm:$0xff] %vm312, %v3686
      %3719 = vst.msk [vmem:[%s278 + $0xb0] sm:$0xff] %vm312, %v3687
      %3720 = vst.msk [vmem:[%s278 + $0xb8] sm:$0xff] %vm312, %v3688
      %3721 = vst.msk [vmem:[%s278 + $0xc0] sm:$0xff] %vm312, %v3689
      %3722 = vst.msk [vmem:[%s278 + $0xc8] sm:$0xff] %vm312, %v3690
      %3723 = vst.msk [vmem:[%s278 + $0xd0] sm:$0xff] %vm312, %v3691
      %3724 = vst.msk [vmem:[%s278 + $0xd8] sm:$0xff] %vm312, %v3692
      %3725 = vst.msk [vmem:[%s278 + $0xe0] sm:$0xff] %vm312, %v3693
      %3726 = vst.msk [vmem:[%s278 + $0xe8] sm:$0xff] %vm312, %v3694
      %3727 = vst.msk [vmem:[%s278 + $0xf0] sm:$0xff] %vm312, %v3695
      %3728 = vst.msk [vmem:[%s278 + $0xf8] sm:$0xff] %vm312, %v3696
      %p3729 = scmp.lt.s32.totalorder %s18, 1
      %s3730 = scalar_select %p3729, %s18, 1
      %s3731 = smul.addr %s3730, 32
      %s3732 = smul.addr %s3731, 8
      %s3733 = scalar_lea.vmem %s7, %s3732
      // Predicated region
      $region49: #{tpu_custom_call.1} parent=47 // pred_check
        %p3734 = pneg %p188
      $region50: #{tpu_custom_call.1} parent=47 // pred_check_branch
        %3736 = sbr.rel (%p3734) target = $region52
      $region51: #{tpu_custom_call.1} parent=47 // pred_region
        _
      $region52: #{tpu_custom_call.1} parent=47 // pred_fallthru
        _
    $region48: #{tpu_custom_call.1} parent=5 // pred_fallthru
      _
    %p3737 = scmp.le.s32.totalorder 2, %s13
    // Predicated region
    $region53: #{tpu_custom_call.1} parent=5 // pred_check
      %p3738 = pneg %p3737
    $region54: #{tpu_custom_call.1} parent=5 // pred_check_branch
      %3740 = sbr.rel (%p3738) target = $region56
    $region55: #{tpu_custom_call.1} parent=5 // pred_region
      %s3741 = ssub.s32 %s13, 2
      // Predicated region
      $region57: #{tpu_custom_call.1} parent=55 // pred_check
        %p3742 = pneg %p194
      $region58: #{tpu_custom_call.1} parent=55 // pred_check_branch
        %3744 = sbr.rel (%p3742) target = $region60
      $region59: #{tpu_custom_call.1} parent=55 // pred_region
        %p3745 = scmp.lt.s32.totalorder %s19, 1
        %s3746 = scalar_select %p3745, %s19, 1
        %s3747 = smul.addr %s3746, 32
        %s3748 = smul.addr %s3747, 8
        %s3749 = scalar_lea.vmem %s7, %s3748
      $region60: #{tpu_custom_call.1} parent=55 // pred_fallthru
        _
    $region56: #{tpu_custom_call.1} parent=5 // pred_fallthru
      _
  $region6: #{tpu_custom_call.1} parent=0 // loop_footer
    %s17 = sadd.s32 1, %s13
  $region7: #{tpu_custom_call.1} parent=0 // loop_footer_branch
    %12 = sbr.rel target = $region3
  $region8: #{tpu_custom_call.1} parent=0 // loop_exit
    _

</llo_original>
